<compile_context>
chip_gen: v6e
topology: v6e:2x2x1
jax: 0.10.0
libtpu: 0.0.40
codegen_flags: <defaults>
</compile_context>

<pallas_src>
import math

import numpy as np
import jax
import jax.numpy as jnp
from jax.experimental import pallas as pl
from jax.experimental.pallas import tpu as pltpu

# ----------------------------- configuration -------------------------------
D = 2            # coord_dims (fc output size)
T_IN = 8         # input_timesteps
T_OUT = 4        # output_timesteps
H = 32           # hidden_size
PE = 2           # positional_embeddings
F = D * 2 * PE   # GRU input size = (p_in+1 + v_in) * coord_dims * 2*PE = 8
G4 = 4 * H       # fused gate width [r | z | n_i | n_h] = 128 lanes
CAT = F + H + 1  # decoder fused input width [xe | h | 1] = 41
CAT_PAD = 48     # padded to a multiple of 8 sublanes
CHUNK_B = 8      # sequences processed per grid step (full sublane set)

# packed-weight buffer row offsets (every block starts on an 8-row boundary)
ROW_EWI = 0      # (F, G4)        encoder input weights, 4H layout
ROW_EWH = 8      # (H, G4)        encoder hidden weights, 4H layout
ROW_EB = 40      # (1, G4)        encoder combined bias
ROW_DWC = 48     # (CAT_PAD, G4)  decoder fused [x|h|1|pad] weights (+bias row)
ROW_FCW = 96     # (H, D)         fc weight
ROW_FCB = 128    # (1, D)         fc bias
ROW_R = 136      # (D, F)         pos-embed projection matrix
ROW_PH = 144     # (1, F)         pos-embed phase row (0 -> sin, pi/2 -> cos)
ROW_WFEED = 152  # (H, F)         fused feedback matrix  fcW @ R
ROW_BFEED = 184  # (1, F)         fused feedback bias    fcb @ R + phase
N_ROWS = 192


# --------------------------------- kernel ----------------------------------
def seq2seq_kernel(x_ref, w_ref, out_ref):
    f32 = jnp.float32
    CB = CHUNK_B

    # Static slices of the single packed-weight buffer (one HBM->VMEM DMA,
    # VMEM-resident across all grid steps thanks to the constant index_map).
    eWi = w_ref[ROW_EWI:ROW_EWI + F, :]              # (F, 4H)
    eWh = w_ref[ROW_EWH:ROW_EWH + H, :]              # (H, 4H)
    eb = w_ref[ROW_EB:ROW_EB + 1, :]                 # (1, 4H)
    dWc = w_ref[ROW_DWC:ROW_DWC + CAT_PAD, :]        # (48, 4H)
    fcw = w_ref[ROW_FCW:ROW_FCW + H, 0:D]            # (H, D)
    fcb = w_ref[ROW_FCB:ROW_FCB + 1, 0:D]            # (1, D)
    Rm = w_ref[ROW_R:ROW_R + D, 0:F]                 # (D, F)
    ph = w_ref[ROW_PH:ROW_PH + 1, 0:F]               # (1, F)
    Wf = w_ref[ROW_WFEED:ROW_WFEED + H, 0:F]         # (H, F) fused feedback
    bf = w_ref[ROW_BFEED:ROW_BFEED + 1, 0:F]         # (1, F)

    def gru_update(pre, h):
        # pre: (CB, 4H) = [r_pre | z_pre | n_i | n_h]
        rz = jax.nn.sigmoid(pre[:, 0:2 * H])         # one EUP pass for r and z
        r = rz[:, 0:H]
        z = rz[:, H:2 * H]
        n = jnp.tanh(pre[:, 2 * H:3 * H] + r * pre[:, 3 * H:4 * H])
        return (1.0 - z) * n + z * h

    # ---- encoder: embed + input projection hoisted out of the loop ---------
    # Time-major rows (t*CB + b) so the per-step slice is a contiguous,
    # vreg-aligned sublane block (no XLU gathers inside the recurrence).
    xf = x_ref[...].reshape(T_IN * CB, D)                           # (64, D)
    xe_all = jnp.sin(jnp.dot(xf, Rm, preferred_element_type=f32) + ph)   # (64, F)
    gx_all = jnp.dot(xe_all, eWi, preferred_element_type=f32) + eb       # (64, 4H)

    h = jnp.zeros((CB, H), f32)
    for t in range(T_IN):                    # static unroll (small T_IN)
        pre = gx_all[t * CB:(t + 1) * CB, :] + jnp.dot(
            h, eWh, preferred_element_type=f32)
        h = gru_update(pre, h)

    # embedding of the last input timestep (contiguous sublane rows)
    x_feed = xe_all[(T_IN - 1) * CB:T_IN * CB, :]                   # (CB, F)

    # constant-1 column (bias row of dWc) followed by zero padding
    ones_tail = (jax.lax.broadcasted_iota(
        jnp.int32, (CB, CAT_PAD - F - H), 1) == 0).astype(f32)      # (CB, 8)

    # ---- decoder: fused [x|h|1] matmul + fused fc->embed feedback ----------
    hs = []
    for t in range(T_OUT):                   # static unroll (small T_OUT)
        cat = jnp.concatenate([x_feed, h, ones_tail], axis=-1)      # (CB, 48)
        pre = jnp.dot(cat, dWc, preferred_element_type=f32)         # (CB, 4H)
        h = gru_update(pre, h)
        hs.append(h)
        if t + 1 < T_OUT:
            # pos_embed(fc(h)) fused at pack time: sin(h @ (fcW@R) + (fcb@R+ph))
            x_feed = jnp.sin(jnp.dot(h, Wf, preferred_element_type=f32) + bf)

    # all fc outputs in ONE batched matmul, off the recurrent critical path
    h_all = jnp.concatenate(hs, axis=0)                             # (T_OUT*CB, H)
    y_all = jnp.dot(h_all, fcw, preferred_element_type=f32) + fcb   # (T_OUT*CB, D)
    out_ref[...] = y_all.reshape(T_OUT, CB, D)


# ------------------------------ param packing -------------------------------
def make_params(key):
    """Raw PyTorch-convention GRU/Linear params, uniform(-1/sqrt(H), 1/sqrt(H))."""
    bound = 1.0 / math.sqrt(H)
    ks = jax.random.split(key, 10)
    u = lambda k, s: jax.random.uniform(k, s, jnp.float32, -bound, bound)
    return dict(
        e_wih=u(ks[0], (3 * H, F)), e_whh=u(ks[1], (3 * H, H)),
        e_bih=u(ks[2], (3 * H,)), e_bhh=u(ks[3], (3 * H,)),
        d_wih=u(ks[4], (3 * H, F)), d_whh=u(ks[5], (3 * H, H)),
        d_bih=u(ks[6], (3 * H,)), d_bhh=u(ks[7], (3 * H,)),
        fc_w=u(ks[8], (D, H)), fc_b=u(ks[9], (D,)),
    )


def _fuse_gru(w_ih, w_hh, b_ih, b_hh):
    """PyTorch (r,z,n) GRU params -> 4H column layout [r | z | n_i | n_h]."""
    wi = w_ih.T  # (in, 3H)
    wh = w_hh.T  # (H, 3H)
    W_i4 = jnp.concatenate(
        [wi[:, :2 * H], wi[:, 2 * H:], jnp.zeros((wi.shape[0], H), jnp.float32)],
        axis=1)
    W_h4 = jnp.concatenate(
        [wh[:, :2 * H], jnp.zeros((H, H), jnp.float32), wh[:, 2 * H:]], axis=1)
    b4 = jnp.concatenate([b_ih[:2 * H] + b_hh[:2 * H], b_ih[2 * H:], b_hh[2 * H:]])
    return W_i4, W_h4, b4


def _pos_embed_consts():
    """sin(v @ R + phase) reproduces concat([sin(2^i pi v), cos(2^i pi v)])_i."""
    R = np.zeros((D, F), np.float32)
    phase = np.zeros((F,), np.float32)
    for i in range(PE):
        w = (2.0 ** i) * math.pi
        for d in range(D):
            R[d, 2 * i * D + d] = w              # sin columns
            R[d, 2 * i * D + D + d] = w          # cos columns
        phase[2 * i * D + D:2 * (i + 1) * D] = math.pi / 2.0
    return R, phase


def pack_params(p):
    """Pack all weights/biases/constants into one (N_ROWS, 128) f32 buffer."""
    eWi4, eWh4, eb4 = _fuse_gru(p["e_wih"], p["e_whh"], p["e_bih"], p["e_bhh"])
    dWi4, dWh4, db4 = _fuse_gru(p["d_wih"], p["d_whh"], p["d_bih"], p["d_bhh"])
    dWc = jnp.concatenate(
        [dWi4, dWh4, db4[None, :],
         jnp.zeros((CAT_PAD - CAT, G4), jnp.float32)], axis=0)
    R_np, ph_np = _pos_embed_consts()

    # Fused decoder feedback (fc -> pos_embed) computed in true f32 on host.
    fcw_np = np.asarray(p["fc_w"], np.float32).T          # (H, D)
    fcb_np = np.asarray(p["fc_b"], np.float32)            # (D,)
    Wfeed = fcw_np @ R_np                                  # (H, F)
    bfeed = fcb_np @ R_np + ph_np                          # (F,)

    W = jnp.zeros((N_ROWS, G4), jnp.float32)
    W = W.at[ROW_EWI:ROW_EWI + F, :].set(eWi4)
    W = W.at[ROW_EWH:ROW_EWH + H, :].set(eWh4)
    W = W.at[ROW_EB, :].set(eb4)
    W = W.at[ROW_DWC:ROW_DWC + CAT_PAD, :].set(dWc)
    W = W.at[ROW_FCW:ROW_FCW + H, 0:D].set(jnp.asarray(fcw_np))
    W = W.at[ROW_FCB, 0:D].set(jnp.asarray(fcb_np))
    W = W.at[ROW_R:ROW_R + D, 0:F].set(jnp.asarray(R_np))
    W = W.at[ROW_PH, 0:F].set(jnp.asarray(ph_np))
    W = W.at[ROW_WFEED:ROW_WFEED + H, 0:F].set(jnp.asarray(Wfeed))
    W = W.at[ROW_BFEED, 0:F].set(jnp.asarray(bfeed))
    return W


# ------------------------------- wrapper ------------------------------------
def seq2seq_forward(x_btd, w_packed):
    """x_btd: (B, T_IN, D) -> (B, T_OUT, D), matching the PyTorch forward."""
    b = x_btd.shape[0]
    b_pad = ((b + CHUNK_B - 1) // CHUNK_B) * CHUNK_B
    x = x_btd.astype(jnp.float32)
    if b_pad != b:
        x = jnp.pad(x, ((0, b_pad - b), (0, 0), (0, 0)))
    x_tbd = jnp.transpose(x, (1, 0, 2))        # time-major (T_IN, B_pad, D)
    n_chunks = b_pad // CHUNK_B

    out_tbd = pl.pallas_call(
        seq2seq_kernel,
        out_shape=jax.ShapeDtypeStruct((T_OUT, b_pad, D), jnp.float32),
        grid=(n_chunks,),
        in_specs=[
            # batch-chunk of sequences
            pl.BlockSpec((T_IN, CHUNK_B, D), lambda i: (0, i, 0)),
            # packed weights: constant block index -> single DMA, VMEM-resident
            pl.BlockSpec((N_ROWS, G4), lambda i: (0, 0)),
        ],
        out_specs=pl.BlockSpec((T_OUT, CHUNK_B, D), lambda i: (0, i, 0)),
        compiler_params=pltpu.CompilerParams(
            dimension_semantics=("parallel",)),
    )(x_tbd, w_packed)

    out = jnp.transpose(out_tbd, (1, 0, 2))    # (B_pad, T_OUT, D)
    return out[:b]


# ----------------------------- pure-JAX reference ---------------------------
def seq2seq_reference(x_btd, p):
    b = x_btd.shape[0]

    def pos_embed(v):
        parts = []
        for i in range(PE):
            w = (2.0 ** i) * math.pi
            parts.append(jnp.sin(w * v))
            parts.append(jnp.cos(w * v))
        return jnp.concatenate(parts, axis=-1)

    def cell(xv, h, wih, whh, bih, bhh):
        gi = xv @ wih.T + bih
        gh = h @ whh.T + bhh
        r = jax.nn.sigmoid(gi[:, :H] + gh[:, :H])
        z = jax.nn.sigmoid(gi[:, H:2 * H] + gh[:, H:2 * H])
        n = jnp.tanh(gi[:, 2 * H:] + r * gh[:, 2 * H:])
        return (1.0 - z) * n + z * h

    h = jnp.zeros((b, H), jnp.float32)
    xe = None
    for t in range(T_IN):
        xe = pos_embed(x_btd[:, t, :])
        h = cell(xe, h, p["e_wih"], p["e_whh"], p["e_bih"], p["e_bhh"])
    x_feed = xe
    outs = []
    for _ in range(T_OUT):
        h = cell(x_feed, h, p["d_wih"], p["d_whh"], p["d_bih"], p["d_bhh"])
        y = h @ p["fc_w"].T + p["fc_b"]
        outs.append(y)
        x_feed = pos_embed(y)
    return jnp.stack(outs, axis=1)


# --------------------------------- main --------------------------------------
if __name__ == "__main__":
    B = 8            # >= 8 sequences per call so every vreg/MXU push is full
    key = jax.random.PRNGKey(0)
    k_x, k_p = jax.random.split(key)
    x = jax.random.normal(k_x, (B, T_IN, D), jnp.float32) * 0.5
    params = make_params(k_p)
    w_packed = pack_params(params)

    out = jax.block_until_ready(jax.jit(seq2seq_forward)(x, w_packed))
    ref = seq2seq_reference(x, params)

    assert out.shape == (B, T_OUT, D)
    assert jnp.allclose(out, ref, atol=2e-3, rtol=2e-3), (
        f"max abs diff {jnp.max(jnp.abs(out - ref))}")
    print("KERNEL_OK")
</pallas_src>

<mosaic_0001>
module attributes {stable_mosaic.version = 11 : i64} {
  func.func @seq2seq_kernel(%arg0: i32, %arg1: memref<8x8x2xf32, #tpu.memory_space<vmem>>, %arg2: memref<192x128xf32, #tpu.memory_space<vmem>>, %arg3: memref<4x8x2xf32, #tpu.memory_space<vmem>>) attributes {dimension_semantics = [#tpu.dimension_semantics<parallel>], iteration_bounds = array<i64: 1>, scalar_prefetch = 0 : i64, scratch_operands = 0 : i64, tpu.core_type = #tpu.core_type<tc>, window_params = [{transform_indices = @transform_0, window_bounds = array<i64: 8, 8, 2>}, {pipeline_mode = #tpu.pipeline_mode<synchronous>, transform_indices = @transform_1, window_bounds = array<i64: 192, 128>}, {transform_indices = @transform_2, window_bounds = array<i64: 4, 8, 2>}]} {
    %c0 = arith.constant 0 : index
    %c0_0 = arith.constant 0 : index
    %0 = vector.load %arg2[%c0, %c0_0] : memref<192x128xf32, #tpu.memory_space<vmem>>, vector<8x128xf32>
    %c8 = arith.constant 8 : index
    %c0_1 = arith.constant 0 : index
    %1 = vector.load %arg2[%c8, %c0_1] : memref<192x128xf32, #tpu.memory_space<vmem>>, vector<32x128xf32>
    %c40 = arith.constant 40 : index
    %c0_2 = arith.constant 0 : index
    %2 = vector.load %arg2[%c40, %c0_2] : memref<192x128xf32, #tpu.memory_space<vmem>>, vector<1x128xf32>
    %c48 = arith.constant 48 : index
    %c0_3 = arith.constant 0 : index
    %3 = vector.load %arg2[%c48, %c0_3] : memref<192x128xf32, #tpu.memory_space<vmem>>, vector<48x128xf32>
    %c96 = arith.constant 96 : index
    %c0_4 = arith.constant 0 : index
    %4 = vector.load %arg2[%c96, %c0_4] : memref<192x128xf32, #tpu.memory_space<vmem>>, vector<32x2xf32>
    %c128 = arith.constant 128 : index
    %c0_5 = arith.constant 0 : index
    %5 = vector.load %arg2[%c128, %c0_5] : memref<192x128xf32, #tpu.memory_space<vmem>>, vector<1x2xf32>
    %c136 = arith.constant 136 : index
    %c0_6 = arith.constant 0 : index
    %6 = vector.load %arg2[%c136, %c0_6] : memref<192x128xf32, #tpu.memory_space<vmem>>, vector<2x8xf32>
    %c144 = arith.constant 144 : index
    %c0_7 = arith.constant 0 : index
    %7 = vector.load %arg2[%c144, %c0_7] : memref<192x128xf32, #tpu.memory_space<vmem>>, vector<1x8xf32>
    %c152 = arith.constant 152 : index
    %c0_8 = arith.constant 0 : index
    %8 = vector.load %arg2[%c152, %c0_8] : memref<192x128xf32, #tpu.memory_space<vmem>>, vector<32x8xf32>
    %c184 = arith.constant 184 : index
    %c0_9 = arith.constant 0 : index
    %9 = vector.load %arg2[%c184, %c0_9] : memref<192x128xf32, #tpu.memory_space<vmem>>, vector<1x8xf32>
    %c0_10 = arith.constant 0 : index
    %c0_11 = arith.constant 0 : index
    %c0_12 = arith.constant 0 : index
    %10 = vector.load %arg1[%c0_10, %c0_11, %c0_12] : memref<8x8x2xf32, #tpu.memory_space<vmem>>, vector<8x8x2xf32>
    %11 = vector.shape_cast %10 : vector<8x8x2xf32> to vector<64x2xf32>
    %cst = arith.constant dense<0.000000e+00> : vector<64x8xf32>
    %12 = tpu.matmul %11, %6, %cst {dimension_numbers = #tpu.dot_dimension_numbers<[1], [0], [0], [1], [0, 0, 1, 1], [], []>} : vector<64x2xf32>, vector<2x8xf32>, vector<64x8xf32> -> vector<64x8xf32>
    %13 = vector.broadcast %7 : vector<1x8xf32> to vector<64x8xf32>
    %14 = arith.addf %12, %13 : vector<64x8xf32>
    %15 = math.sin %14 : vector<64x8xf32>
    %cst_13 = arith.constant dense<0.000000e+00> : vector<64x128xf32>
    %16 = tpu.matmul %15, %0, %cst_13 {dimension_numbers = #tpu.dot_dimension_numbers<[1], [0], [0], [1], [0, 0, 1, 1], [], []>} : vector<64x8xf32>, vector<8x128xf32>, vector<64x128xf32> -> vector<64x128xf32>
    %17 = vector.broadcast %2 : vector<1x128xf32> to vector<64x128xf32>
    %18 = arith.addf %16, %17 : vector<64x128xf32>
    %cst_14 = arith.constant 0.000000e+00 : f32
    %19 = vector.broadcast %cst_14 : f32 to vector<8x32xf32>
    %20 = vector.extract_strided_slice %18 {offsets = [0, 0], sizes = [8, 128], strides = [1, 1]} : vector<64x128xf32> to vector<8x128xf32>
    %cst_15 = arith.constant dense<0.000000e+00> : vector<8x128xf32>
    %21 = tpu.matmul %19, %1, %cst_15 {dimension_numbers = #tpu.dot_dimension_numbers<[1], [0], [0], [1], [0, 0, 1, 1], [], []>} : vector<8x32xf32>, vector<32x128xf32>, vector<8x128xf32> -> vector<8x128xf32>
    %22 = arith.addf %20, %21 : vector<8x128xf32>
    %23 = vector.extract_strided_slice %22 {offsets = [0, 0], sizes = [8, 64], strides = [1, 1]} : vector<8x128xf32> to vector<8x64xf32>
    %24 = arith.negf %23 : vector<8x64xf32>
    %25 = math.exp %24 : vector<8x64xf32>
    %cst_16 = arith.constant 1.000000e+00 : f32
    %26 = vector.broadcast %cst_16 : f32 to vector<8x64xf32>
    %27 = arith.addf %26, %25 : vector<8x64xf32>
    %28 = arith.divf %26, %27 : vector<8x64xf32>
    %29 = vector.extract_strided_slice %28 {offsets = [0, 0], sizes = [8, 32], strides = [1, 1]} : vector<8x64xf32> to vector<8x32xf32>
    %30 = vector.extract_strided_slice %28 {offsets = [0, 32], sizes = [8, 32], strides = [1, 1]} : vector<8x64xf32> to vector<8x32xf32>
    %31 = vector.extract_strided_slice %22 {offsets = [0, 64], sizes = [8, 32], strides = [1, 1]} : vector<8x128xf32> to vector<8x32xf32>
    %32 = vector.extract_strided_slice %22 {offsets = [0, 96], sizes = [8, 32], strides = [1, 1]} : vector<8x128xf32> to vector<8x32xf32>
    %33 = arith.mulf %29, %32 : vector<8x32xf32>
    %34 = arith.addf %31, %33 : vector<8x32xf32>
    %35 = math.tanh %34 : vector<8x32xf32>
    %cst_17 = arith.constant 1.000000e+00 : f32
    %36 = vector.broadcast %cst_17 : f32 to vector<8x32xf32>
    %37 = arith.subf %36, %30 : vector<8x32xf32>
    %38 = arith.mulf %37, %35 : vector<8x32xf32>
    %39 = arith.mulf %30, %19 : vector<8x32xf32>
    %40 = arith.addf %38, %39 : vector<8x32xf32>
    %41 = vector.extract_strided_slice %18 {offsets = [8, 0], sizes = [8, 128], strides = [1, 1]} : vector<64x128xf32> to vector<8x128xf32>
    %cst_18 = arith.constant dense<0.000000e+00> : vector<8x128xf32>
    %42 = tpu.matmul %40, %1, %cst_18 {dimension_numbers = #tpu.dot_dimension_numbers<[1], [0], [0], [1], [0, 0, 1, 1], [], []>} : vector<8x32xf32>, vector<32x128xf32>, vector<8x128xf32> -> vector<8x128xf32>
    %43 = arith.addf %41, %42 : vector<8x128xf32>
    %44 = vector.extract_strided_slice %43 {offsets = [0, 0], sizes = [8, 64], strides = [1, 1]} : vector<8x128xf32> to vector<8x64xf32>
    %45 = arith.negf %44 : vector<8x64xf32>
    %46 = math.exp %45 : vector<8x64xf32>
    %cst_19 = arith.constant 1.000000e+00 : f32
    %47 = vector.broadcast %cst_19 : f32 to vector<8x64xf32>
    %48 = arith.addf %47, %46 : vector<8x64xf32>
    %49 = arith.divf %47, %48 : vector<8x64xf32>
    %50 = vector.extract_strided_slice %49 {offsets = [0, 0], sizes = [8, 32], strides = [1, 1]} : vector<8x64xf32> to vector<8x32xf32>
    %51 = vector.extract_strided_slice %49 {offsets = [0, 32], sizes = [8, 32], strides = [1, 1]} : vector<8x64xf32> to vector<8x32xf32>
    %52 = vector.extract_strided_slice %43 {offsets = [0, 64], sizes = [8, 32], strides = [1, 1]} : vector<8x128xf32> to vector<8x32xf32>
    %53 = vector.extract_strided_slice %43 {offsets = [0, 96], sizes = [8, 32], strides = [1, 1]} : vector<8x128xf32> to vector<8x32xf32>
    %54 = arith.mulf %50, %53 : vector<8x32xf32>
    %55 = arith.addf %52, %54 : vector<8x32xf32>
    %56 = math.tanh %55 : vector<8x32xf32>
    %cst_20 = arith.constant 1.000000e+00 : f32
    %57 = vector.broadcast %cst_20 : f32 to vector<8x32xf32>
    %58 = arith.subf %57, %51 : vector<8x32xf32>
    %59 = arith.mulf %58, %56 : vector<8x32xf32>
    %60 = arith.mulf %51, %40 : vector<8x32xf32>
    %61 = arith.addf %59, %60 : vector<8x32xf32>
    %62 = vector.extract_strided_slice %18 {offsets = [16, 0], sizes = [8, 128], strides = [1, 1]} : vector<64x128xf32> to vector<8x128xf32>
    %cst_21 = arith.constant dense<0.000000e+00> : vector<8x128xf32>
    %63 = tpu.matmul %61, %1, %cst_21 {dimension_numbers = #tpu.dot_dimension_numbers<[1], [0], [0], [1], [0, 0, 1, 1], [], []>} : vector<8x32xf32>, vector<32x128xf32>, vector<8x128xf32> -> vector<8x128xf32>
    %64 = arith.addf %62, %63 : vector<8x128xf32>
    %65 = vector.extract_strided_slice %64 {offsets = [0, 0], sizes = [8, 64], strides = [1, 1]} : vector<8x128xf32> to vector<8x64xf32>
    %66 = arith.negf %65 : vector<8x64xf32>
    %67 = math.exp %66 : vector<8x64xf32>
    %cst_22 = arith.constant 1.000000e+00 : f32
    %68 = vector.broadcast %cst_22 : f32 to vector<8x64xf32>
    %69 = arith.addf %68, %67 : vector<8x64xf32>
    %70 = arith.divf %68, %69 : vector<8x64xf32>
    %71 = vector.extract_strided_slice %70 {offsets = [0, 0], sizes = [8, 32], strides = [1, 1]} : vector<8x64xf32> to vector<8x32xf32>
    %72 = vector.extract_strided_slice %70 {offsets = [0, 32], sizes = [8, 32], strides = [1, 1]} : vector<8x64xf32> to vector<8x32xf32>
    %73 = vector.extract_strided_slice %64 {offsets = [0, 64], sizes = [8, 32], strides = [1, 1]} : vector<8x128xf32> to vector<8x32xf32>
    %74 = vector.extract_strided_slice %64 {offsets = [0, 96], sizes = [8, 32], strides = [1, 1]} : vector<8x128xf32> to vector<8x32xf32>
    %75 = arith.mulf %71, %74 : vector<8x32xf32>
    %76 = arith.addf %73, %75 : vector<8x32xf32>
    %77 = math.tanh %76 : vector<8x32xf32>
    %cst_23 = arith.constant 1.000000e+00 : f32
    %78 = vector.broadcast %cst_23 : f32 to vector<8x32xf32>
    %79 = arith.subf %78, %72 : vector<8x32xf32>
    %80 = arith.mulf %79, %77 : vector<8x32xf32>
    %81 = arith.mulf %72, %61 : vector<8x32xf32>
    %82 = arith.addf %80, %81 : vector<8x32xf32>
    %83 = vector.extract_strided_slice %18 {offsets = [24, 0], sizes = [8, 128], strides = [1, 1]} : vector<64x128xf32> to vector<8x128xf32>
    %cst_24 = arith.constant dense<0.000000e+00> : vector<8x128xf32>
    %84 = tpu.matmul %82, %1, %cst_24 {dimension_numbers = #tpu.dot_dimension_numbers<[1], [0], [0], [1], [0, 0, 1, 1], [], []>} : vector<8x32xf32>, vector<32x128xf32>, vector<8x128xf32> -> vector<8x128xf32>
    %85 = arith.addf %83, %84 : vector<8x128xf32>
    %86 = vector.extract_strided_slice %85 {offsets = [0, 0], sizes = [8, 64], strides = [1, 1]} : vector<8x128xf32> to vector<8x64xf32>
    %87 = arith.negf %86 : vector<8x64xf32>
    %88 = math.exp %87 : vector<8x64xf32>
    %cst_25 = arith.constant 1.000000e+00 : f32
    %89 = vector.broadcast %cst_25 : f32 to vector<8x64xf32>
    %90 = arith.addf %89, %88 : vector<8x64xf32>
    %91 = arith.divf %89, %90 : vector<8x64xf32>
    %92 = vector.extract_strided_slice %91 {offsets = [0, 0], sizes = [8, 32], strides = [1, 1]} : vector<8x64xf32> to vector<8x32xf32>
    %93 = vector.extract_strided_slice %91 {offsets = [0, 32], sizes = [8, 32], strides = [1, 1]} : vector<8x64xf32> to vector<8x32xf32>
    %94 = vector.extract_strided_slice %85 {offsets = [0, 64], sizes = [8, 32], strides = [1, 1]} : vector<8x128xf32> to vector<8x32xf32>
    %95 = vector.extract_strided_slice %85 {offsets = [0, 96], sizes = [8, 32], strides = [1, 1]} : vector<8x128xf32> to vector<8x32xf32>
    %96 = arith.mulf %92, %95 : vector<8x32xf32>
    %97 = arith.addf %94, %96 : vector<8x32xf32>
    %98 = math.tanh %97 : vector<8x32xf32>
    %cst_26 = arith.constant 1.000000e+00 : f32
    %99 = vector.broadcast %cst_26 : f32 to vector<8x32xf32>
    %100 = arith.subf %99, %93 : vector<8x32xf32>
    %101 = arith.mulf %100, %98 : vector<8x32xf32>
    %102 = arith.mulf %93, %82 : vector<8x32xf32>
    %103 = arith.addf %101, %102 : vector<8x32xf32>
    %104 = vector.extract_strided_slice %18 {offsets = [32, 0], sizes = [8, 128], strides = [1, 1]} : vector<64x128xf32> to vector<8x128xf32>
    %cst_27 = arith.constant dense<0.000000e+00> : vector<8x128xf32>
    %105 = tpu.matmul %103, %1, %cst_27 {dimension_numbers = #tpu.dot_dimension_numbers<[1], [0], [0], [1], [0, 0, 1, 1], [], []>} : vector<8x32xf32>, vector<32x128xf32>, vector<8x128xf32> -> vector<8x128xf32>
    %106 = arith.addf %104, %105 : vector<8x128xf32>
    %107 = vector.extract_strided_slice %106 {offsets = [0, 0], sizes = [8, 64], strides = [1, 1]} : vector<8x128xf32> to vector<8x64xf32>
    %108 = arith.negf %107 : vector<8x64xf32>
    %109 = math.exp %108 : vector<8x64xf32>
    %cst_28 = arith.constant 1.000000e+00 : f32
    %110 = vector.broadcast %cst_28 : f32 to vector<8x64xf32>
    %111 = arith.addf %110, %109 : vector<8x64xf32>
    %112 = arith.divf %110, %111 : vector<8x64xf32>
    %113 = vector.extract_strided_slice %112 {offsets = [0, 0], sizes = [8, 32], strides = [1, 1]} : vector<8x64xf32> to vector<8x32xf32>
    %114 = vector.extract_strided_slice %112 {offsets = [0, 32], sizes = [8, 32], strides = [1, 1]} : vector<8x64xf32> to vector<8x32xf32>
    %115 = vector.extract_strided_slice %106 {offsets = [0, 64], sizes = [8, 32], strides = [1, 1]} : vector<8x128xf32> to vector<8x32xf32>
    %116 = vector.extract_strided_slice %106 {offsets = [0, 96], sizes = [8, 32], strides = [1, 1]} : vector<8x128xf32> to vector<8x32xf32>
    %117 = arith.mulf %113, %116 : vector<8x32xf32>
    %118 = arith.addf %115, %117 : vector<8x32xf32>
    %119 = math.tanh %118 : vector<8x32xf32>
    %cst_29 = arith.constant 1.000000e+00 : f32
    %120 = vector.broadcast %cst_29 : f32 to vector<8x32xf32>
    %121 = arith.subf %120, %114 : vector<8x32xf32>
    %122 = arith.mulf %121, %119 : vector<8x32xf32>
    %123 = arith.mulf %114, %103 : vector<8x32xf32>
    %124 = arith.addf %122, %123 : vector<8x32xf32>
    %125 = vector.extract_strided_slice %18 {offsets = [40, 0], sizes = [8, 128], strides = [1, 1]} : vector<64x128xf32> to vector<8x128xf32>
    %cst_30 = arith.constant dense<0.000000e+00> : vector<8x128xf32>
    %126 = tpu.matmul %124, %1, %cst_30 {dimension_numbers = #tpu.dot_dimension_numbers<[1], [0], [0], [1], [0, 0, 1, 1], [], []>} : vector<8x32xf32>, vector<32x128xf32>, vector<8x128xf32> -> vector<8x128xf32>
    %127 = arith.addf %125, %126 : vector<8x128xf32>
    %128 = vector.extract_strided_slice %127 {offsets = [0, 0], sizes = [8, 64], strides = [1, 1]} : vector<8x128xf32> to vector<8x64xf32>
    %129 = arith.negf %128 : vector<8x64xf32>
    %130 = math.exp %129 : vector<8x64xf32>
    %cst_31 = arith.constant 1.000000e+00 : f32
    %131 = vector.broadcast %cst_31 : f32 to vector<8x64xf32>
    %132 = arith.addf %131, %130 : vector<8x64xf32>
    %133 = arith.divf %131, %132 : vector<8x64xf32>
    %134 = vector.extract_strided_slice %133 {offsets = [0, 0], sizes = [8, 32], strides = [1, 1]} : vector<8x64xf32> to vector<8x32xf32>
    %135 = vector.extract_strided_slice %133 {offsets = [0, 32], sizes = [8, 32], strides = [1, 1]} : vector<8x64xf32> to vector<8x32xf32>
    %136 = vector.extract_strided_slice %127 {offsets = [0, 64], sizes = [8, 32], strides = [1, 1]} : vector<8x128xf32> to vector<8x32xf32>
    %137 = vector.extract_strided_slice %127 {offsets = [0, 96], sizes = [8, 32], strides = [1, 1]} : vector<8x128xf32> to vector<8x32xf32>
    %138 = arith.mulf %134, %137 : vector<8x32xf32>
    %139 = arith.addf %136, %138 : vector<8x32xf32>
    %140 = math.tanh %139 : vector<8x32xf32>
    %cst_32 = arith.constant 1.000000e+00 : f32
    %141 = vector.broadcast %cst_32 : f32 to vector<8x32xf32>
    %142 = arith.subf %141, %135 : vector<8x32xf32>
    %143 = arith.mulf %142, %140 : vector<8x32xf32>
    %144 = arith.mulf %135, %124 : vector<8x32xf32>
    %145 = arith.addf %143, %144 : vector<8x32xf32>
    %146 = vector.extract_strided_slice %18 {offsets = [48, 0], sizes = [8, 128], strides = [1, 1]} : vector<64x128xf32> to vector<8x128xf32>
    %cst_33 = arith.constant dense<0.000000e+00> : vector<8x128xf32>
    %147 = tpu.matmul %145, %1, %cst_33 {dimension_numbers = #tpu.dot_dimension_numbers<[1], [0], [0], [1], [0, 0, 1, 1], [], []>} : vector<8x32xf32>, vector<32x128xf32>, vector<8x128xf32> -> vector<8x128xf32>
    %148 = arith.addf %146, %147 : vector<8x128xf32>
    %149 = vector.extract_strided_slice %148 {offsets = [0, 0], sizes = [8, 64], strides = [1, 1]} : vector<8x128xf32> to vector<8x64xf32>
    %150 = arith.negf %149 : vector<8x64xf32>
    %151 = math.exp %150 : vector<8x64xf32>
    %cst_34 = arith.constant 1.000000e+00 : f32
    %152 = vector.broadcast %cst_34 : f32 to vector<8x64xf32>
    %153 = arith.addf %152, %151 : vector<8x64xf32>
    %154 = arith.divf %152, %153 : vector<8x64xf32>
    %155 = vector.extract_strided_slice %154 {offsets = [0, 0], sizes = [8, 32], strides = [1, 1]} : vector<8x64xf32> to vector<8x32xf32>
    %156 = vector.extract_strided_slice %154 {offsets = [0, 32], sizes = [8, 32], strides = [1, 1]} : vector<8x64xf32> to vector<8x32xf32>
    %157 = vector.extract_strided_slice %148 {offsets = [0, 64], sizes = [8, 32], strides = [1, 1]} : vector<8x128xf32> to vector<8x32xf32>
    %158 = vector.extract_strided_slice %148 {offsets = [0, 96], sizes = [8, 32], strides = [1, 1]} : vector<8x128xf32> to vector<8x32xf32>
    %159 = arith.mulf %155, %158 : vector<8x32xf32>
    %160 = arith.addf %157, %159 : vector<8x32xf32>
    %161 = math.tanh %160 : vector<8x32xf32>
    %cst_35 = arith.constant 1.000000e+00 : f32
    %162 = vector.broadcast %cst_35 : f32 to vector<8x32xf32>
    %163 = arith.subf %162, %156 : vector<8x32xf32>
    %164 = arith.mulf %163, %161 : vector<8x32xf32>
    %165 = arith.mulf %156, %145 : vector<8x32xf32>
    %166 = arith.addf %164, %165 : vector<8x32xf32>
    %167 = vector.extract_strided_slice %18 {offsets = [56, 0], sizes = [8, 128], strides = [1, 1]} : vector<64x128xf32> to vector<8x128xf32>
    %cst_36 = arith.constant dense<0.000000e+00> : vector<8x128xf32>
    %168 = tpu.matmul %166, %1, %cst_36 {dimension_numbers = #tpu.dot_dimension_numbers<[1], [0], [0], [1], [0, 0, 1, 1], [], []>} : vector<8x32xf32>, vector<32x128xf32>, vector<8x128xf32> -> vector<8x128xf32>
    %169 = arith.addf %167, %168 : vector<8x128xf32>
    %170 = vector.extract_strided_slice %169 {offsets = [0, 0], sizes = [8, 64], strides = [1, 1]} : vector<8x128xf32> to vector<8x64xf32>
    %171 = arith.negf %170 : vector<8x64xf32>
    %172 = math.exp %171 : vector<8x64xf32>
    %cst_37 = arith.constant 1.000000e+00 : f32
    %173 = vector.broadcast %cst_37 : f32 to vector<8x64xf32>
    %174 = arith.addf %173, %172 : vector<8x64xf32>
    %175 = arith.divf %173, %174 : vector<8x64xf32>
    %176 = vector.extract_strided_slice %175 {offsets = [0, 0], sizes = [8, 32], strides = [1, 1]} : vector<8x64xf32> to vector<8x32xf32>
    %177 = vector.extract_strided_slice %175 {offsets = [0, 32], sizes = [8, 32], strides = [1, 1]} : vector<8x64xf32> to vector<8x32xf32>
    %178 = vector.extract_strided_slice %169 {offsets = [0, 64], sizes = [8, 32], strides = [1, 1]} : vector<8x128xf32> to vector<8x32xf32>
    %179 = vector.extract_strided_slice %169 {offsets = [0, 96], sizes = [8, 32], strides = [1, 1]} : vector<8x128xf32> to vector<8x32xf32>
    %180 = arith.mulf %176, %179 : vector<8x32xf32>
    %181 = arith.addf %178, %180 : vector<8x32xf32>
    %182 = math.tanh %181 : vector<8x32xf32>
    %cst_38 = arith.constant 1.000000e+00 : f32
    %183 = vector.broadcast %cst_38 : f32 to vector<8x32xf32>
    %184 = arith.subf %183, %177 : vector<8x32xf32>
    %185 = arith.mulf %184, %182 : vector<8x32xf32>
    %186 = arith.mulf %177, %166 : vector<8x32xf32>
    %187 = arith.addf %185, %186 : vector<8x32xf32>
    %188 = vector.extract_strided_slice %15 {offsets = [56, 0], sizes = [8, 8], strides = [1, 1]} : vector<64x8xf32> to vector<8x8xf32>
    %189 = tpu.iota {dimensions = array<i32: 1>} : vector<8x8xi32>
    %c0_i32 = arith.constant 0 : i32
    %190 = vector.broadcast %c0_i32 : i32 to vector<8x8xi32>
    %191 = arith.cmpi eq, %189, %190 : vector<8x8xi32>
    %192 = arith.extui %191 : vector<8x8xi1> to vector<8x8xi32>
    %193 = arith.sitofp %192 : vector<8x8xi32> to vector<8x8xf32>
    %194 = tpu.concatenate %188, %187, %193 in 1 : vector<8x8xf32>, vector<8x32xf32>, vector<8x8xf32> -> vector<8x48xf32>
    %cst_39 = arith.constant dense<0.000000e+00> : vector<8x128xf32>
    %195 = tpu.matmul %194, %3, %cst_39 {dimension_numbers = #tpu.dot_dimension_numbers<[1], [0], [0], [1], [0, 0, 1, 1], [], []>} : vector<8x48xf32>, vector<48x128xf32>, vector<8x128xf32> -> vector<8x128xf32>
    %196 = vector.extract_strided_slice %195 {offsets = [0, 0], sizes = [8, 64], strides = [1, 1]} : vector<8x128xf32> to vector<8x64xf32>
    %197 = arith.negf %196 : vector<8x64xf32>
    %198 = math.exp %197 : vector<8x64xf32>
    %cst_40 = arith.constant 1.000000e+00 : f32
    %199 = vector.broadcast %cst_40 : f32 to vector<8x64xf32>
    %200 = arith.addf %199, %198 : vector<8x64xf32>
    %201 = arith.divf %199, %200 : vector<8x64xf32>
    %202 = vector.extract_strided_slice %201 {offsets = [0, 0], sizes = [8, 32], strides = [1, 1]} : vector<8x64xf32> to vector<8x32xf32>
    %203 = vector.extract_strided_slice %201 {offsets = [0, 32], sizes = [8, 32], strides = [1, 1]} : vector<8x64xf32> to vector<8x32xf32>
    %204 = vector.extract_strided_slice %195 {offsets = [0, 64], sizes = [8, 32], strides = [1, 1]} : vector<8x128xf32> to vector<8x32xf32>
    %205 = vector.extract_strided_slice %195 {offsets = [0, 96], sizes = [8, 32], strides = [1, 1]} : vector<8x128xf32> to vector<8x32xf32>
    %206 = arith.mulf %202, %205 : vector<8x32xf32>
    %207 = arith.addf %204, %206 : vector<8x32xf32>
    %208 = math.tanh %207 : vector<8x32xf32>
    %cst_41 = arith.constant 1.000000e+00 : f32
    %209 = vector.broadcast %cst_41 : f32 to vector<8x32xf32>
    %210 = arith.subf %209, %203 : vector<8x32xf32>
    %211 = arith.mulf %210, %208 : vector<8x32xf32>
    %212 = arith.mulf %203, %187 : vector<8x32xf32>
    %213 = arith.addf %211, %212 : vector<8x32xf32>
    %cst_42 = arith.constant dense<0.000000e+00> : vector<8x8xf32>
    %214 = tpu.matmul %213, %8, %cst_42 {dimension_numbers = #tpu.dot_dimension_numbers<[1], [0], [0], [1], [0, 0, 1, 1], [], []>} : vector<8x32xf32>, vector<32x8xf32>, vector<8x8xf32> -> vector<8x8xf32>
    %215 = vector.broadcast %9 : vector<1x8xf32> to vector<8x8xf32>
    %216 = arith.addf %214, %215 : vector<8x8xf32>
    %217 = math.sin %216 : vector<8x8xf32>
    %218 = tpu.concatenate %217, %213, %193 in 1 : vector<8x8xf32>, vector<8x32xf32>, vector<8x8xf32> -> vector<8x48xf32>
    %cst_43 = arith.constant dense<0.000000e+00> : vector<8x128xf32>
    %219 = tpu.matmul %218, %3, %cst_43 {dimension_numbers = #tpu.dot_dimension_numbers<[1], [0], [0], [1], [0, 0, 1, 1], [], []>} : vector<8x48xf32>, vector<48x128xf32>, vector<8x128xf32> -> vector<8x128xf32>
    %220 = vector.extract_strided_slice %219 {offsets = [0, 0], sizes = [8, 64], strides = [1, 1]} : vector<8x128xf32> to vector<8x64xf32>
    %221 = arith.negf %220 : vector<8x64xf32>
    %222 = math.exp %221 : vector<8x64xf32>
    %cst_44 = arith.constant 1.000000e+00 : f32
    %223 = vector.broadcast %cst_44 : f32 to vector<8x64xf32>
    %224 = arith.addf %223, %222 : vector<8x64xf32>
    %225 = arith.divf %223, %224 : vector<8x64xf32>
    %226 = vector.extract_strided_slice %225 {offsets = [0, 0], sizes = [8, 32], strides = [1, 1]} : vector<8x64xf32> to vector<8x32xf32>
    %227 = vector.extract_strided_slice %225 {offsets = [0, 32], sizes = [8, 32], strides = [1, 1]} : vector<8x64xf32> to vector<8x32xf32>
    %228 = vector.extract_strided_slice %219 {offsets = [0, 64], sizes = [8, 32], strides = [1, 1]} : vector<8x128xf32> to vector<8x32xf32>
    %229 = vector.extract_strided_slice %219 {offsets = [0, 96], sizes = [8, 32], strides = [1, 1]} : vector<8x128xf32> to vector<8x32xf32>
    %230 = arith.mulf %226, %229 : vector<8x32xf32>
    %231 = arith.addf %228, %230 : vector<8x32xf32>
    %232 = math.tanh %231 : vector<8x32xf32>
    %cst_45 = arith.constant 1.000000e+00 : f32
    %233 = vector.broadcast %cst_45 : f32 to vector<8x32xf32>
    %234 = arith.subf %233, %227 : vector<8x32xf32>
    %235 = arith.mulf %234, %232 : vector<8x32xf32>
    %236 = arith.mulf %227, %213 : vector<8x32xf32>
    %237 = arith.addf %235, %236 : vector<8x32xf32>
    %cst_46 = arith.constant dense<0.000000e+00> : vector<8x8xf32>
    %238 = tpu.matmul %237, %8, %cst_46 {dimension_numbers = #tpu.dot_dimension_numbers<[1], [0], [0], [1], [0, 0, 1, 1], [], []>} : vector<8x32xf32>, vector<32x8xf32>, vector<8x8xf32> -> vector<8x8xf32>
    %239 = vector.broadcast %9 : vector<1x8xf32> to vector<8x8xf32>
    %240 = arith.addf %238, %239 : vector<8x8xf32>
    %241 = math.sin %240 : vector<8x8xf32>
    %242 = tpu.concatenate %241, %237, %193 in 1 : vector<8x8xf32>, vector<8x32xf32>, vector<8x8xf32> -> vector<8x48xf32>
    %cst_47 = arith.constant dense<0.000000e+00> : vector<8x128xf32>
    %243 = tpu.matmul %242, %3, %cst_47 {dimension_numbers = #tpu.dot_dimension_numbers<[1], [0], [0], [1], [0, 0, 1, 1], [], []>} : vector<8x48xf32>, vector<48x128xf32>, vector<8x128xf32> -> vector<8x128xf32>
    %244 = vector.extract_strided_slice %243 {offsets = [0, 0], sizes = [8, 64], strides = [1, 1]} : vector<8x128xf32> to vector<8x64xf32>
    %245 = arith.negf %244 : vector<8x64xf32>
    %246 = math.exp %245 : vector<8x64xf32>
    %cst_48 = arith.constant 1.000000e+00 : f32
    %247 = vector.broadcast %cst_48 : f32 to vector<8x64xf32>
    %248 = arith.addf %247, %246 : vector<8x64xf32>
    %249 = arith.divf %247, %248 : vector<8x64xf32>
    %250 = vector.extract_strided_slice %249 {offsets = [0, 0], sizes = [8, 32], strides = [1, 1]} : vector<8x64xf32> to vector<8x32xf32>
    %251 = vector.extract_strided_slice %249 {offsets = [0, 32], sizes = [8, 32], strides = [1, 1]} : vector<8x64xf32> to vector<8x32xf32>
    %252 = vector.extract_strided_slice %243 {offsets = [0, 64], sizes = [8, 32], strides = [1, 1]} : vector<8x128xf32> to vector<8x32xf32>
    %253 = vector.extract_strided_slice %243 {offsets = [0, 96], sizes = [8, 32], strides = [1, 1]} : vector<8x128xf32> to vector<8x32xf32>
    %254 = arith.mulf %250, %253 : vector<8x32xf32>
    %255 = arith.addf %252, %254 : vector<8x32xf32>
    %256 = math.tanh %255 : vector<8x32xf32>
    %cst_49 = arith.constant 1.000000e+00 : f32
    %257 = vector.broadcast %cst_49 : f32 to vector<8x32xf32>
    %258 = arith.subf %257, %251 : vector<8x32xf32>
    %259 = arith.mulf %258, %256 : vector<8x32xf32>
    %260 = arith.mulf %251, %237 : vector<8x32xf32>
    %261 = arith.addf %259, %260 : vector<8x32xf32>
    %cst_50 = arith.constant dense<0.000000e+00> : vector<8x8xf32>
    %262 = tpu.matmul %261, %8, %cst_50 {dimension_numbers = #tpu.dot_dimension_numbers<[1], [0], [0], [1], [0, 0, 1, 1], [], []>} : vector<8x32xf32>, vector<32x8xf32>, vector<8x8xf32> -> vector<8x8xf32>
    %263 = vector.broadcast %9 : vector<1x8xf32> to vector<8x8xf32>
    %264 = arith.addf %262, %263 : vector<8x8xf32>
    %265 = math.sin %264 : vector<8x8xf32>
    %266 = tpu.concatenate %265, %261, %193 in 1 : vector<8x8xf32>, vector<8x32xf32>, vector<8x8xf32> -> vector<8x48xf32>
    %cst_51 = arith.constant dense<0.000000e+00> : vector<8x128xf32>
    %267 = tpu.matmul %266, %3, %cst_51 {dimension_numbers = #tpu.dot_dimension_numbers<[1], [0], [0], [1], [0, 0, 1, 1], [], []>} : vector<8x48xf32>, vector<48x128xf32>, vector<8x128xf32> -> vector<8x128xf32>
    %268 = vector.extract_strided_slice %267 {offsets = [0, 0], sizes = [8, 64], strides = [1, 1]} : vector<8x128xf32> to vector<8x64xf32>
    %269 = arith.negf %268 : vector<8x64xf32>
    %270 = math.exp %269 : vector<8x64xf32>
    %cst_52 = arith.constant 1.000000e+00 : f32
    %271 = vector.broadcast %cst_52 : f32 to vector<8x64xf32>
    %272 = arith.addf %271, %270 : vector<8x64xf32>
    %273 = arith.divf %271, %272 : vector<8x64xf32>
    %274 = vector.extract_strided_slice %273 {offsets = [0, 0], sizes = [8, 32], strides = [1, 1]} : vector<8x64xf32> to vector<8x32xf32>
    %275 = vector.extract_strided_slice %273 {offsets = [0, 32], sizes = [8, 32], strides = [1, 1]} : vector<8x64xf32> to vector<8x32xf32>
    %276 = vector.extract_strided_slice %267 {offsets = [0, 64], sizes = [8, 32], strides = [1, 1]} : vector<8x128xf32> to vector<8x32xf32>
    %277 = vector.extract_strided_slice %267 {offsets = [0, 96], sizes = [8, 32], strides = [1, 1]} : vector<8x128xf32> to vector<8x32xf32>
    %278 = arith.mulf %274, %277 : vector<8x32xf32>
    %279 = arith.addf %276, %278 : vector<8x32xf32>
    %280 = math.tanh %279 : vector<8x32xf32>
    %cst_53 = arith.constant 1.000000e+00 : f32
    %281 = vector.broadcast %cst_53 : f32 to vector<8x32xf32>
    %282 = arith.subf %281, %275 : vector<8x32xf32>
    %283 = arith.mulf %282, %280 : vector<8x32xf32>
    %284 = arith.mulf %275, %261 : vector<8x32xf32>
    %285 = arith.addf %283, %284 : vector<8x32xf32>
    %286 = tpu.concatenate %213, %237, %261, %285 in 0 : vector<8x32xf32>, vector<8x32xf32>, vector<8x32xf32>, vector<8x32xf32> -> vector<32x32xf32>
    %cst_54 = arith.constant dense<0.000000e+00> : vector<32x2xf32>
    %287 = tpu.matmul %286, %4, %cst_54 {dimension_numbers = #tpu.dot_dimension_numbers<[1], [0], [0], [1], [0, 0, 1, 1], [], []>} : vector<32x32xf32>, vector<32x2xf32>, vector<32x2xf32> -> vector<32x2xf32>
    %288 = vector.broadcast %5 : vector<1x2xf32> to vector<32x2xf32>
    %289 = arith.addf %287, %288 : vector<32x2xf32>
    %290 = vector.shape_cast %289 : vector<32x2xf32> to vector<4x8x2xf32>
    %c0_55 = arith.constant 0 : index
    %c0_56 = arith.constant 0 : index
    %c0_57 = arith.constant 0 : index
    %291 = vector.load %arg3[%c0_55, %c0_56, %c0_57] : memref<4x8x2xf32, #tpu.memory_space<vmem>>, vector<4x8x2xf32>
    tpu.vector_store %arg3[%c0_55, %c0_56, %c0_57], %290 {strides = array<i32>} : memref<4x8x2xf32, #tpu.memory_space<vmem>>, vector<4x8x2xf32>,
    return
  }
  func.func @transform_0(%arg0: i32) -> (i32, i32, i32) {
    %c0_i32 = arith.constant 0 : i32
    %c0_i32_0 = arith.constant 0 : i32
    %c0_i32_1 = arith.constant 0 : i32
    return %c0_i32, %arg0, %c0_i32_0 : i32, i32, i32
  }
  func.func @transform_1(%arg0: i32) -> (i32, i32) {
    %c0_i32 = arith.constant 0 : i32
    %c0_i32_0 = arith.constant 0 : i32
    %c0_i32_1 = arith.constant 0 : i32
    return %c0_i32, %c0_i32_0 : i32, i32
  }
  func.func @transform_2(%arg0: i32) -> (i32, i32, i32) {
    %c0_i32 = arith.constant 0 : i32
    %c0_i32_0 = arith.constant 0 : i32
    %c0_i32_1 = arith.constant 0 : i32
    return %c0_i32, %arg0, %c0_i32_0 : i32, i32, i32
  }
}

</mosaic_0001>

<llo_original>
// kernel: seq2seq_forward.1
$region0: #{seq2seq_forward.1}
  #allocation0 [shape = 'u32[]', space=smem, size = 0x4, offset = 0x4, fixed_abs, tag = 'smem constant byte address 0x4 - core index']
  #allocation1 [shape = 'u32[144,128]{1,0:T(1,128)}', space=vmem, size = 0x12000, scoped, tag = 'internal scratch']
  %s0 = inlined_call_operand.vmem [shape: f32[8,8,2], index: 0, kind: input, shape index: {}]
  %s1 = inlined_call_operand.hbm [shape: f32[192,128], index: 1, kind: input, shape index: {}]
  %s2 = inlined_call_operand.vmem [shape: f32[4,8,2], index: 2, kind: output, shape index: {}]
  %s3 = sld [smem:[#allocation0]]
  $region22: #{seq2seq_forward.1} parent=0
    _
  %s5 = ssub.s32 1, %s3
  %s6 = scalar_select 0, %s5, %s3
  $region1: #{seq2seq_forward.1} parent=0
    #allocation2 [shape = 'u8[98304]{0}', space=vmem, size = 0x18000, scoped, tag = 'input window, operand 1, single buffered']
    #allocation3 [shape = 's32[1]{0}', space=sflag, size = 0x4, scoped, tag = 'scoped memory for seq2seq_forward.1']
    %7 = vsyncpa [#allocation3], 0
    // Predicated region
    $region2: #{seq2seq_forward.1} parent=1 // pred_check
      _
    $region3: #{seq2seq_forward.1} parent=1 // pred_check_branch
      %9 = sbr.rel (0) target = $region5
    $region4: #{seq2seq_forward.1} parent=1 // pred_region
      _
    $region5: #{seq2seq_forward.1} parent=1 // pred_fallthru
      _
    // Predicated region
    $region6: #{seq2seq_forward.1} parent=1 // pred_check
      _
    $region7: #{seq2seq_forward.1} parent=1 // pred_check_branch
      %11 = sbr.rel (0) target = $region9
    $region8: #{seq2seq_forward.1} parent=1 // pred_region
      %s13 = ssub.s32 3072, 3072
      %14 = vsyncadd [#allocation3], %s13
      %s15 = sshll.u32 [#allocation2], 4
      %s16 = int_to_ptr.vmem [resolvable:$true] %s15
      %21 = dma.hbm_to_vmem [thread:$0]  %s1, 3072, %s16, [#allocation3], 128, 128, 8
    $region9: #{seq2seq_forward.1} parent=1 // pred_fallthru
      _
    // Predicated region
    $region10: #{seq2seq_forward.1} parent=1 // pred_check
      _
    $region11: #{seq2seq_forward.1} parent=1 // pred_check_branch
      %23 = sbr.rel (0) target = $region13
    $region12: #{seq2seq_forward.1} parent=1 // pred_region
      %24 = dma.done [#allocation3], 3072
    $region13: #{seq2seq_forward.1} parent=1 // pred_fallthru
      _
    %v25 = vld [vmem:[#allocation2] sm:$0xff]
    %v26 = vld [vmem:[#allocation2 + $0x8] sm:$0xff]
    %v27 = vld [vmem:[#allocation2 + $0x10] sm:$0xff]
    %v28 = vld [vmem:[#allocation2 + $0x18] sm:$0xff]
    %v29 = vld [vmem:[#allocation2 + $0x20] sm:$0xff]
    %v30 = vld [vmem:[#allocation2 + $0x28] sm:$0x1]
    %v31 = vld [vmem:[#allocation2 + $0x30] sm:$0xff]
    %v32 = vld [vmem:[#allocation2 + $0x38] sm:$0xff]
    %v33 = vld [vmem:[#allocation2 + $0x40] sm:$0xff]
    %v34 = vld [vmem:[#allocation2 + $0x48] sm:$0xff]
    %v35 = vld [vmem:[#allocation2 + $0x50] sm:$0xff]
    %v36 = vld [vmem:[#allocation2 + $0x58] sm:$0xff]
    %v37 = vld [vmem:[#allocation2 + $0x60] sm:$0xff]
    %v38 = vld [vmem:[#allocation2 + $0x68] sm:$0xff]
    %v39 = vld [vmem:[#allocation2 + $0x70] sm:$0xff]
    %v40 = vld [vmem:[#allocation2 + $0x78] sm:$0xff]
    %v41 = vld [vmem:[#allocation2 + $0x80] sm:$0x1]
    %v42 = vld [vmem:[#allocation2 + $0x88] sm:$0x3]
    %v43 = vld [vmem:[#allocation2 + $0x90] sm:$0x1]
    %v44 = vld [vmem:[#allocation2 + $0x98] sm:$0xff]
    %v45 = vld [vmem:[#allocation2 + $0xa0] sm:$0xff]
    %v46 = vld [vmem:[#allocation2 + $0xa8] sm:$0xff]
    %v47 = vld [vmem:[#allocation2 + $0xb0] sm:$0xff]
    %v48 = vld [vmem:[#allocation2 + $0xb8] sm:$0x1]
    %v49 = vld [vmem:[%s0] sm:$0xff]
    %v50 = vld [vmem:[%s0 + $0x8] sm:$0xff]
    %v51 = vld [vmem:[%s0 + $0x10] sm:$0xff]
    %v52 = vld [vmem:[%s0 + $0x18] sm:$0xff]
    %v53 = vld [vmem:[%s0 + $0x20] sm:$0xff]
    %v54 = vld [vmem:[%s0 + $0x28] sm:$0xff]
    %v55 = vld [vmem:[%s0 + $0x30] sm:$0xff]
    %v56 = vld [vmem:[%s0 + $0x38] sm:$0xff]
    %v57 = vlaneseq
    %v58 = vshrl.u32 %v57, 7
    %v59 = vsub.s32 0, %v58
    %v60 = vrot.slane %v43, %v59
    %vm61 = vcmask 15360
    %v63 = vsel %vm61, %v49, 0
    %v66 = vsel %vm61, %v50, 0
    %v69 = vsel %vm61, %v51, 0
    %v72 = vsel %vm61, %v52, 0
    %v75 = vsel %vm61, %v53, 0
    %v78 = vsel %vm61, %v54, 0
    %v81 = vsel %vm61, %v55, 0
    %v84 = vsel %vm61, %v56, 0
    %vm86 = vcmask 1041408
    %v88 = vsel %vm86, %v42, 0
    %90 = vmatprep.subr.mxu0 0.0
    %91 = vmatpush1.msra.mxu0 0.0
    %92 = vmatprep.subr.mxu0 0.0
    %93 = vmatpush1.msra.mxu0 0.0
    %94 = vmatprep.subr.mxu0 0.0
    %95 = vmatpush1.msra.mxu0 0.0
    %96 = vmatprep.subr.mxu0 0.0
    %97 = vmatpush1.msra.mxu0 0.0
    %98 = vmatprep.subr.mxu0 0.0
    %99 = vmatpush1.msra.mxu0 0.0
    %100 = vmatprep.subr.mxu0 0.0
    %101 = vmatpush1.msra.mxu0 0.0
    %102 = vmatprep.subr.mxu0 0.0
    %103 = vmatpush1.msra.mxu0 0.0
    %104 = vmatprep.subr.mxu0 0.0
    %105 = vmatpush1.msra.mxu0 0.0
    %106 = vmatprep.subr.mxu0 0.0
    %107 = vmatpush1.msra.mxu0 0.0
    %108 = vmatprep.subr.mxu0 0.0
    %109 = vmatpush1.msra.mxu0 0.0
    %110 = vmatprep.subr.mxu0 0.0
    %111 = vmatpush1.msra.mxu0 0.0
    %112 = vmatprep.subr.mxu0 0.0
    %113 = vmatpush1.msra.mxu0 0.0
    %114 = vmatprep.subr.mxu0 0.0
    %115 = vmatpush1.msra.mxu0 0.0
    %116 = vmatprep.subr.mxu0 0.0
    %117 = vmatpush1.msra.mxu0 0.0
    %118 = vmatprep.subr.mxu0 0.0
    %119 = vmatpush1.msra.mxu0 0.0
    %120 = vmatprep.subr.mxu0 0.0
    %121 = vmatpush1.msra.mxu0 %v88
    %122 = vmatprep.subr.mxu0 0.0
    %123 = vmatpush2.msra.mxu0 0.0
    %124 = vmatprep.subr.mxu0 0.0
    %125 = vmatpush2.msra.mxu0 0.0
    %126 = vmatprep.subr.mxu0 0.0
    %127 = vmatpush2.msra.mxu0 0.0
    %128 = vmatprep.subr.mxu0 0.0
    %129 = vmatpush2.msra.mxu0 0.0
    %130 = vmatprep.subr.mxu0 0.0
    %131 = vmatpush2.msra.mxu0 0.0
    %132 = vmatprep.subr.mxu0 0.0
    %133 = vmatpush2.msra.mxu0 0.0
    %134 = vmatprep.subr.mxu0 0.0
    %135 = vmatpush2.msra.mxu0 0.0
    %136 = vmatprep.subr.mxu0 0.0
    %137 = vmatpush2.msra.mxu0 0.0
    %138 = vmatprep.subr.mxu0 0.0
    %139 = vmatpush2.msra.mxu0 0.0
    %140 = vmatprep.subr.mxu0 0.0
    %141 = vmatpush2.msra.mxu0 0.0
    %142 = vmatprep.subr.mxu0 0.0
    %143 = vmatpush2.msra.mxu0 0.0
    %144 = vmatprep.subr.mxu0 0.0
    %145 = vmatpush2.msra.mxu0 0.0
    %146 = vmatprep.subr.mxu0 0.0
    %147 = vmatpush2.msra.mxu0 0.0
    %148 = vmatprep.subr.mxu0 0.0
    %149 = vmatpush2.msra.mxu0 0.0
    %150 = vmatprep.subr.mxu0 0.0
    %151 = vmatpush2.msra.mxu0 0.0
    %152 = vmatprep.subr.mxu0 0.0
    %153 = vmatpush2.msra.mxu0 0.0
    %154 = vmatprep.mubr.f32.mxu0 0.0
    %155 = vmatmul.mubr.f32.gmra.mxu0 %v63
    %v156 = vpop.f32.mrf.mxu0
    %v157 = vadd.f32 %v60, %v156
    %v158 = vpop.f32.mrf.mxu0
    %159 = vmatprep.mubr.f32.mxu0 0.0
    %160 = vmatmul.mubr.f32.gmra.mxu0 %v66
    %v161 = vpop.f32.mrf.mxu0
    %v162 = vadd.f32 %v60, %v161
    %v163 = vpop.f32.mrf.mxu0
    %164 = vmatprep.mubr.f32.mxu0 0.0
    %165 = vmatmul.mubr.f32.gmra.mxu0 %v69
    %v166 = vpop.f32.mrf.mxu0
    %v167 = vadd.f32 %v60, %v166
    %v168 = vpop.f32.mrf.mxu0
    %169 = vmatprep.mubr.f32.mxu0 0.0
    %170 = vmatmul.mubr.f32.gmra.mxu0 %v72
    %v171 = vpop.f32.mrf.mxu0
    %v172 = vadd.f32 %v60, %v171
    %v173 = vpop.f32.mrf.mxu0
    %174 = vmatprep.mubr.f32.mxu0 0.0
    %175 = vmatmul.mubr.f32.gmra.mxu0 %v75
    %v176 = vpop.f32.mrf.mxu0
    %v177 = vadd.f32 %v60, %v176
    %v178 = vpop.f32.mrf.mxu0
    %179 = vmatprep.mubr.f32.mxu0 0.0
    %180 = vmatmul.mubr.f32.gmra.mxu0 %v78
    %v181 = vpop.f32.mrf.mxu0
    %v182 = vadd.f32 %v60, %v181
    %v183 = vpop.f32.mrf.mxu0
    %184 = vmatprep.mubr.f32.mxu0 0.0
    %185 = vmatmul.mubr.f32.gmra.mxu0 %v81
    %v186 = vpop.f32.mrf.mxu0
    %v187 = vadd.f32 %v60, %v186
    %v188 = vpop.f32.mrf.mxu0
    %189 = vmatprep.mubr.f32.mxu0 0.0
    %190 = vmatmul.mubr.f32.gmra.mxu0 %v84
    %v191 = vpop.f32.mrf.mxu0
    %v192 = vadd.f32 %v60, %v191
    %v193 = vpop.f32.mrf.mxu0
    %194 = vdwg.mxu0
    %v195 = vand.u32 2147483647, %v157
    %vm196 = vcmp.le.f32.partialorder %v195, 0.7853982
    %vm197 = vcmp.lt.s32.totalorder %v157, 0
    %v198 = vand.u32 %v157, 2139095040
    %v199 = vshrl.u32 %v198, 23
    %v200 = vsub.s32 %v199, 127
    %v201 = vand.u32 2147483647, %v157
    %v202 = vand.u32 %v201, 8388607
    %v203 = vor.u32 %v202, 8388608
    %v204 = vsub.s32 0, %v203
    %v205 = vadd.s32 %v200, 1
    %vm206 = vcmp.gt.s32.totalorder %v205, 0
    %v207 = vsel %vm206, %v205, 0
    %v208 = vshrl.u32 %v207, 5
    %v209 = vand.u32 %v207, 31
    %v210 = vsub.s32 32, %v209
    %v211 = vshrl.u32 683565275, %v210
    %v212 = vshll.u32 683565275, %v209
    %v213 = vshrl.u32 2475754826, %v210
    %v214 = vor.u32 %v212, %v213
    %v215 = vshll.u32 2475754826, %v209
    %v216 = vshrl.u32 2131351028, %v210
    %v217 = vor.u32 %v215, %v216
    %v218 = vshll.u32 2131351028, %v209
    %v219 = vshrl.u32 2102212464, %v210
    %v220 = vor.u32 %v218, %v219
    %v221 = vshll.u32 2102212464, %v209
    %v222 = vshrl.u32 920167782, %v210
    %v223 = vor.u32 %v221, %v222
    %v224 = vshll.u32 920167782, %v209
    %v225 = vshrl.u32 1326507024, %v210
    %v226 = vor.u32 %v224, %v225
    %vm227 = vcmp.lt.s32.totalorder %v208, 1
    %vm228 = vcmp.lt.s32.totalorder %v208, 2
    %vm229 = vcmp.lt.s32.totalorder %v208, 3
    %vm230 = vcmp.lt.s32.totalorder %v208, 4
    %v231 = vsel %vm227, %v211, %v214
    %v232 = vsel %vm230, %v220, 2102212464
    %v233 = vsel %vm229, %v217, %v232
    %v234 = vsel %vm228, %v231, %v233
    %v235 = vsel %vm227, %v214, %v217
    %v236 = vsel %vm230, %v223, 920167782
    %v237 = vsel %vm229, %v220, %v236
    %v238 = vsel %vm228, %v235, %v237
    %v239 = vsel %vm227, %v217, %v220
    %v240 = vsel %vm230, %v226, 1326507024
    %v241 = vsel %vm229, %v223, %v240
    %v242 = vsel %vm228, %v239, %v241
    %v243 = vshll.u32 %v203, 8
    %v244 = vmul.u32.u64.compose %v243, %v242
    %v245 = vextract.low.u32 %v244
    %v246 = vextract.high.u32 %v244
    %v247 = vmul.u32.u64.compose %v243, %v238
    %v248 = vextract.low.u32 %v247
    %v249 = vextract.high.u32 %v247
    %v250 = vmul.u32 %v243, %v234
    %v251 = vadd.s32 %v246, %v248
    %vm252 = vc.u32 %v246, %v248
    %v253 = vadd.s32 %v249, 1
    %v254 = vsel %vm252, %v253, %v249
    %v255 = vadd.s32 %v250, %v254
    %v256 = vadd.s32 %v255, 536870912
    %v257 = vshrl.u32 %v256, 30
    %v258 = vshll.u32 %v257, 30
    %v259 = vsub.s32 %v255, %v258
    %vm260 = vcmp.lt.s32.totalorder %v259, 0
    %v261 = vsub.s32 0, %v259
    %v262 = vsel %vm260, %v261, %v259
    %v263 = vclz %v262
    %v264 = vsub.s32 %v263, 2
    %vm265 = vcmp.gt.s32.totalorder 0, %v264
    %v266 = vsel %vm265, 0, %v264
    %v267 = vsub.s32 32, %v266
    %v268 = vshll.u32 %v259, %v266
    %v269 = vshrl.u32 %v251, %v267
    %v270 = vor.u32 %v268, %v269
    %v271 = vsub.s32 4294967266, %v266
    %v272 = vadd.s32 %v271, 127
    %v273 = vshll.u32 %v272, 23
    %v274 = vor.u32 4788187, %v273
    %v275 = vand.u32 2147483647, %v274
    %v277 = vcvt.s32.f32 %v270
    %v278 = vmul.f32 %v277, %v275
    %v279 = vxor.u32 %v278, 2147483648
    %v280 = vsel %vm197, %v279, %v278
    %v281 = vsub.s32 4, %v257
    %v282 = vsel %vm197, %v281, %v257
    %v283 = vsel %vm196, %v157, %v280
    %v284 = vsel %vm196, 0, %v282
    %v285 = vcosq.f32.pop %v283
    %v286 = vsinq.f32.pop %v283
    %vm287 = vweird.f32 %v157
    %v288 = vadd.s32 %v284, 3
    %v289 = vand.u32 %v288, 3
    %vm290 = vcmp.lt.s32.totalorder %v289, 2
    %vm291 = vcmp.eq.s32.totalorder %v289, 0
    %v292 = vxor.u32 %v286, 2147483648
    %v293 = vsel %vm291, %v285, %v292
    %vm294 = vcmp.eq.s32.totalorder %v289, 2
    %v295 = vxor.u32 %v285, 2147483648
    %v296 = vsel %vm294, %v295, %v286
    %v297 = vsel %vm290, %v293, %v296
    %v298 = vsel %vm287, nan, %v297
    %v299 = vand.u32 2147483647, %v162
    %vm300 = vcmp.le.f32.partialorder %v299, 0.7853982
    %vm301 = vcmp.lt.s32.totalorder %v162, 0
    %v302 = vand.u32 %v162, 2139095040
    %v303 = vshrl.u32 %v302, 23
    %v304 = vsub.s32 %v303, 127
    %v305 = vand.u32 2147483647, %v162
    %v306 = vand.u32 %v305, 8388607
    %v307 = vor.u32 %v306, 8388608
    %v308 = vsub.s32 0, %v307
    %v309 = vadd.s32 %v304, 1
    %vm310 = vcmp.gt.s32.totalorder %v309, 0
    %v311 = vsel %vm310, %v309, 0
    %v312 = vshrl.u32 %v311, 5
    %v313 = vand.u32 %v311, 31
    %v314 = vsub.s32 32, %v313
    %v315 = vshrl.u32 683565275, %v314
    %v316 = vshll.u32 683565275, %v313
    %v317 = vshrl.u32 2475754826, %v314
    %v318 = vor.u32 %v316, %v317
    %v319 = vshll.u32 2475754826, %v313
    %v320 = vshrl.u32 2131351028, %v314
    %v321 = vor.u32 %v319, %v320
    %v322 = vshll.u32 2131351028, %v313
    %v323 = vshrl.u32 2102212464, %v314
    %v324 = vor.u32 %v322, %v323
    %v325 = vshll.u32 2102212464, %v313
    %v326 = vshrl.u32 920167782, %v314
    %v327 = vor.u32 %v325, %v326
    %v328 = vshll.u32 920167782, %v313
    %v329 = vshrl.u32 1326507024, %v314
    %v330 = vor.u32 %v328, %v329
    %vm331 = vcmp.lt.s32.totalorder %v312, 1
    %vm332 = vcmp.lt.s32.totalorder %v312, 2
    %vm333 = vcmp.lt.s32.totalorder %v312, 3
    %vm334 = vcmp.lt.s32.totalorder %v312, 4
    %v335 = vsel %vm331, %v315, %v318
    %v336 = vsel %vm334, %v324, 2102212464
    %v337 = vsel %vm333, %v321, %v336
    %v338 = vsel %vm332, %v335, %v337
    %v339 = vsel %vm331, %v318, %v321
    %v340 = vsel %vm334, %v327, 920167782
    %v341 = vsel %vm333, %v324, %v340
    %v342 = vsel %vm332, %v339, %v341
    %v343 = vsel %vm331, %v321, %v324
    %v344 = vsel %vm334, %v330, 1326507024
    %v345 = vsel %vm333, %v327, %v344
    %v346 = vsel %vm332, %v343, %v345
    %v347 = vshll.u32 %v307, 8
    %v348 = vmul.u32.u64.compose %v347, %v346
    %v349 = vextract.low.u32 %v348
    %v350 = vextract.high.u32 %v348
    %v351 = vmul.u32.u64.compose %v347, %v342
    %v352 = vextract.low.u32 %v351
    %v353 = vextract.high.u32 %v351
    %v354 = vmul.u32 %v347, %v338
    %v355 = vadd.s32 %v350, %v352
    %vm356 = vc.u32 %v350, %v352
    %v357 = vadd.s32 %v353, 1
    %v358 = vsel %vm356, %v357, %v353
    %v359 = vadd.s32 %v354, %v358
    %v360 = vadd.s32 %v359, 536870912
    %v361 = vshrl.u32 %v360, 30
    %v362 = vshll.u32 %v361, 30
    %v363 = vsub.s32 %v359, %v362
    %vm364 = vcmp.lt.s32.totalorder %v363, 0
    %v365 = vsub.s32 0, %v363
    %v366 = vsel %vm364, %v365, %v363
    %v367 = vclz %v366
    %v368 = vsub.s32 %v367, 2
    %vm369 = vcmp.gt.s32.totalorder 0, %v368
    %v370 = vsel %vm369, 0, %v368
    %v371 = vsub.s32 32, %v370
    %v372 = vshll.u32 %v363, %v370
    %v373 = vshrl.u32 %v355, %v371
    %v374 = vor.u32 %v372, %v373
    %v375 = vsub.s32 4294967266, %v370
    %v376 = vadd.s32 %v375, 127
    %v377 = vshll.u32 %v376, 23
    %v378 = vor.u32 4788187, %v377
    %v379 = vand.u32 2147483647, %v378
    %v381 = vcvt.s32.f32 %v374
    %v382 = vmul.f32 %v381, %v379
    %v383 = vxor.u32 %v382, 2147483648
    %v384 = vsel %vm301, %v383, %v382
    %v385 = vsub.s32 4, %v361
    %v386 = vsel %vm301, %v385, %v361
    %v387 = vsel %vm300, %v162, %v384
    %v388 = vsel %vm300, 0, %v386
    %v389 = vcosq.f32.pop %v387
    %v390 = vsinq.f32.pop %v387
    %vm391 = vweird.f32 %v162
    %v392 = vadd.s32 %v388, 3
    %v393 = vand.u32 %v392, 3
    %vm394 = vcmp.lt.s32.totalorder %v393, 2
    %vm395 = vcmp.eq.s32.totalorder %v393, 0
    %v396 = vxor.u32 %v390, 2147483648
    %v397 = vsel %vm395, %v389, %v396
    %vm398 = vcmp.eq.s32.totalorder %v393, 2
    %v399 = vxor.u32 %v389, 2147483648
    %v400 = vsel %vm398, %v399, %v390
    %v401 = vsel %vm394, %v397, %v400
    %v402 = vsel %vm391, nan, %v401
    %v403 = vand.u32 2147483647, %v167
    %vm404 = vcmp.le.f32.partialorder %v403, 0.7853982
    %vm405 = vcmp.lt.s32.totalorder %v167, 0
    %v406 = vand.u32 %v167, 2139095040
    %v407 = vshrl.u32 %v406, 23
    %v408 = vsub.s32 %v407, 127
    %v409 = vand.u32 2147483647, %v167
    %v410 = vand.u32 %v409, 8388607
    %v411 = vor.u32 %v410, 8388608
    %v412 = vsub.s32 0, %v411
    %v413 = vadd.s32 %v408, 1
    %vm414 = vcmp.gt.s32.totalorder %v413, 0
    %v415 = vsel %vm414, %v413, 0
    %v416 = vshrl.u32 %v415, 5
    %v417 = vand.u32 %v415, 31
    %v418 = vsub.s32 32, %v417
    %v419 = vshrl.u32 683565275, %v418
    %v420 = vshll.u32 683565275, %v417
    %v421 = vshrl.u32 2475754826, %v418
    %v422 = vor.u32 %v420, %v421
    %v423 = vshll.u32 2475754826, %v417
    %v424 = vshrl.u32 2131351028, %v418
    %v425 = vor.u32 %v423, %v424
    %v426 = vshll.u32 2131351028, %v417
    %v427 = vshrl.u32 2102212464, %v418
    %v428 = vor.u32 %v426, %v427
    %v429 = vshll.u32 2102212464, %v417
    %v430 = vshrl.u32 920167782, %v418
    %v431 = vor.u32 %v429, %v430
    %v432 = vshll.u32 920167782, %v417
    %v433 = vshrl.u32 1326507024, %v418
    %v434 = vor.u32 %v432, %v433
    %vm435 = vcmp.lt.s32.totalorder %v416, 1
    %vm436 = vcmp.lt.s32.totalorder %v416, 2
    %vm437 = vcmp.lt.s32.totalorder %v416, 3
    %vm438 = vcmp.lt.s32.totalorder %v416, 4
    %v439 = vsel %vm435, %v419, %v422
    %v440 = vsel %vm438, %v428, 2102212464
    %v441 = vsel %vm437, %v425, %v440
    %v442 = vsel %vm436, %v439, %v441
    %v443 = vsel %vm435, %v422, %v425
    %v444 = vsel %vm438, %v431, 920167782
    %v445 = vsel %vm437, %v428, %v444
    %v446 = vsel %vm436, %v443, %v445
    %v447 = vsel %vm435, %v425, %v428
    %v448 = vsel %vm438, %v434, 1326507024
    %v449 = vsel %vm437, %v431, %v448
    %v450 = vsel %vm436, %v447, %v449
    %v451 = vshll.u32 %v411, 8
    %v452 = vmul.u32.u64.compose %v451, %v450
    %v453 = vextract.low.u32 %v452
    %v454 = vextract.high.u32 %v452
    %v455 = vmul.u32.u64.compose %v451, %v446
    %v456 = vextract.low.u32 %v455
    %v457 = vextract.high.u32 %v455
    %v458 = vmul.u32 %v451, %v442
    %v459 = vadd.s32 %v454, %v456
    %vm460 = vc.u32 %v454, %v456
    %v461 = vadd.s32 %v457, 1
    %v462 = vsel %vm460, %v461, %v457
    %v463 = vadd.s32 %v458, %v462
    %v464 = vadd.s32 %v463, 536870912
    %v465 = vshrl.u32 %v464, 30
    %v466 = vshll.u32 %v465, 30
    %v467 = vsub.s32 %v463, %v466
    %vm468 = vcmp.lt.s32.totalorder %v467, 0
    %v469 = vsub.s32 0, %v467
    %v470 = vsel %vm468, %v469, %v467
    %v471 = vclz %v470
    %v472 = vsub.s32 %v471, 2
    %vm473 = vcmp.gt.s32.totalorder 0, %v472
    %v474 = vsel %vm473, 0, %v472
    %v475 = vsub.s32 32, %v474
    %v476 = vshll.u32 %v467, %v474
    %v477 = vshrl.u32 %v459, %v475
    %v478 = vor.u32 %v476, %v477
    %v479 = vsub.s32 4294967266, %v474
    %v480 = vadd.s32 %v479, 127
    %v481 = vshll.u32 %v480, 23
    %v482 = vor.u32 4788187, %v481
    %v483 = vand.u32 2147483647, %v482
    %v485 = vcvt.s32.f32 %v478
    %v486 = vmul.f32 %v485, %v483
    %v487 = vxor.u32 %v486, 2147483648
    %v488 = vsel %vm405, %v487, %v486
    %v489 = vsub.s32 4, %v465
    %v490 = vsel %vm405, %v489, %v465
    %v491 = vsel %vm404, %v167, %v488
    %v492 = vsel %vm404, 0, %v490
    %v493 = vcosq.f32.pop %v491
    %v494 = vsinq.f32.pop %v491
    %vm495 = vweird.f32 %v167
    %v496 = vadd.s32 %v492, 3
    %v497 = vand.u32 %v496, 3
    %vm498 = vcmp.lt.s32.totalorder %v497, 2
    %vm499 = vcmp.eq.s32.totalorder %v497, 0
    %v500 = vxor.u32 %v494, 2147483648
    %v501 = vsel %vm499, %v493, %v500
    %vm502 = vcmp.eq.s32.totalorder %v497, 2
    %v503 = vxor.u32 %v493, 2147483648
    %v504 = vsel %vm502, %v503, %v494
    %v505 = vsel %vm498, %v501, %v504
    %v506 = vsel %vm495, nan, %v505
    %v507 = vand.u32 2147483647, %v172
    %vm508 = vcmp.le.f32.partialorder %v507, 0.7853982
    %vm509 = vcmp.lt.s32.totalorder %v172, 0
    %v510 = vand.u32 %v172, 2139095040
    %v511 = vshrl.u32 %v510, 23
    %v512 = vsub.s32 %v511, 127
    %v513 = vand.u32 2147483647, %v172
    %v514 = vand.u32 %v513, 8388607
    %v515 = vor.u32 %v514, 8388608
    %v516 = vsub.s32 0, %v515
    %v517 = vadd.s32 %v512, 1
    %vm518 = vcmp.gt.s32.totalorder %v517, 0
    %v519 = vsel %vm518, %v517, 0
    %v520 = vshrl.u32 %v519, 5
    %v521 = vand.u32 %v519, 31
    %v522 = vsub.s32 32, %v521
    %v523 = vshrl.u32 683565275, %v522
    %v524 = vshll.u32 683565275, %v521
    %v525 = vshrl.u32 2475754826, %v522
    %v526 = vor.u32 %v524, %v525
    %v527 = vshll.u32 2475754826, %v521
    %v528 = vshrl.u32 2131351028, %v522
    %v529 = vor.u32 %v527, %v528
    %v530 = vshll.u32 2131351028, %v521
    %v531 = vshrl.u32 2102212464, %v522
    %v532 = vor.u32 %v530, %v531
    %v533 = vshll.u32 2102212464, %v521
    %v534 = vshrl.u32 920167782, %v522
    %v535 = vor.u32 %v533, %v534
    %v536 = vshll.u32 920167782, %v521
    %v537 = vshrl.u32 1326507024, %v522
    %v538 = vor.u32 %v536, %v537
    %vm539 = vcmp.lt.s32.totalorder %v520, 1
    %vm540 = vcmp.lt.s32.totalorder %v520, 2
    %vm541 = vcmp.lt.s32.totalorder %v520, 3
    %vm542 = vcmp.lt.s32.totalorder %v520, 4
    %v543 = vsel %vm539, %v523, %v526
    %v544 = vsel %vm542, %v532, 2102212464
    %v545 = vsel %vm541, %v529, %v544
    %v546 = vsel %vm540, %v543, %v545
    %v547 = vsel %vm539, %v526, %v529
    %v548 = vsel %vm542, %v535, 920167782
    %v549 = vsel %vm541, %v532, %v548
    %v550 = vsel %vm540, %v547, %v549
    %v551 = vsel %vm539, %v529, %v532
    %v552 = vsel %vm542, %v538, 1326507024
    %v553 = vsel %vm541, %v535, %v552
    %v554 = vsel %vm540, %v551, %v553
    %v555 = vshll.u32 %v515, 8
    %v556 = vmul.u32.u64.compose %v555, %v554
    %v557 = vextract.low.u32 %v556
    %v558 = vextract.high.u32 %v556
    %v559 = vmul.u32.u64.compose %v555, %v550
    %v560 = vextract.low.u32 %v559
    %v561 = vextract.high.u32 %v559
    %v562 = vmul.u32 %v555, %v546
    %v563 = vadd.s32 %v558, %v560
    %vm564 = vc.u32 %v558, %v560
    %v565 = vadd.s32 %v561, 1
    %v566 = vsel %vm564, %v565, %v561
    %v567 = vadd.s32 %v562, %v566
    %v568 = vadd.s32 %v567, 536870912
    %v569 = vshrl.u32 %v568, 30
    %v570 = vshll.u32 %v569, 30
    %v571 = vsub.s32 %v567, %v570
    %vm572 = vcmp.lt.s32.totalorder %v571, 0
    %v573 = vsub.s32 0, %v571
    %v574 = vsel %vm572, %v573, %v571
    %v575 = vclz %v574
    %v576 = vsub.s32 %v575, 2
    %vm577 = vcmp.gt.s32.totalorder 0, %v576
    %v578 = vsel %vm577, 0, %v576
    %v579 = vsub.s32 32, %v578
    %v580 = vshll.u32 %v571, %v578
    %v581 = vshrl.u32 %v563, %v579
    %v582 = vor.u32 %v580, %v581
    %v583 = vsub.s32 4294967266, %v578
    %v584 = vadd.s32 %v583, 127
    %v585 = vshll.u32 %v584, 23
    %v586 = vor.u32 4788187, %v585
    %v587 = vand.u32 2147483647, %v586
    %v589 = vcvt.s32.f32 %v582
    %v590 = vmul.f32 %v589, %v587
    %v591 = vxor.u32 %v590, 2147483648
    %v592 = vsel %vm509, %v591, %v590
    %v593 = vsub.s32 4, %v569
    %v594 = vsel %vm509, %v593, %v569
    %v595 = vsel %vm508, %v172, %v592
    %v596 = vsel %vm508, 0, %v594
    %v597 = vcosq.f32.pop %v595
    %v598 = vsinq.f32.pop %v595
    %vm599 = vweird.f32 %v172
    %v600 = vadd.s32 %v596, 3
    %v601 = vand.u32 %v600, 3
    %vm602 = vcmp.lt.s32.totalorder %v601, 2
    %vm603 = vcmp.eq.s32.totalorder %v601, 0
    %v604 = vxor.u32 %v598, 2147483648
    %v605 = vsel %vm603, %v597, %v604
    %vm606 = vcmp.eq.s32.totalorder %v601, 2
    %v607 = vxor.u32 %v597, 2147483648
    %v608 = vsel %vm606, %v607, %v598
    %v609 = vsel %vm602, %v605, %v608
    %v610 = vsel %vm599, nan, %v609
    %v611 = vand.u32 2147483647, %v177
    %vm612 = vcmp.le.f32.partialorder %v611, 0.7853982
    %vm613 = vcmp.lt.s32.totalorder %v177, 0
    %v614 = vand.u32 %v177, 2139095040
    %v615 = vshrl.u32 %v614, 23
    %v616 = vsub.s32 %v615, 127
    %v617 = vand.u32 2147483647, %v177
    %v618 = vand.u32 %v617, 8388607
    %v619 = vor.u32 %v618, 8388608
    %v620 = vsub.s32 0, %v619
    %v621 = vadd.s32 %v616, 1
    %vm622 = vcmp.gt.s32.totalorder %v621, 0
    %v623 = vsel %vm622, %v621, 0
    %v624 = vshrl.u32 %v623, 5
    %v625 = vand.u32 %v623, 31
    %v626 = vsub.s32 32, %v625
    %v627 = vshrl.u32 683565275, %v626
    %v628 = vshll.u32 683565275, %v625
    %v629 = vshrl.u32 2475754826, %v626
    %v630 = vor.u32 %v628, %v629
    %v631 = vshll.u32 2475754826, %v625
    %v632 = vshrl.u32 2131351028, %v626
    %v633 = vor.u32 %v631, %v632
    %v634 = vshll.u32 2131351028, %v625
    %v635 = vshrl.u32 2102212464, %v626
    %v636 = vor.u32 %v634, %v635
    %v637 = vshll.u32 2102212464, %v625
    %v638 = vshrl.u32 920167782, %v626
    %v639 = vor.u32 %v637, %v638
    %v640 = vshll.u32 920167782, %v625
    %v641 = vshrl.u32 1326507024, %v626
    %v642 = vor.u32 %v640, %v641
    %vm643 = vcmp.lt.s32.totalorder %v624, 1
    %vm644 = vcmp.lt.s32.totalorder %v624, 2
    %vm645 = vcmp.lt.s32.totalorder %v624, 3
    %vm646 = vcmp.lt.s32.totalorder %v624, 4
    %v647 = vsel %vm643, %v627, %v630
    %v648 = vsel %vm646, %v636, 2102212464
    %v649 = vsel %vm645, %v633, %v648
    %v650 = vsel %vm644, %v647, %v649
    %v651 = vsel %vm643, %v630, %v633
    %v652 = vsel %vm646, %v639, 920167782
    %v653 = vsel %vm645, %v636, %v652
    %v654 = vsel %vm644, %v651, %v653
    %v655 = vsel %vm643, %v633, %v636
    %v656 = vsel %vm646, %v642, 1326507024
    %v657 = vsel %vm645, %v639, %v656
    %v658 = vsel %vm644, %v655, %v657
    %v659 = vshll.u32 %v619, 8
    %v660 = vmul.u32.u64.compose %v659, %v658
    %v661 = vextract.low.u32 %v660
    %v662 = vextract.high.u32 %v660
    %v663 = vmul.u32.u64.compose %v659, %v654
    %v664 = vextract.low.u32 %v663
    %v665 = vextract.high.u32 %v663
    %v666 = vmul.u32 %v659, %v650
    %v667 = vadd.s32 %v662, %v664
    %vm668 = vc.u32 %v662, %v664
    %v669 = vadd.s32 %v665, 1
    %v670 = vsel %vm668, %v669, %v665
    %v671 = vadd.s32 %v666, %v670
    %v672 = vadd.s32 %v671, 536870912
    %v673 = vshrl.u32 %v672, 30
    %v674 = vshll.u32 %v673, 30
    %v675 = vsub.s32 %v671, %v674
    %vm676 = vcmp.lt.s32.totalorder %v675, 0
    %v677 = vsub.s32 0, %v675
    %v678 = vsel %vm676, %v677, %v675
    %v679 = vclz %v678
    %v680 = vsub.s32 %v679, 2
    %vm681 = vcmp.gt.s32.totalorder 0, %v680
    %v682 = vsel %vm681, 0, %v680
    %v683 = vsub.s32 32, %v682
    %v684 = vshll.u32 %v675, %v682
    %v685 = vshrl.u32 %v667, %v683
    %v686 = vor.u32 %v684, %v685
    %v687 = vsub.s32 4294967266, %v682
    %v688 = vadd.s32 %v687, 127
    %v689 = vshll.u32 %v688, 23
    %v690 = vor.u32 4788187, %v689
    %v691 = vand.u32 2147483647, %v690
    %v693 = vcvt.s32.f32 %v686
    %v694 = vmul.f32 %v693, %v691
    %v695 = vxor.u32 %v694, 2147483648
    %v696 = vsel %vm613, %v695, %v694
    %v697 = vsub.s32 4, %v673
    %v698 = vsel %vm613, %v697, %v673
    %v699 = vsel %vm612, %v177, %v696
    %v700 = vsel %vm612, 0, %v698
    %v701 = vcosq.f32.pop %v699
    %v702 = vsinq.f32.pop %v699
    %vm703 = vweird.f32 %v177
    %v704 = vadd.s32 %v700, 3
    %v705 = vand.u32 %v704, 3
    %vm706 = vcmp.lt.s32.totalorder %v705, 2
    %vm707 = vcmp.eq.s32.totalorder %v705, 0
    %v708 = vxor.u32 %v702, 2147483648
    %v709 = vsel %vm707, %v701, %v708
    %vm710 = vcmp.eq.s32.totalorder %v705, 2
    %v711 = vxor.u32 %v701, 2147483648
    %v712 = vsel %vm710, %v711, %v702
    %v713 = vsel %vm706, %v709, %v712
    %v714 = vsel %vm703, nan, %v713
    %v715 = vand.u32 2147483647, %v182
    %vm716 = vcmp.le.f32.partialorder %v715, 0.7853982
    %vm717 = vcmp.lt.s32.totalorder %v182, 0
    %v718 = vand.u32 %v182, 2139095040
    %v719 = vshrl.u32 %v718, 23
    %v720 = vsub.s32 %v719, 127
    %v721 = vand.u32 2147483647, %v182
    %v722 = vand.u32 %v721, 8388607
    %v723 = vor.u32 %v722, 8388608
    %v724 = vsub.s32 0, %v723
    %v725 = vadd.s32 %v720, 1
    %vm726 = vcmp.gt.s32.totalorder %v725, 0
    %v727 = vsel %vm726, %v725, 0
    %v728 = vshrl.u32 %v727, 5
    %v729 = vand.u32 %v727, 31
    %v730 = vsub.s32 32, %v729
    %v731 = vshrl.u32 683565275, %v730
    %v732 = vshll.u32 683565275, %v729
    %v733 = vshrl.u32 2475754826, %v730
    %v734 = vor.u32 %v732, %v733
    %v735 = vshll.u32 2475754826, %v729
    %v736 = vshrl.u32 2131351028, %v730
    %v737 = vor.u32 %v735, %v736
    %v738 = vshll.u32 2131351028, %v729
    %v739 = vshrl.u32 2102212464, %v730
    %v740 = vor.u32 %v738, %v739
    %v741 = vshll.u32 2102212464, %v729
    %v742 = vshrl.u32 920167782, %v730
    %v743 = vor.u32 %v741, %v742
    %v744 = vshll.u32 920167782, %v729
    %v745 = vshrl.u32 1326507024, %v730
    %v746 = vor.u32 %v744, %v745
    %vm747 = vcmp.lt.s32.totalorder %v728, 1
    %vm748 = vcmp.lt.s32.totalorder %v728, 2
    %vm749 = vcmp.lt.s32.totalorder %v728, 3
    %vm750 = vcmp.lt.s32.totalorder %v728, 4
    %v751 = vsel %vm747, %v731, %v734
    %v752 = vsel %vm750, %v740, 2102212464
    %v753 = vsel %vm749, %v737, %v752
    %v754 = vsel %vm748, %v751, %v753
    %v755 = vsel %vm747, %v734, %v737
    %v756 = vsel %vm750, %v743, 920167782
    %v757 = vsel %vm749, %v740, %v756
    %v758 = vsel %vm748, %v755, %v757
    %v759 = vsel %vm747, %v737, %v740
    %v760 = vsel %vm750, %v746, 1326507024
    %v761 = vsel %vm749, %v743, %v760
    %v762 = vsel %vm748, %v759, %v761
    %v763 = vshll.u32 %v723, 8
    %v764 = vmul.u32.u64.compose %v763, %v762
    %v765 = vextract.low.u32 %v764
    %v766 = vextract.high.u32 %v764
    %v767 = vmul.u32.u64.compose %v763, %v758
    %v768 = vextract.low.u32 %v767
    %v769 = vextract.high.u32 %v767
    %v770 = vmul.u32 %v763, %v754
    %v771 = vadd.s32 %v766, %v768
    %vm772 = vc.u32 %v766, %v768
    %v773 = vadd.s32 %v769, 1
    %v774 = vsel %vm772, %v773, %v769
    %v775 = vadd.s32 %v770, %v774
    %v776 = vadd.s32 %v775, 536870912
    %v777 = vshrl.u32 %v776, 30
    %v778 = vshll.u32 %v777, 30
    %v779 = vsub.s32 %v775, %v778
    %vm780 = vcmp.lt.s32.totalorder %v779, 0
    %v781 = vsub.s32 0, %v779
    %v782 = vsel %vm780, %v781, %v779
    %v783 = vclz %v782
    %v784 = vsub.s32 %v783, 2
    %vm785 = vcmp.gt.s32.totalorder 0, %v784
    %v786 = vsel %vm785, 0, %v784
    %v787 = vsub.s32 32, %v786
    %v788 = vshll.u32 %v779, %v786
    %v789 = vshrl.u32 %v771, %v787
    %v790 = vor.u32 %v788, %v789
    %v791 = vsub.s32 4294967266, %v786
    %v792 = vadd.s32 %v791, 127
    %v793 = vshll.u32 %v792, 23
    %v794 = vor.u32 4788187, %v793
    %v795 = vand.u32 2147483647, %v794
    %v797 = vcvt.s32.f32 %v790
    %v798 = vmul.f32 %v797, %v795
    %v799 = vxor.u32 %v798, 2147483648
    %v800 = vsel %vm717, %v799, %v798
    %v801 = vsub.s32 4, %v777
    %v802 = vsel %vm717, %v801, %v777
    %v803 = vsel %vm716, %v182, %v800
    %v804 = vsel %vm716, 0, %v802
    %v805 = vcosq.f32.pop %v803
    %v806 = vsinq.f32.pop %v803
    %vm807 = vweird.f32 %v182
    %v808 = vadd.s32 %v804, 3
    %v809 = vand.u32 %v808, 3
    %vm810 = vcmp.lt.s32.totalorder %v809, 2
    %vm811 = vcmp.eq.s32.totalorder %v809, 0
    %v812 = vxor.u32 %v806, 2147483648
    %v813 = vsel %vm811, %v805, %v812
    %vm814 = vcmp.eq.s32.totalorder %v809, 2
    %v815 = vxor.u32 %v805, 2147483648
    %v816 = vsel %vm814, %v815, %v806
    %v817 = vsel %vm810, %v813, %v816
    %v818 = vsel %vm807, nan, %v817
    %v819 = vand.u32 2147483647, %v187
    %vm820 = vcmp.le.f32.partialorder %v819, 0.7853982
    %vm821 = vcmp.lt.s32.totalorder %v187, 0
    %v822 = vand.u32 %v187, 2139095040
    %v823 = vshrl.u32 %v822, 23
    %v824 = vsub.s32 %v823, 127
    %v825 = vand.u32 2147483647, %v187
    %v826 = vand.u32 %v825, 8388607
    %v827 = vor.u32 %v826, 8388608
    %v828 = vsub.s32 0, %v827
    %v829 = vadd.s32 %v824, 1
    %vm830 = vcmp.gt.s32.totalorder %v829, 0
    %v831 = vsel %vm830, %v829, 0
    %v832 = vshrl.u32 %v831, 5
    %v833 = vand.u32 %v831, 31
    %v834 = vsub.s32 32, %v833
    %v835 = vshrl.u32 683565275, %v834
    %v836 = vshll.u32 683565275, %v833
    %v837 = vshrl.u32 2475754826, %v834
    %v838 = vor.u32 %v836, %v837
    %v839 = vshll.u32 2475754826, %v833
    %v840 = vshrl.u32 2131351028, %v834
    %v841 = vor.u32 %v839, %v840
    %v842 = vshll.u32 2131351028, %v833
    %v843 = vshrl.u32 2102212464, %v834
    %v844 = vor.u32 %v842, %v843
    %v845 = vshll.u32 2102212464, %v833
    %v846 = vshrl.u32 920167782, %v834
    %v847 = vor.u32 %v845, %v846
    %v848 = vshll.u32 920167782, %v833
    %v849 = vshrl.u32 1326507024, %v834
    %v850 = vor.u32 %v848, %v849
    %vm851 = vcmp.lt.s32.totalorder %v832, 1
    %vm852 = vcmp.lt.s32.totalorder %v832, 2
    %vm853 = vcmp.lt.s32.totalorder %v832, 3
    %vm854 = vcmp.lt.s32.totalorder %v832, 4
    %v855 = vsel %vm851, %v835, %v838
    %v856 = vsel %vm854, %v844, 2102212464
    %v857 = vsel %vm853, %v841, %v856
    %v858 = vsel %vm852, %v855, %v857
    %v859 = vsel %vm851, %v838, %v841
    %v860 = vsel %vm854, %v847, 920167782
    %v861 = vsel %vm853, %v844, %v860
    %v862 = vsel %vm852, %v859, %v861
    %v863 = vsel %vm851, %v841, %v844
    %v864 = vsel %vm854, %v850, 1326507024
    %v865 = vsel %vm853, %v847, %v864
    %v866 = vsel %vm852, %v863, %v865
    %v867 = vshll.u32 %v827, 8
    %v868 = vmul.u32.u64.compose %v867, %v866
    %v869 = vextract.low.u32 %v868
    %v870 = vextract.high.u32 %v868
    %v871 = vmul.u32.u64.compose %v867, %v862
    %v872 = vextract.low.u32 %v871
    %v873 = vextract.high.u32 %v871
    %v874 = vmul.u32 %v867, %v858
    %v875 = vadd.s32 %v870, %v872
    %vm876 = vc.u32 %v870, %v872
    %v877 = vadd.s32 %v873, 1
    %v878 = vsel %vm876, %v877, %v873
    %v879 = vadd.s32 %v874, %v878
    %v880 = vadd.s32 %v879, 536870912
    %v881 = vshrl.u32 %v880, 30
    %v882 = vshll.u32 %v881, 30
    %v883 = vsub.s32 %v879, %v882
    %vm884 = vcmp.lt.s32.totalorder %v883, 0
    %v885 = vsub.s32 0, %v883
    %v886 = vsel %vm884, %v885, %v883
    %v887 = vclz %v886
    %v888 = vsub.s32 %v887, 2
    %vm889 = vcmp.gt.s32.totalorder 0, %v888
    %v890 = vsel %vm889, 0, %v888
    %v891 = vsub.s32 32, %v890
    %v892 = vshll.u32 %v883, %v890
    %v893 = vshrl.u32 %v875, %v891
    %v894 = vor.u32 %v892, %v893
    %v895 = vsub.s32 4294967266, %v890
    %v896 = vadd.s32 %v895, 127
    %v897 = vshll.u32 %v896, 23
    %v898 = vor.u32 4788187, %v897
    %v899 = vand.u32 2147483647, %v898
    %v901 = vcvt.s32.f32 %v894
    %v902 = vmul.f32 %v901, %v899
    %v903 = vxor.u32 %v902, 2147483648
    %v904 = vsel %vm821, %v903, %v902
    %v905 = vsub.s32 4, %v881
    %v906 = vsel %vm821, %v905, %v881
    %v907 = vsel %vm820, %v187, %v904
    %v908 = vsel %vm820, 0, %v906
    %v909 = vcosq.f32.pop %v907
    %v910 = vsinq.f32.pop %v907
    %vm911 = vweird.f32 %v187
    %v912 = vadd.s32 %v908, 3
    %v913 = vand.u32 %v912, 3
    %vm914 = vcmp.lt.s32.totalorder %v913, 2
    %vm915 = vcmp.eq.s32.totalorder %v913, 0
    %v916 = vxor.u32 %v910, 2147483648
    %v917 = vsel %vm915, %v909, %v916
    %vm918 = vcmp.eq.s32.totalorder %v913, 2
    %v919 = vxor.u32 %v909, 2147483648
    %v920 = vsel %vm918, %v919, %v910
    %v921 = vsel %vm914, %v917, %v920
    %v922 = vsel %vm911, nan, %v921
    %v923 = vand.u32 2147483647, %v192
    %vm924 = vcmp.le.f32.partialorder %v923, 0.7853982
    %vm925 = vcmp.lt.s32.totalorder %v192, 0
    %v926 = vand.u32 %v192, 2139095040
    %v927 = vshrl.u32 %v926, 23
    %v928 = vsub.s32 %v927, 127
    %v929 = vand.u32 2147483647, %v192
    %v930 = vand.u32 %v929, 8388607
    %v931 = vor.u32 %v930, 8388608
    %v932 = vsub.s32 0, %v931
    %v933 = vadd.s32 %v928, 1
    %vm934 = vcmp.gt.s32.totalorder %v933, 0
    %v935 = vsel %vm934, %v933, 0
    %v936 = vshrl.u32 %v935, 5
    %v937 = vand.u32 %v935, 31
    %v938 = vsub.s32 32, %v937
    %v939 = vshrl.u32 683565275, %v938
    %v940 = vshll.u32 683565275, %v937
    %v941 = vshrl.u32 2475754826, %v938
    %v942 = vor.u32 %v940, %v941
    %v943 = vshll.u32 2475754826, %v937
    %v944 = vshrl.u32 2131351028, %v938
    %v945 = vor.u32 %v943, %v944
    %v946 = vshll.u32 2131351028, %v937
    %v947 = vshrl.u32 2102212464, %v938
    %v948 = vor.u32 %v946, %v947
    %v949 = vshll.u32 2102212464, %v937
    %v950 = vshrl.u32 920167782, %v938
    %v951 = vor.u32 %v949, %v950
    %v952 = vshll.u32 920167782, %v937
    %v953 = vshrl.u32 1326507024, %v938
    %v954 = vor.u32 %v952, %v953
    %vm955 = vcmp.lt.s32.totalorder %v936, 1
    %vm956 = vcmp.lt.s32.totalorder %v936, 2
    %vm957 = vcmp.lt.s32.totalorder %v936, 3
    %vm958 = vcmp.lt.s32.totalorder %v936, 4
    %v959 = vsel %vm955, %v939, %v942
    %v960 = vsel %vm958, %v948, 2102212464
    %v961 = vsel %vm957, %v945, %v960
    %v962 = vsel %vm956, %v959, %v961
    %v963 = vsel %vm955, %v942, %v945
    %v964 = vsel %vm958, %v951, 920167782
    %v965 = vsel %vm957, %v948, %v964
    %v966 = vsel %vm956, %v963, %v965
    %v967 = vsel %vm955, %v945, %v948
    %v968 = vsel %vm958, %v954, 1326507024
    %v969 = vsel %vm957, %v951, %v968
    %v970 = vsel %vm956, %v967, %v969
    %v971 = vshll.u32 %v931, 8
    %v972 = vmul.u32.u64.compose %v971, %v970
    %v973 = vextract.low.u32 %v972
    %v974 = vextract.high.u32 %v972
    %v975 = vmul.u32.u64.compose %v971, %v966
    %v976 = vextract.low.u32 %v975
    %v977 = vextract.high.u32 %v975
    %v978 = vmul.u32 %v971, %v962
    %v979 = vadd.s32 %v974, %v976
    %vm980 = vc.u32 %v974, %v976
    %v981 = vadd.s32 %v977, 1
    %v982 = vsel %vm980, %v981, %v977
    %v983 = vadd.s32 %v978, %v982
    %v984 = vadd.s32 %v983, 536870912
    %v985 = vshrl.u32 %v984, 30
    %v986 = vshll.u32 %v985, 30
    %v987 = vsub.s32 %v983, %v986
    %vm988 = vcmp.lt.s32.totalorder %v987, 0
    %v989 = vsub.s32 0, %v987
    %v990 = vsel %vm988, %v989, %v987
    %v991 = vclz %v990
    %v992 = vsub.s32 %v991, 2
    %vm993 = vcmp.gt.s32.totalorder 0, %v992
    %v994 = vsel %vm993, 0, %v992
    %v995 = vsub.s32 32, %v994
    %v996 = vshll.u32 %v987, %v994
    %v997 = vshrl.u32 %v979, %v995
    %v998 = vor.u32 %v996, %v997
    %v999 = vsub.s32 4294967266, %v994
    %v1000 = vadd.s32 %v999, 127
    %v1001 = vshll.u32 %v1000, 23
    %v1002 = vor.u32 4788187, %v1001
    %v1003 = vand.u32 2147483647, %v1002
    %v1005 = vcvt.s32.f32 %v998
    %v1006 = vmul.f32 %v1005, %v1003
    %v1007 = vxor.u32 %v1006, 2147483648
    %v1008 = vsel %vm925, %v1007, %v1006
    %v1009 = vsub.s32 4, %v985
    %v1010 = vsel %vm925, %v1009, %v985
    %v1011 = vsel %vm924, %v192, %v1008
    %v1012 = vsel %vm924, 0, %v1010
    %v1013 = vcosq.f32.pop %v1011
    %v1014 = vsinq.f32.pop %v1011
    %vm1015 = vweird.f32 %v192
    %v1016 = vadd.s32 %v1012, 3
    %v1017 = vand.u32 %v1016, 3
    %vm1018 = vcmp.lt.s32.totalorder %v1017, 2
    %vm1019 = vcmp.eq.s32.totalorder %v1017, 0
    %v1020 = vxor.u32 %v1014, 2147483648
    %v1021 = vsel %vm1019, %v1013, %v1020
    %vm1022 = vcmp.eq.s32.totalorder %v1017, 2
    %v1023 = vxor.u32 %v1013, 2147483648
    %v1024 = vsel %vm1022, %v1023, %v1014
    %v1025 = vsel %vm1018, %v1021, %v1024
    %v1026 = vsel %vm1015, nan, %v1025
    %v1027 = vlaneseq
    %v1028 = vshrl.u32 %v1027, 7
    %v1029 = vsub.s32 0, %v1028
    %v1030 = vrot.slane %v30, %v1029
    %vm1031 = vcmask 64512
    %v1033 = vsel %vm1031, %v298, 0
    %v1036 = vsel %vm1031, %v402, 0
    %v1039 = vsel %vm1031, %v506, 0
    %v1042 = vsel %vm1031, %v610, 0
    %v1045 = vsel %vm1031, %v714, 0
    %v1048 = vsel %vm1031, %v818, 0
    %v1051 = vsel %vm1031, %v922, 0
    %v1054 = vsel %vm1031, %v1026, 0
    %1056 = vmatprep.subr.mxu0 0.0
    %1057 = vmatpush1.msra.mxu0 0.0
    %1058 = vmatprep.subr.mxu0 0.0
    %1059 = vmatpush1.msra.mxu0 0.0
    %1060 = vmatprep.subr.mxu0 0.0
    %1061 = vmatpush1.msra.mxu0 0.0
    %1062 = vmatprep.subr.mxu0 0.0
    %1063 = vmatpush1.msra.mxu0 0.0
    %1064 = vmatprep.subr.mxu0 0.0
    %1065 = vmatpush1.msra.mxu0 0.0
    %1066 = vmatprep.subr.mxu0 0.0
    %1067 = vmatpush1.msra.mxu0 0.0
    %1068 = vmatprep.subr.mxu0 0.0
    %1069 = vmatpush1.msra.mxu0 0.0
    %1070 = vmatprep.subr.mxu0 0.0
    %1071 = vmatpush1.msra.mxu0 0.0
    %1072 = vmatprep.subr.mxu0 0.0
    %1073 = vmatpush1.msra.mxu0 0.0
    %1074 = vmatprep.subr.mxu0 0.0
    %1075 = vmatpush1.msra.mxu0 0.0
    %1076 = vmatprep.subr.mxu0 0.0
    %1077 = vmatpush1.msra.mxu0 0.0
    %1078 = vmatprep.subr.mxu0 0.0
    %1079 = vmatpush1.msra.mxu0 0.0
    %1080 = vmatprep.subr.mxu0 0.0
    %1081 = vmatpush1.msra.mxu0 0.0
    %1082 = vmatprep.subr.mxu0 0.0
    %1083 = vmatpush1.msra.mxu0 0.0
    %1084 = vmatprep.subr.mxu0 0.0
    %1085 = vmatpush1.msra.mxu0 0.0
    %1086 = vmatprep.subr.mxu0 0.0
    %1087 = vmatpush1.msra.mxu0 %v25
    %1088 = vmatprep.subr.mxu0 0.0
    %1089 = vmatpush2.msra.mxu0 0.0
    %1090 = vmatprep.subr.mxu0 0.0
    %1091 = vmatpush2.msra.mxu0 0.0
    %1092 = vmatprep.subr.mxu0 0.0
    %1093 = vmatpush2.msra.mxu0 0.0
    %1094 = vmatprep.subr.mxu0 0.0
    %1095 = vmatpush2.msra.mxu0 0.0
    %1096 = vmatprep.subr.mxu0 0.0
    %1097 = vmatpush2.msra.mxu0 0.0
    %1098 = vmatprep.subr.mxu0 0.0
    %1099 = vmatpush2.msra.mxu0 0.0
    %1100 = vmatprep.subr.mxu0 0.0
    %1101 = vmatpush2.msra.mxu0 0.0
    %1102 = vmatprep.subr.mxu0 0.0
    %1103 = vmatpush2.msra.mxu0 0.0
    %1104 = vmatprep.subr.mxu0 0.0
    %1105 = vmatpush2.msra.mxu0 0.0
    %1106 = vmatprep.subr.mxu0 0.0
    %1107 = vmatpush2.msra.mxu0 0.0
    %1108 = vmatprep.subr.mxu0 0.0
    %1109 = vmatpush2.msra.mxu0 0.0
    %1110 = vmatprep.subr.mxu0 0.0
    %1111 = vmatpush2.msra.mxu0 0.0
    %1112 = vmatprep.subr.mxu0 0.0
    %1113 = vmatpush2.msra.mxu0 0.0
    %1114 = vmatprep.subr.mxu0 0.0
    %1115 = vmatpush2.msra.mxu0 0.0
    %1116 = vmatprep.subr.mxu0 0.0
    %1117 = vmatpush2.msra.mxu0 0.0
    %1118 = vmatprep.subr.mxu0 0.0
    %1119 = vmatpush2.msra.mxu0 0.0
    %1120 = vmatprep.mubr.f32.mxu0 0.0
    %1121 = vmatmul.mubr.f32.gmra.mxu0 %v1033
    %v1122 = vpop.f32.mrf.mxu0
    %v1123 = vadd.f32 %v1030, %v1122
    %v1124 = vpop.f32.mrf.mxu0
    %1125 = vmatprep.mubr.f32.mxu0 0.0
    %1126 = vmatmul.mubr.f32.gmra.mxu0 %v1036
    %v1127 = vpop.f32.mrf.mxu0
    %v1128 = vadd.f32 %v1030, %v1127
    %v1129 = vpop.f32.mrf.mxu0
    %1130 = vmatprep.mubr.f32.mxu0 0.0
    %1131 = vmatmul.mubr.f32.gmra.mxu0 %v1039
    %v1132 = vpop.f32.mrf.mxu0
    %v1133 = vadd.f32 %v1030, %v1132
    %v1134 = vpop.f32.mrf.mxu0
    %1135 = vmatprep.mubr.f32.mxu0 0.0
    %1136 = vmatmul.mubr.f32.gmra.mxu0 %v1042
    %v1137 = vpop.f32.mrf.mxu0
    %v1138 = vadd.f32 %v1030, %v1137
    %v1139 = vpop.f32.mrf.mxu0
    %1140 = vmatprep.mubr.f32.mxu0 0.0
    %1141 = vmatmul.mubr.f32.gmra.mxu0 %v1045
    %v1142 = vpop.f32.mrf.mxu0
    %v1143 = vadd.f32 %v1030, %v1142
    %v1144 = vpop.f32.mrf.mxu0
    %1145 = vmatprep.mubr.f32.mxu0 0.0
    %1146 = vmatmul.mubr.f32.gmra.mxu0 %v1048
    %v1147 = vpop.f32.mrf.mxu0
    %v1148 = vadd.f32 %v1030, %v1147
    %v1149 = vpop.f32.mrf.mxu0
    %1150 = vmatprep.mubr.f32.mxu0 0.0
    %1151 = vmatmul.mubr.f32.gmra.mxu0 %v1051
    %v1152 = vpop.f32.mrf.mxu0
    %v1153 = vadd.f32 %v1030, %v1152
    %v1154 = vpop.f32.mrf.mxu0
    %1155 = vmatprep.mubr.f32.mxu0 0.0
    %1156 = vmatmul.mubr.f32.gmra.mxu0 %v1054
    %v1157 = vpop.f32.mrf.mxu0
    %v1158 = vadd.f32 %v1030, %v1157
    %v1159 = vpop.f32.mrf.mxu0
    %1160 = vdwg.mxu0
    %vm1161 = vcmask 261120
    %v1163 = vsel %vm1161, 0.0, 0
    %1165 = vmatprep.subr.mxu0 0.0
    %1166 = vmatpush1.msra.mxu0 0.0
    %1167 = vmatprep.subr.mxu0 0.0
    %1168 = vmatpush1.msra.mxu0 0.0
    %1169 = vmatprep.subr.mxu0 0.0
    %1170 = vmatpush1.msra.mxu0 0.0
    %1171 = vmatprep.subr.mxu0 0.0
    %1172 = vmatpush1.msra.mxu0 0.0
    %1173 = vmatprep.subr.mxu0 0.0
    %1174 = vmatpush1.msra.mxu0 0.0
    %1175 = vmatprep.subr.mxu0 0.0
    %1176 = vmatpush1.msra.mxu0 0.0
    %1177 = vmatprep.subr.mxu0 0.0
    %1178 = vmatpush1.msra.mxu0 0.0
    %1179 = vmatprep.subr.mxu0 0.0
    %1180 = vmatpush1.msra.mxu0 0.0
    %1181 = vmatprep.subr.mxu0 0.0
    %1182 = vmatpush1.msra.mxu0 0.0
    %1183 = vmatprep.subr.mxu0 0.0
    %1184 = vmatpush1.msra.mxu0 0.0
    %1185 = vmatprep.subr.mxu0 0.0
    %1186 = vmatpush1.msra.mxu0 0.0
    %1187 = vmatprep.subr.mxu0 0.0
    %1188 = vmatpush1.msra.mxu0 0.0
    %1189 = vmatprep.subr.mxu0 0.0
    %1190 = vmatpush1.msra.mxu0 %v29
    %1191 = vmatprep.subr.mxu0 0.0
    %1192 = vmatpush1.msra.mxu0 %v28
    %1193 = vmatprep.subr.mxu0 0.0
    %1194 = vmatpush1.msra.mxu0 %v27
    %1195 = vmatprep.subr.mxu0 0.0
    %1196 = vmatpush1.msra.mxu0 %v26
    %1197 = vmatprep.subr.mxu0 0.0
    %1198 = vmatpush2.msra.mxu0 0.0
    %1199 = vmatprep.subr.mxu0 0.0
    %1200 = vmatpush2.msra.mxu0 0.0
    %1201 = vmatprep.subr.mxu0 0.0
    %1202 = vmatpush2.msra.mxu0 0.0
    %1203 = vmatprep.subr.mxu0 0.0
    %1204 = vmatpush2.msra.mxu0 0.0
    %1205 = vmatprep.subr.mxu0 0.0
    %1206 = vmatpush2.msra.mxu0 0.0
    %1207 = vmatprep.subr.mxu0 0.0
    %1208 = vmatpush2.msra.mxu0 0.0
    %1209 = vmatprep.subr.mxu0 0.0
    %1210 = vmatpush2.msra.mxu0 0.0
    %1211 = vmatprep.subr.mxu0 0.0
    %1212 = vmatpush2.msra.mxu0 0.0
    %1213 = vmatprep.subr.mxu0 0.0
    %1214 = vmatpush2.msra.mxu0 0.0
    %1215 = vmatprep.subr.mxu0 0.0
    %1216 = vmatpush2.msra.mxu0 0.0
    %1217 = vmatprep.subr.mxu0 0.0
    %1218 = vmatpush2.msra.mxu0 0.0
    %1219 = vmatprep.subr.mxu0 0.0
    %1220 = vmatpush2.msra.mxu0 0.0
    %1221 = vmatprep.subr.mxu0 0.0
    %1222 = vmatpush2.msra.mxu0 0.0
    %1223 = vmatprep.subr.mxu0 0.0
    %1224 = vmatpush2.msra.mxu0 0.0
    %1225 = vmatprep.subr.mxu0 0.0
    %1226 = vmatpush2.msra.mxu0 0.0
    %1227 = vmatprep.subr.mxu0 0.0
    %1228 = vmatpush2.msra.mxu0 0.0
    %1229 = vmatprep.mubr.f32.mxu0 0.0
    %1230 = vmatmul.mubr.f32.gmra.mxu0 %v1163
    %v1231 = vpop.f32.mrf.mxu0
    %v1232 = vadd.f32 0.0, %v1231
    %v1233 = vpop.f32.mrf.mxu0
    %1234 = vdwg.mxu0
    %v1235 = vadd.f32 %v1123, %v1232
    %v1236 = vxor.u32 %v1235, 2147483648
    %v1237 = vmul.f32 %v1236, 1.442695
    %v1238 = vpow.pop %v1237
    %v1239 = vadd.f32 %v1238, 1.0
    %v1240 = vrcp.pop %v1239
    %v1241 = vmul.f32 1.0, %v1240
    %1243 = vrot.lane.b32.xlu0 %v1235, 32
    %v1244 = vpop.permute.xlu0 %1243
    %v1246 = vmul.f32 %v1241, %v1244
    %1248 = vrot.lane.b32.xlu0 %v1246, 64
    %v1249 = vpop.permute.xlu0 %1248
    %v1251 = vadd.f32 %v1235, %v1249
    %v1252 = vtanh.pop %v1251
    %v1253 = vsub.f32 1.0, %v1241
    %1255 = vrot.lane.b32.xlu0 %v1252, 96
    %v1256 = vpop.permute.xlu0 %1255
    %v1258 = vmul.f32 %v1253, %v1256
    %v1259 = vmul.f32 %v1241, 0.0
    %v1260 = vadd.f32 %v1258, %v1259
    %1262 = vrot.lane.b32.xlu0 %v1260, 96
    %v1263 = vpop.permute.xlu0 %1262
    %v1264 = vsel %vm1161, %v1263, 0
    %1266 = vmatprep.subr.mxu0 0.0
    %1267 = vmatpush1.msra.mxu0 0.0
    %1268 = vmatprep.subr.mxu0 0.0
    %1269 = vmatpush1.msra.mxu0 0.0
    %1270 = vmatprep.subr.mxu0 0.0
    %1271 = vmatpush1.msra.mxu0 0.0
    %1272 = vmatprep.subr.mxu0 0.0
    %1273 = vmatpush1.msra.mxu0 0.0
    %1274 = vmatprep.subr.mxu0 0.0
    %1275 = vmatpush1.msra.mxu0 0.0
    %1276 = vmatprep.subr.mxu0 0.0
    %1277 = vmatpush1.msra.mxu0 0.0
    %1278 = vmatprep.subr.mxu0 0.0
    %1279 = vmatpush1.msra.mxu0 0.0
    %1280 = vmatprep.subr.mxu0 0.0
    %1281 = vmatpush1.msra.mxu0 0.0
    %1282 = vmatprep.subr.mxu0 0.0
    %1283 = vmatpush1.msra.mxu0 0.0
    %1284 = vmatprep.subr.mxu0 0.0
    %1285 = vmatpush1.msra.mxu0 0.0
    %1286 = vmatprep.subr.mxu0 0.0
    %1287 = vmatpush1.msra.mxu0 0.0
    %1288 = vmatprep.subr.mxu0 0.0
    %1289 = vmatpush1.msra.mxu0 0.0
    %1290 = vmatprep.subr.mxu0 0.0
    %1291 = vmatpush1.msra.mxu0 %v29
    %1292 = vmatprep.subr.mxu0 0.0
    %1293 = vmatpush1.msra.mxu0 %v28
    %1294 = vmatprep.subr.mxu0 0.0
    %1295 = vmatpush1.msra.mxu0 %v27
    %1296 = vmatprep.subr.mxu0 0.0
    %1297 = vmatpush1.msra.mxu0 %v26
    %1298 = vmatprep.subr.mxu0 0.0
    %1299 = vmatpush2.msra.mxu0 0.0
    %1300 = vmatprep.subr.mxu0 0.0
    %1301 = vmatpush2.msra.mxu0 0.0
    %1302 = vmatprep.subr.mxu0 0.0
    %1303 = vmatpush2.msra.mxu0 0.0
    %1304 = vmatprep.subr.mxu0 0.0
    %1305 = vmatpush2.msra.mxu0 0.0
    %1306 = vmatprep.subr.mxu0 0.0
    %1307 = vmatpush2.msra.mxu0 0.0
    %1308 = vmatprep.subr.mxu0 0.0
    %1309 = vmatpush2.msra.mxu0 0.0
    %1310 = vmatprep.subr.mxu0 0.0
    %1311 = vmatpush2.msra.mxu0 0.0
    %1312 = vmatprep.subr.mxu0 0.0
    %1313 = vmatpush2.msra.mxu0 0.0
    %1314 = vmatprep.subr.mxu0 0.0
    %1315 = vmatpush2.msra.mxu0 0.0
    %1316 = vmatprep.subr.mxu0 0.0
    %1317 = vmatpush2.msra.mxu0 0.0
    %1318 = vmatprep.subr.mxu0 0.0
    %1319 = vmatpush2.msra.mxu0 0.0
    %1320 = vmatprep.subr.mxu0 0.0
    %1321 = vmatpush2.msra.mxu0 0.0
    %1322 = vmatprep.subr.mxu0 0.0
    %1323 = vmatpush2.msra.mxu0 0.0
    %1324 = vmatprep.subr.mxu0 0.0
    %1325 = vmatpush2.msra.mxu0 0.0
    %1326 = vmatprep.subr.mxu0 0.0
    %1327 = vmatpush2.msra.mxu0 0.0
    %1328 = vmatprep.subr.mxu0 0.0
    %1329 = vmatpush2.msra.mxu0 0.0
    %1330 = vmatprep.mubr.f32.mxu0 0.0
    %1331 = vmatmul.mubr.f32.gmra.mxu0 %v1264
    %v1332 = vpop.f32.mrf.mxu0
    %v1333 = vadd.f32 0.0, %v1332
    %v1334 = vpop.f32.mrf.mxu0
    %1335 = vdwg.mxu0
    %v1336 = vadd.f32 %v1128, %v1333
    %v1337 = vxor.u32 %v1336, 2147483648
    %v1338 = vmul.f32 %v1337, 1.442695
    %v1339 = vpow.pop %v1338
    %v1340 = vadd.f32 %v1339, 1.0
    %v1341 = vrcp.pop %v1340
    %v1342 = vmul.f32 1.0, %v1341
    %1344 = vrot.lane.b32.xlu0 %v1336, 32
    %v1345 = vpop.permute.xlu0 %1344
    %v1347 = vmul.f32 %v1342, %v1345
    %1349 = vrot.lane.b32.xlu0 %v1347, 64
    %v1350 = vpop.permute.xlu0 %1349
    %v1352 = vadd.f32 %v1336, %v1350
    %v1353 = vtanh.pop %v1352
    %v1354 = vsub.f32 1.0, %v1342
    %1356 = vrot.lane.b32.xlu0 %v1353, 96
    %v1357 = vpop.permute.xlu0 %1356
    %v1359 = vmul.f32 %v1354, %v1357
    %v1360 = vmul.f32 %v1342, %v1260
    %v1361 = vadd.f32 %v1359, %v1360
    %1363 = vrot.lane.b32.xlu0 %v1361, 96
    %v1364 = vpop.permute.xlu0 %1363
    %v1365 = vsel %vm1161, %v1364, 0
    %1367 = vmatprep.subr.mxu0 0.0
    %1368 = vmatpush1.msra.mxu0 0.0
    %1369 = vmatprep.subr.mxu0 0.0
    %1370 = vmatpush1.msra.mxu0 0.0
    %1371 = vmatprep.subr.mxu0 0.0
    %1372 = vmatpush1.msra.mxu0 0.0
    %1373 = vmatprep.subr.mxu0 0.0
    %1374 = vmatpush1.msra.mxu0 0.0
    %1375 = vmatprep.subr.mxu0 0.0
    %1376 = vmatpush1.msra.mxu0 0.0
    %1377 = vmatprep.subr.mxu0 0.0
    %1378 = vmatpush1.msra.mxu0 0.0
    %1379 = vmatprep.subr.mxu0 0.0
    %1380 = vmatpush1.msra.mxu0 0.0
    %1381 = vmatprep.subr.mxu0 0.0
    %1382 = vmatpush1.msra.mxu0 0.0
    %1383 = vmatprep.subr.mxu0 0.0
    %1384 = vmatpush1.msra.mxu0 0.0
    %1385 = vmatprep.subr.mxu0 0.0
    %1386 = vmatpush1.msra.mxu0 0.0
    %1387 = vmatprep.subr.mxu0 0.0
    %1388 = vmatpush1.msra.mxu0 0.0
    %1389 = vmatprep.subr.mxu0 0.0
    %1390 = vmatpush1.msra.mxu0 0.0
    %1391 = vmatprep.subr.mxu0 0.0
    %1392 = vmatpush1.msra.mxu0 %v29
    %1393 = vmatprep.subr.mxu0 0.0
    %1394 = vmatpush1.msra.mxu0 %v28
    %1395 = vmatprep.subr.mxu0 0.0
    %1396 = vmatpush1.msra.mxu0 %v27
    %1397 = vmatprep.subr.mxu0 0.0
    %1398 = vmatpush1.msra.mxu0 %v26
    %1399 = vmatprep.subr.mxu0 0.0
    %1400 = vmatpush2.msra.mxu0 0.0
    %1401 = vmatprep.subr.mxu0 0.0
    %1402 = vmatpush2.msra.mxu0 0.0
    %1403 = vmatprep.subr.mxu0 0.0
    %1404 = vmatpush2.msra.mxu0 0.0
    %1405 = vmatprep.subr.mxu0 0.0
    %1406 = vmatpush2.msra.mxu0 0.0
    %1407 = vmatprep.subr.mxu0 0.0
    %1408 = vmatpush2.msra.mxu0 0.0
    %1409 = vmatprep.subr.mxu0 0.0
    %1410 = vmatpush2.msra.mxu0 0.0
    %1411 = vmatprep.subr.mxu0 0.0
    %1412 = vmatpush2.msra.mxu0 0.0
    %1413 = vmatprep.subr.mxu0 0.0
    %1414 = vmatpush2.msra.mxu0 0.0
    %1415 = vmatprep.subr.mxu0 0.0
    %1416 = vmatpush2.msra.mxu0 0.0
    %1417 = vmatprep.subr.mxu0 0.0
    %1418 = vmatpush2.msra.mxu0 0.0
    %1419 = vmatprep.subr.mxu0 0.0
    %1420 = vmatpush2.msra.mxu0 0.0
    %1421 = vmatprep.subr.mxu0 0.0
    %1422 = vmatpush2.msra.mxu0 0.0
    %1423 = vmatprep.subr.mxu0 0.0
    %1424 = vmatpush2.msra.mxu0 0.0
    %1425 = vmatprep.subr.mxu0 0.0
    %1426 = vmatpush2.msra.mxu0 0.0
    %1427 = vmatprep.subr.mxu0 0.0
    %1428 = vmatpush2.msra.mxu0 0.0
    %1429 = vmatprep.subr.mxu0 0.0
    %1430 = vmatpush2.msra.mxu0 0.0
    %1431 = vmatprep.mubr.f32.mxu0 0.0
    %1432 = vmatmul.mubr.f32.gmra.mxu0 %v1365
    %v1433 = vpop.f32.mrf.mxu0
    %v1434 = vadd.f32 0.0, %v1433
    %v1435 = vpop.f32.mrf.mxu0
    %1436 = vdwg.mxu0
    %v1437 = vadd.f32 %v1133, %v1434
    %v1438 = vxor.u32 %v1437, 2147483648
    %v1439 = vmul.f32 %v1438, 1.442695
    %v1440 = vpow.pop %v1439
    %v1441 = vadd.f32 %v1440, 1.0
    %v1442 = vrcp.pop %v1441
    %v1443 = vmul.f32 1.0, %v1442
    %1445 = vrot.lane.b32.xlu0 %v1437, 32
    %v1446 = vpop.permute.xlu0 %1445
    %v1448 = vmul.f32 %v1443, %v1446
    %1450 = vrot.lane.b32.xlu0 %v1448, 64
    %v1451 = vpop.permute.xlu0 %1450
    %v1453 = vadd.f32 %v1437, %v1451
    %v1454 = vtanh.pop %v1453
    %v1455 = vsub.f32 1.0, %v1443
    %1457 = vrot.lane.b32.xlu0 %v1454, 96
    %v1458 = vpop.permute.xlu0 %1457
    %v1460 = vmul.f32 %v1455, %v1458
    %v1461 = vmul.f32 %v1443, %v1361
    %v1462 = vadd.f32 %v1460, %v1461
    %1464 = vrot.lane.b32.xlu0 %v1462, 96
    %v1465 = vpop.permute.xlu0 %1464
    %v1466 = vsel %vm1161, %v1465, 0
    %1468 = vmatprep.subr.mxu0 0.0
    %1469 = vmatpush1.msra.mxu0 0.0
    %1470 = vmatprep.subr.mxu0 0.0
    %1471 = vmatpush1.msra.mxu0 0.0
    %1472 = vmatprep.subr.mxu0 0.0
    %1473 = vmatpush1.msra.mxu0 0.0
    %1474 = vmatprep.subr.mxu0 0.0
    %1475 = vmatpush1.msra.mxu0 0.0
    %1476 = vmatprep.subr.mxu0 0.0
    %1477 = vmatpush1.msra.mxu0 0.0
    %1478 = vmatprep.subr.mxu0 0.0
    %1479 = vmatpush1.msra.mxu0 0.0
    %1480 = vmatprep.subr.mxu0 0.0
    %1481 = vmatpush1.msra.mxu0 0.0
    %1482 = vmatprep.subr.mxu0 0.0
    %1483 = vmatpush1.msra.mxu0 0.0
    %1484 = vmatprep.subr.mxu0 0.0
    %1485 = vmatpush1.msra.mxu0 0.0
    %1486 = vmatprep.subr.mxu0 0.0
    %1487 = vmatpush1.msra.mxu0 0.0
    %1488 = vmatprep.subr.mxu0 0.0
    %1489 = vmatpush1.msra.mxu0 0.0
    %1490 = vmatprep.subr.mxu0 0.0
    %1491 = vmatpush1.msra.mxu0 0.0
    %1492 = vmatprep.subr.mxu0 0.0
    %1493 = vmatpush1.msra.mxu0 %v29
    %1494 = vmatprep.subr.mxu0 0.0
    %1495 = vmatpush1.msra.mxu0 %v28
    %1496 = vmatprep.subr.mxu0 0.0
    %1497 = vmatpush1.msra.mxu0 %v27
    %1498 = vmatprep.subr.mxu0 0.0
    %1499 = vmatpush1.msra.mxu0 %v26
    %1500 = vmatprep.subr.mxu0 0.0
    %1501 = vmatpush2.msra.mxu0 0.0
    %1502 = vmatprep.subr.mxu0 0.0
    %1503 = vmatpush2.msra.mxu0 0.0
    %1504 = vmatprep.subr.mxu0 0.0
    %1505 = vmatpush2.msra.mxu0 0.0
    %1506 = vmatprep.subr.mxu0 0.0
    %1507 = vmatpush2.msra.mxu0 0.0
    %1508 = vmatprep.subr.mxu0 0.0
    %1509 = vmatpush2.msra.mxu0 0.0
    %1510 = vmatprep.subr.mxu0 0.0
    %1511 = vmatpush2.msra.mxu0 0.0
    %1512 = vmatprep.subr.mxu0 0.0
    %1513 = vmatpush2.msra.mxu0 0.0
    %1514 = vmatprep.subr.mxu0 0.0
    %1515 = vmatpush2.msra.mxu0 0.0
    %1516 = vmatprep.subr.mxu0 0.0
    %1517 = vmatpush2.msra.mxu0 0.0
    %1518 = vmatprep.subr.mxu0 0.0
    %1519 = vmatpush2.msra.mxu0 0.0
    %1520 = vmatprep.subr.mxu0 0.0
    %1521 = vmatpush2.msra.mxu0 0.0
    %1522 = vmatprep.subr.mxu0 0.0
    %1523 = vmatpush2.msra.mxu0 0.0
    %1524 = vmatprep.subr.mxu0 0.0
    %1525 = vmatpush2.msra.mxu0 0.0
    %1526 = vmatprep.subr.mxu0 0.0
    %1527 = vmatpush2.msra.mxu0 0.0
    %1528 = vmatprep.subr.mxu0 0.0
    %1529 = vmatpush2.msra.mxu0 0.0
    %1530 = vmatprep.subr.mxu0 0.0
    %1531 = vmatpush2.msra.mxu0 0.0
    %1532 = vmatprep.mubr.f32.mxu0 0.0
    %1533 = vmatmul.mubr.f32.gmra.mxu0 %v1466
    %v1534 = vpop.f32.mrf.mxu0
    %v1535 = vadd.f32 0.0, %v1534
    %v1536 = vpop.f32.mrf.mxu0
    %1537 = vdwg.mxu0
    %v1538 = vadd.f32 %v1138, %v1535
    %v1539 = vxor.u32 %v1538, 2147483648
    %v1540 = vmul.f32 %v1539, 1.442695
    %v1541 = vpow.pop %v1540
    %v1542 = vadd.f32 %v1541, 1.0
    %v1543 = vrcp.pop %v1542
    %v1544 = vmul.f32 1.0, %v1543
    %1546 = vrot.lane.b32.xlu0 %v1538, 32
    %v1547 = vpop.permute.xlu0 %1546
    %v1549 = vmul.f32 %v1544, %v1547
    %1551 = vrot.lane.b32.xlu0 %v1549, 64
    %v1552 = vpop.permute.xlu0 %1551
    %v1554 = vadd.f32 %v1538, %v1552
    %v1555 = vtanh.pop %v1554
    %v1556 = vsub.f32 1.0, %v1544
    %1558 = vrot.lane.b32.xlu0 %v1555, 96
    %v1559 = vpop.permute.xlu0 %1558
    %v1561 = vmul.f32 %v1556, %v1559
    %v1562 = vmul.f32 %v1544, %v1462
    %v1563 = vadd.f32 %v1561, %v1562
    %1565 = vrot.lane.b32.xlu0 %v1563, 96
    %v1566 = vpop.permute.xlu0 %1565
    %v1567 = vsel %vm1161, %v1566, 0
    %1569 = vmatprep.subr.mxu0 0.0
    %1570 = vmatpush1.msra.mxu0 0.0
    %1571 = vmatprep.subr.mxu0 0.0
    %1572 = vmatpush1.msra.mxu0 0.0
    %1573 = vmatprep.subr.mxu0 0.0
    %1574 = vmatpush1.msra.mxu0 0.0
    %1575 = vmatprep.subr.mxu0 0.0
    %1576 = vmatpush1.msra.mxu0 0.0
    %1577 = vmatprep.subr.mxu0 0.0
    %1578 = vmatpush1.msra.mxu0 0.0
    %1579 = vmatprep.subr.mxu0 0.0
    %1580 = vmatpush1.msra.mxu0 0.0
    %1581 = vmatprep.subr.mxu0 0.0
    %1582 = vmatpush1.msra.mxu0 0.0
    %1583 = vmatprep.subr.mxu0 0.0
    %1584 = vmatpush1.msra.mxu0 0.0
    %1585 = vmatprep.subr.mxu0 0.0
    %1586 = vmatpush1.msra.mxu0 0.0
    %1587 = vmatprep.subr.mxu0 0.0
    %1588 = vmatpush1.msra.mxu0 0.0
    %1589 = vmatprep.subr.mxu0 0.0
    %1590 = vmatpush1.msra.mxu0 0.0
    %1591 = vmatprep.subr.mxu0 0.0
    %1592 = vmatpush1.msra.mxu0 0.0
    %1593 = vmatprep.subr.mxu0 0.0
    %1594 = vmatpush1.msra.mxu0 %v29
    %1595 = vmatprep.subr.mxu0 0.0
    %1596 = vmatpush1.msra.mxu0 %v28
    %1597 = vmatprep.subr.mxu0 0.0
    %1598 = vmatpush1.msra.mxu0 %v27
    %1599 = vmatprep.subr.mxu0 0.0
    %1600 = vmatpush1.msra.mxu0 %v26
    %1601 = vmatprep.subr.mxu0 0.0
    %1602 = vmatpush2.msra.mxu0 0.0
    %1603 = vmatprep.subr.mxu0 0.0
    %1604 = vmatpush2.msra.mxu0 0.0
    %1605 = vmatprep.subr.mxu0 0.0
    %1606 = vmatpush2.msra.mxu0 0.0
    %1607 = vmatprep.subr.mxu0 0.0
    %1608 = vmatpush2.msra.mxu0 0.0
    %1609 = vmatprep.subr.mxu0 0.0
    %1610 = vmatpush2.msra.mxu0 0.0
    %1611 = vmatprep.subr.mxu0 0.0
    %1612 = vmatpush2.msra.mxu0 0.0
    %1613 = vmatprep.subr.mxu0 0.0
    %1614 = vmatpush2.msra.mxu0 0.0
    %1615 = vmatprep.subr.mxu0 0.0
    %1616 = vmatpush2.msra.mxu0 0.0
    %1617 = vmatprep.subr.mxu0 0.0
    %1618 = vmatpush2.msra.mxu0 0.0
    %1619 = vmatprep.subr.mxu0 0.0
    %1620 = vmatpush2.msra.mxu0 0.0
    %1621 = vmatprep.subr.mxu0 0.0
    %1622 = vmatpush2.msra.mxu0 0.0
    %1623 = vmatprep.subr.mxu0 0.0
    %1624 = vmatpush2.msra.mxu0 0.0
    %1625 = vmatprep.subr.mxu0 0.0
    %1626 = vmatpush2.msra.mxu0 0.0
    %1627 = vmatprep.subr.mxu0 0.0
    %1628 = vmatpush2.msra.mxu0 0.0
    %1629 = vmatprep.subr.mxu0 0.0
    %1630 = vmatpush2.msra.mxu0 0.0
    %1631 = vmatprep.subr.mxu0 0.0
    %1632 = vmatpush2.msra.mxu0 0.0
    %1633 = vmatprep.mubr.f32.mxu0 0.0
    %1634 = vmatmul.mubr.f32.gmra.mxu0 %v1567
    %v1635 = vpop.f32.mrf.mxu0
    %v1636 = vadd.f32 0.0, %v1635
    %v1637 = vpop.f32.mrf.mxu0
    %1638 = vdwg.mxu0
    %v1639 = vadd.f32 %v1143, %v1636
    %v1640 = vxor.u32 %v1639, 2147483648
    %v1641 = vmul.f32 %v1640, 1.442695
    %v1642 = vpow.pop %v1641
    %v1643 = vadd.f32 %v1642, 1.0
    %v1644 = vrcp.pop %v1643
    %v1645 = vmul.f32 1.0, %v1644
    %1647 = vrot.lane.b32.xlu0 %v1639, 32
    %v1648 = vpop.permute.xlu0 %1647
    %v1650 = vmul.f32 %v1645, %v1648
    %1652 = vrot.lane.b32.xlu0 %v1650, 64
    %v1653 = vpop.permute.xlu0 %1652
    %v1655 = vadd.f32 %v1639, %v1653
    %v1656 = vtanh.pop %v1655
    %v1657 = vsub.f32 1.0, %v1645
    %1659 = vrot.lane.b32.xlu0 %v1656, 96
    %v1660 = vpop.permute.xlu0 %1659
    %v1662 = vmul.f32 %v1657, %v1660
    %v1663 = vmul.f32 %v1645, %v1563
    %v1664 = vadd.f32 %v1662, %v1663
    %1666 = vrot.lane.b32.xlu0 %v1664, 96
    %v1667 = vpop.permute.xlu0 %1666
    %v1668 = vsel %vm1161, %v1667, 0
    %1670 = vmatprep.subr.mxu0 0.0
    %1671 = vmatpush1.msra.mxu0 0.0
    %1672 = vmatprep.subr.mxu0 0.0
    %1673 = vmatpush1.msra.mxu0 0.0
    %1674 = vmatprep.subr.mxu0 0.0
    %1675 = vmatpush1.msra.mxu0 0.0
    %1676 = vmatprep.subr.mxu0 0.0
    %1677 = vmatpush1.msra.mxu0 0.0
    %1678 = vmatprep.subr.mxu0 0.0
    %1679 = vmatpush1.msra.mxu0 0.0
    %1680 = vmatprep.subr.mxu0 0.0
    %1681 = vmatpush1.msra.mxu0 0.0
    %1682 = vmatprep.subr.mxu0 0.0
    %1683 = vmatpush1.msra.mxu0 0.0
    %1684 = vmatprep.subr.mxu0 0.0
    %1685 = vmatpush1.msra.mxu0 0.0
    %1686 = vmatprep.subr.mxu0 0.0
    %1687 = vmatpush1.msra.mxu0 0.0
    %1688 = vmatprep.subr.mxu0 0.0
    %1689 = vmatpush1.msra.mxu0 0.0
    %1690 = vmatprep.subr.mxu0 0.0
    %1691 = vmatpush1.msra.mxu0 0.0
    %1692 = vmatprep.subr.mxu0 0.0
    %1693 = vmatpush1.msra.mxu0 0.0
    %1694 = vmatprep.subr.mxu0 0.0
    %1695 = vmatpush1.msra.mxu0 %v29
    %1696 = vmatprep.subr.mxu0 0.0
    %1697 = vmatpush1.msra.mxu0 %v28
    %1698 = vmatprep.subr.mxu0 0.0
    %1699 = vmatpush1.msra.mxu0 %v27
    %1700 = vmatprep.subr.mxu0 0.0
    %1701 = vmatpush1.msra.mxu0 %v26
    %1702 = vmatprep.subr.mxu0 0.0
    %1703 = vmatpush2.msra.mxu0 0.0
    %1704 = vmatprep.subr.mxu0 0.0
    %1705 = vmatpush2.msra.mxu0 0.0
    %1706 = vmatprep.subr.mxu0 0.0
    %1707 = vmatpush2.msra.mxu0 0.0
    %1708 = vmatprep.subr.mxu0 0.0
    %1709 = vmatpush2.msra.mxu0 0.0
    %1710 = vmatprep.subr.mxu0 0.0
    %1711 = vmatpush2.msra.mxu0 0.0
    %1712 = vmatprep.subr.mxu0 0.0
    %1713 = vmatpush2.msra.mxu0 0.0
    %1714 = vmatprep.subr.mxu0 0.0
    %1715 = vmatpush2.msra.mxu0 0.0
    %1716 = vmatprep.subr.mxu0 0.0
    %1717 = vmatpush2.msra.mxu0 0.0
    %1718 = vmatprep.subr.mxu0 0.0
    %1719 = vmatpush2.msra.mxu0 0.0
    %1720 = vmatprep.subr.mxu0 0.0
    %1721 = vmatpush2.msra.mxu0 0.0
    %1722 = vmatprep.subr.mxu0 0.0
    %1723 = vmatpush2.msra.mxu0 0.0
    %1724 = vmatprep.subr.mxu0 0.0
    %1725 = vmatpush2.msra.mxu0 0.0
    %1726 = vmatprep.subr.mxu0 0.0
    %1727 = vmatpush2.msra.mxu0 0.0
    %1728 = vmatprep.subr.mxu0 0.0
    %1729 = vmatpush2.msra.mxu0 0.0
    %1730 = vmatprep.subr.mxu0 0.0
    %1731 = vmatpush2.msra.mxu0 0.0
    %1732 = vmatprep.subr.mxu0 0.0
    %1733 = vmatpush2.msra.mxu0 0.0
    %1734 = vmatprep.mubr.f32.mxu0 0.0
    %1735 = vmatmul.mubr.f32.gmra.mxu0 %v1668
    %v1736 = vpop.f32.mrf.mxu0
    %v1737 = vadd.f32 0.0, %v1736
    %v1738 = vpop.f32.mrf.mxu0
    %1739 = vdwg.mxu0
    %v1740 = vadd.f32 %v1148, %v1737
    %v1741 = vxor.u32 %v1740, 2147483648
    %v1742 = vmul.f32 %v1741, 1.442695
    %v1743 = vpow.pop %v1742
    %v1744 = vadd.f32 %v1743, 1.0
    %v1745 = vrcp.pop %v1744
    %v1746 = vmul.f32 1.0, %v1745
    %1748 = vrot.lane.b32.xlu0 %v1740, 32
    %v1749 = vpop.permute.xlu0 %1748
    %v1751 = vmul.f32 %v1746, %v1749
    %1753 = vrot.lane.b32.xlu0 %v1751, 64
    %v1754 = vpop.permute.xlu0 %1753
    %v1756 = vadd.f32 %v1740, %v1754
    %v1757 = vtanh.pop %v1756
    %v1758 = vsub.f32 1.0, %v1746
    %1760 = vrot.lane.b32.xlu0 %v1757, 96
    %v1761 = vpop.permute.xlu0 %1760
    %v1763 = vmul.f32 %v1758, %v1761
    %v1764 = vmul.f32 %v1746, %v1664
    %v1765 = vadd.f32 %v1763, %v1764
    %1767 = vrot.lane.b32.xlu0 %v1765, 96
    %v1768 = vpop.permute.xlu0 %1767
    %v1769 = vsel %vm1161, %v1768, 0
    %1771 = vmatprep.subr.mxu0 0.0
    %1772 = vmatpush1.msra.mxu0 0.0
    %1773 = vmatprep.subr.mxu0 0.0
    %1774 = vmatpush1.msra.mxu0 0.0
    %1775 = vmatprep.subr.mxu0 0.0
    %1776 = vmatpush1.msra.mxu0 0.0
    %1777 = vmatprep.subr.mxu0 0.0
    %1778 = vmatpush1.msra.mxu0 0.0
    %1779 = vmatprep.subr.mxu0 0.0
    %1780 = vmatpush1.msra.mxu0 0.0
    %1781 = vmatprep.subr.mxu0 0.0
    %1782 = vmatpush1.msra.mxu0 0.0
    %1783 = vmatprep.subr.mxu0 0.0
    %1784 = vmatpush1.msra.mxu0 0.0
    %1785 = vmatprep.subr.mxu0 0.0
    %1786 = vmatpush1.msra.mxu0 0.0
    %1787 = vmatprep.subr.mxu0 0.0
    %1788 = vmatpush1.msra.mxu0 0.0
    %1789 = vmatprep.subr.mxu0 0.0
    %1790 = vmatpush1.msra.mxu0 0.0
    %1791 = vmatprep.subr.mxu0 0.0
    %1792 = vmatpush1.msra.mxu0 0.0
    %1793 = vmatprep.subr.mxu0 0.0
    %1794 = vmatpush1.msra.mxu0 0.0
    %1795 = vmatprep.subr.mxu0 0.0
    %1796 = vmatpush1.msra.mxu0 %v29
    %1797 = vmatprep.subr.mxu0 0.0
    %1798 = vmatpush1.msra.mxu0 %v28
    %1799 = vmatprep.subr.mxu0 0.0
    %1800 = vmatpush1.msra.mxu0 %v27
    %1801 = vmatprep.subr.mxu0 0.0
    %1802 = vmatpush1.msra.mxu0 %v26
    %1803 = vmatprep.subr.mxu0 0.0
    %1804 = vmatpush2.msra.mxu0 0.0
    %1805 = vmatprep.subr.mxu0 0.0
    %1806 = vmatpush2.msra.mxu0 0.0
    %1807 = vmatprep.subr.mxu0 0.0
    %1808 = vmatpush2.msra.mxu0 0.0
    %1809 = vmatprep.subr.mxu0 0.0
    %1810 = vmatpush2.msra.mxu0 0.0
    %1811 = vmatprep.subr.mxu0 0.0
    %1812 = vmatpush2.msra.mxu0 0.0
    %1813 = vmatprep.subr.mxu0 0.0
    %1814 = vmatpush2.msra.mxu0 0.0
    %1815 = vmatprep.subr.mxu0 0.0
    %1816 = vmatpush2.msra.mxu0 0.0
    %1817 = vmatprep.subr.mxu0 0.0
    %1818 = vmatpush2.msra.mxu0 0.0
    %1819 = vmatprep.subr.mxu0 0.0
    %1820 = vmatpush2.msra.mxu0 0.0
    %1821 = vmatprep.subr.mxu0 0.0
    %1822 = vmatpush2.msra.mxu0 0.0
    %1823 = vmatprep.subr.mxu0 0.0
    %1824 = vmatpush2.msra.mxu0 0.0
    %1825 = vmatprep.subr.mxu0 0.0
    %1826 = vmatpush2.msra.mxu0 0.0
    %1827 = vmatprep.subr.mxu0 0.0
    %1828 = vmatpush2.msra.mxu0 0.0
    %1829 = vmatprep.subr.mxu0 0.0
    %1830 = vmatpush2.msra.mxu0 0.0
    %1831 = vmatprep.subr.mxu0 0.0
    %1832 = vmatpush2.msra.mxu0 0.0
    %1833 = vmatprep.subr.mxu0 0.0
    %1834 = vmatpush2.msra.mxu0 0.0
    %1835 = vmatprep.mubr.f32.mxu0 0.0
    %1836 = vmatmul.mubr.f32.gmra.mxu0 %v1769
    %v1837 = vpop.f32.mrf.mxu0
    %v1838 = vadd.f32 0.0, %v1837
    %v1839 = vpop.f32.mrf.mxu0
    %1840 = vdwg.mxu0
    %v1841 = vadd.f32 %v1153, %v1838
    %v1842 = vxor.u32 %v1841, 2147483648
    %v1843 = vmul.f32 %v1842, 1.442695
    %v1844 = vpow.pop %v1843
    %v1845 = vadd.f32 %v1844, 1.0
    %v1846 = vrcp.pop %v1845
    %v1847 = vmul.f32 1.0, %v1846
    %1849 = vrot.lane.b32.xlu0 %v1841, 32
    %v1850 = vpop.permute.xlu0 %1849
    %v1852 = vmul.f32 %v1847, %v1850
    %1854 = vrot.lane.b32.xlu0 %v1852, 64
    %v1855 = vpop.permute.xlu0 %1854
    %v1857 = vadd.f32 %v1841, %v1855
    %v1858 = vtanh.pop %v1857
    %v1859 = vsub.f32 1.0, %v1847
    %1861 = vrot.lane.b32.xlu0 %v1858, 96
    %v1862 = vpop.permute.xlu0 %1861
    %v1864 = vmul.f32 %v1859, %v1862
    %v1865 = vmul.f32 %v1847, %v1765
    %v1866 = vadd.f32 %v1864, %v1865
    %1868 = vrot.lane.b32.xlu0 %v1866, 96
    %v1869 = vpop.permute.xlu0 %1868
    %v1870 = vsel %vm1161, %v1869, 0
    %1872 = vmatprep.subr.mxu0 0.0
    %1873 = vmatpush1.msra.mxu0 0.0
    %1874 = vmatprep.subr.mxu0 0.0
    %1875 = vmatpush1.msra.mxu0 0.0
    %1876 = vmatprep.subr.mxu0 0.0
    %1877 = vmatpush1.msra.mxu0 0.0
    %1878 = vmatprep.subr.mxu0 0.0
    %1879 = vmatpush1.msra.mxu0 0.0
    %1880 = vmatprep.subr.mxu0 0.0
    %1881 = vmatpush1.msra.mxu0 0.0
    %1882 = vmatprep.subr.mxu0 0.0
    %1883 = vmatpush1.msra.mxu0 0.0
    %1884 = vmatprep.subr.mxu0 0.0
    %1885 = vmatpush1.msra.mxu0 0.0
    %1886 = vmatprep.subr.mxu0 0.0
    %1887 = vmatpush1.msra.mxu0 0.0
    %1888 = vmatprep.subr.mxu0 0.0
    %1889 = vmatpush1.msra.mxu0 0.0
    %1890 = vmatprep.subr.mxu0 0.0
    %1891 = vmatpush1.msra.mxu0 0.0
    %1892 = vmatprep.subr.mxu0 0.0
    %1893 = vmatpush1.msra.mxu0 0.0
    %1894 = vmatprep.subr.mxu0 0.0
    %1895 = vmatpush1.msra.mxu0 0.0
    %1896 = vmatprep.subr.mxu0 0.0
    %1897 = vmatpush1.msra.mxu0 %v29
    %1898 = vmatprep.subr.mxu0 0.0
    %1899 = vmatpush1.msra.mxu0 %v28
    %1900 = vmatprep.subr.mxu0 0.0
    %1901 = vmatpush1.msra.mxu0 %v27
    %1902 = vmatprep.subr.mxu0 0.0
    %1903 = vmatpush1.msra.mxu0 %v26
    %1904 = vmatprep.subr.mxu0 0.0
    %1905 = vmatpush2.msra.mxu0 0.0
    %1906 = vmatprep.subr.mxu0 0.0
    %1907 = vmatpush2.msra.mxu0 0.0
    %1908 = vmatprep.subr.mxu0 0.0
    %1909 = vmatpush2.msra.mxu0 0.0
    %1910 = vmatprep.subr.mxu0 0.0
    %1911 = vmatpush2.msra.mxu0 0.0
    %1912 = vmatprep.subr.mxu0 0.0
    %1913 = vmatpush2.msra.mxu0 0.0
    %1914 = vmatprep.subr.mxu0 0.0
    %1915 = vmatpush2.msra.mxu0 0.0
    %1916 = vmatprep.subr.mxu0 0.0
    %1917 = vmatpush2.msra.mxu0 0.0
    %1918 = vmatprep.subr.mxu0 0.0
    %1919 = vmatpush2.msra.mxu0 0.0
    %1920 = vmatprep.subr.mxu0 0.0
    %1921 = vmatpush2.msra.mxu0 0.0
    %1922 = vmatprep.subr.mxu0 0.0
    %1923 = vmatpush2.msra.mxu0 0.0
    %1924 = vmatprep.subr.mxu0 0.0
    %1925 = vmatpush2.msra.mxu0 0.0
    %1926 = vmatprep.subr.mxu0 0.0
    %1927 = vmatpush2.msra.mxu0 0.0
    %1928 = vmatprep.subr.mxu0 0.0
    %1929 = vmatpush2.msra.mxu0 0.0
    %1930 = vmatprep.subr.mxu0 0.0
    %1931 = vmatpush2.msra.mxu0 0.0
    %1932 = vmatprep.subr.mxu0 0.0
    %1933 = vmatpush2.msra.mxu0 0.0
    %1934 = vmatprep.subr.mxu0 0.0
    %1935 = vmatpush2.msra.mxu0 0.0
    %1936 = vmatprep.mubr.f32.mxu0 0.0
    %1937 = vmatmul.mubr.f32.gmra.mxu0 %v1870
    %v1938 = vpop.f32.mrf.mxu0
    %v1939 = vadd.f32 0.0, %v1938
    %v1940 = vpop.f32.mrf.mxu0
    %1941 = vdwg.mxu0
    %v1942 = vadd.f32 %v1158, %v1939
    %v1943 = vxor.u32 %v1942, 2147483648
    %v1944 = vmul.f32 %v1943, 1.442695
    %v1945 = vpow.pop %v1944
    %v1946 = vadd.f32 %v1945, 1.0
    %v1947 = vrcp.pop %v1946
    %v1948 = vmul.f32 1.0, %v1947
    %1950 = vrot.lane.b32.xlu0 %v1942, 32
    %v1951 = vpop.permute.xlu0 %1950
    %v1953 = vmul.f32 %v1948, %v1951
    %1955 = vrot.lane.b32.xlu0 %v1953, 64
    %v1956 = vpop.permute.xlu0 %1955
    %v1958 = vadd.f32 %v1942, %v1956
    %v1959 = vtanh.pop %v1958
    %v1960 = vsub.f32 1.0, %v1948
    %1962 = vrot.lane.b32.xlu0 %v1959, 96
    %v1963 = vpop.permute.xlu0 %1962
    %v1965 = vmul.f32 %v1960, %v1963
    %v1966 = vmul.f32 %v1948, %v1866
    %v1967 = vadd.f32 %v1965, %v1966
    %v1968 = vlaneseq
    %v1969 = vand.u32 %v1968, 127
    %vm1970 = vcmp.eq.s32.totalorder %v1969, 0
    %v1971 = vsel %vm1970, 1, 0
    %v1972 = vcvt.s32.f32 %v1971
    %1974 = vrot.lane.b32.xlu0 %v1967, 104
    %v1975 = vpop.permute.xlu0 %1974
    %1978 = vrot.lane.b32.xlu0 %v1972, 40
    %v1979 = vpop.permute.xlu0 %1978
    %v1981 = vsel %vm1031, %v1026, %v1975
    %vm1982 = vcmask 326656
    %v1983 = vsel %vm1982, %v1981, %v1979
    %vm1984 = vcmask 392192
    %v1986 = vsel %vm1984, %v1983, 0
    %1988 = vmatprep.subr.mxu0 0.0
    %1989 = vmatpush1.msra.mxu0 0.0
    %1990 = vmatprep.subr.mxu0 0.0
    %1991 = vmatpush1.msra.mxu0 0.0
    %1992 = vmatprep.subr.mxu0 0.0
    %1993 = vmatpush1.msra.mxu0 0.0
    %1994 = vmatprep.subr.mxu0 0.0
    %1995 = vmatpush1.msra.mxu0 0.0
    %1996 = vmatprep.subr.mxu0 0.0
    %1997 = vmatpush1.msra.mxu0 0.0
    %1998 = vmatprep.subr.mxu0 0.0
    %1999 = vmatpush1.msra.mxu0 0.0
    %2000 = vmatprep.subr.mxu0 0.0
    %2001 = vmatpush1.msra.mxu0 0.0
    %2002 = vmatprep.subr.mxu0 0.0
    %2003 = vmatpush1.msra.mxu0 0.0
    %2004 = vmatprep.subr.mxu0 0.0
    %2005 = vmatpush1.msra.mxu0 0.0
    %2006 = vmatprep.subr.mxu0 0.0
    %2007 = vmatpush1.msra.mxu0 0.0
    %2008 = vmatprep.subr.mxu0 0.0
    %2009 = vmatpush1.msra.mxu0 %v36
    %2010 = vmatprep.subr.mxu0 0.0
    %2011 = vmatpush1.msra.mxu0 %v35
    %2012 = vmatprep.subr.mxu0 0.0
    %2013 = vmatpush1.msra.mxu0 %v34
    %2014 = vmatprep.subr.mxu0 0.0
    %2015 = vmatpush1.msra.mxu0 %v33
    %2016 = vmatprep.subr.mxu0 0.0
    %2017 = vmatpush1.msra.mxu0 %v32
    %2018 = vmatprep.subr.mxu0 0.0
    %2019 = vmatpush1.msra.mxu0 %v31
    %2020 = vmatprep.subr.mxu0 0.0
    %2021 = vmatpush2.msra.mxu0 0.0
    %2022 = vmatprep.subr.mxu0 0.0
    %2023 = vmatpush2.msra.mxu0 0.0
    %2024 = vmatprep.subr.mxu0 0.0
    %2025 = vmatpush2.msra.mxu0 0.0
    %2026 = vmatprep.subr.mxu0 0.0
    %2027 = vmatpush2.msra.mxu0 0.0
    %2028 = vmatprep.subr.mxu0 0.0
    %2029 = vmatpush2.msra.mxu0 0.0
    %2030 = vmatprep.subr.mxu0 0.0
    %2031 = vmatpush2.msra.mxu0 0.0
    %2032 = vmatprep.subr.mxu0 0.0
    %2033 = vmatpush2.msra.mxu0 0.0
    %2034 = vmatprep.subr.mxu0 0.0
    %2035 = vmatpush2.msra.mxu0 0.0
    %2036 = vmatprep.subr.mxu0 0.0
    %2037 = vmatpush2.msra.mxu0 0.0
    %2038 = vmatprep.subr.mxu0 0.0
    %2039 = vmatpush2.msra.mxu0 0.0
    %2040 = vmatprep.subr.mxu0 0.0
    %2041 = vmatpush2.msra.mxu0 0.0
    %2042 = vmatprep.subr.mxu0 0.0
    %2043 = vmatpush2.msra.mxu0 0.0
    %2044 = vmatprep.subr.mxu0 0.0
    %2045 = vmatpush2.msra.mxu0 0.0
    %2046 = vmatprep.subr.mxu0 0.0
    %2047 = vmatpush2.msra.mxu0 0.0
    %2048 = vmatprep.subr.mxu0 0.0
    %2049 = vmatpush2.msra.mxu0 0.0
    %2050 = vmatprep.subr.mxu0 0.0
    %2051 = vmatpush2.msra.mxu0 0.0
    %2052 = vmatprep.mubr.f32.mxu0 0.0
    %2053 = vmatmul.mubr.f32.gmra.mxu0 %v1986
    %v2054 = vpop.f32.mrf.mxu0
    %v2055 = vadd.f32 0.0, %v2054
    %v2056 = vpop.f32.mrf.mxu0
    %2057 = vdwg.mxu0
    %v2058 = vxor.u32 %v2055, 2147483648
    %v2059 = vmul.f32 %v2058, 1.442695
    %v2060 = vpow.pop %v2059
    %v2061 = vadd.f32 %v2060, 1.0
    %v2062 = vrcp.pop %v2061
    %v2063 = vmul.f32 1.0, %v2062
    %2065 = vrot.lane.b32.xlu0 %v2055, 32
    %v2066 = vpop.permute.xlu0 %2065
    %v2068 = vmul.f32 %v2063, %v2066
    %2070 = vrot.lane.b32.xlu0 %v2068, 64
    %v2071 = vpop.permute.xlu0 %2070
    %v2073 = vadd.f32 %v2055, %v2071
    %v2074 = vtanh.pop %v2073
    %v2075 = vsub.f32 1.0, %v2063
    %2077 = vrot.lane.b32.xlu0 %v2074, 96
    %v2078 = vpop.permute.xlu0 %2077
    %v2080 = vmul.f32 %v2075, %v2078
    %v2081 = vmul.f32 %v2063, %v1967
    %v2082 = vadd.f32 %v2080, %v2081
    %v2083 = vlaneseq
    %v2084 = vshrl.u32 %v2083, 7
    %v2085 = vsub.s32 0, %v2084
    %v2086 = vrot.slane %v48, %v2085
    %2088 = vrot.lane.b32.xlu0 %v2082, 96
    %v2089 = vpop.permute.xlu0 %2088
    %v2090 = vsel %vm1161, %v2089, 0
    %2092 = vmatprep.subr.mxu0 0.0
    %2093 = vmatpush1.msra.mxu0 0.0
    %2094 = vmatprep.subr.mxu0 0.0
    %2095 = vmatpush1.msra.mxu0 0.0
    %2096 = vmatprep.subr.mxu0 0.0
    %2097 = vmatpush1.msra.mxu0 0.0
    %2098 = vmatprep.subr.mxu0 0.0
    %2099 = vmatpush1.msra.mxu0 0.0
    %2100 = vmatprep.subr.mxu0 0.0
    %2101 = vmatpush1.msra.mxu0 0.0
    %2102 = vmatprep.subr.mxu0 0.0
    %2103 = vmatpush1.msra.mxu0 0.0
    %2104 = vmatprep.subr.mxu0 0.0
    %2105 = vmatpush1.msra.mxu0 0.0
    %2106 = vmatprep.subr.mxu0 0.0
    %2107 = vmatpush1.msra.mxu0 0.0
    %2108 = vmatprep.subr.mxu0 0.0
    %2109 = vmatpush1.msra.mxu0 0.0
    %2110 = vmatprep.subr.mxu0 0.0
    %2111 = vmatpush1.msra.mxu0 0.0
    %2112 = vmatprep.subr.mxu0 0.0
    %2113 = vmatpush1.msra.mxu0 0.0
    %2114 = vmatprep.subr.mxu0 0.0
    %2115 = vmatpush1.msra.mxu0 0.0
    %2116 = vmatprep.subr.mxu0 0.0
    %2117 = vmatpush1.msra.mxu0 %v47
    %2118 = vmatprep.subr.mxu0 0.0
    %2119 = vmatpush1.msra.mxu0 %v46
    %2120 = vmatprep.subr.mxu0 0.0
    %2121 = vmatpush1.msra.mxu0 %v45
    %2122 = vmatprep.subr.mxu0 0.0
    %2123 = vmatpush1.msra.mxu0 %v44
    %2124 = vmatprep.subr.mxu0 0.0
    %2125 = vmatpush2.msra.mxu0 0.0
    %2126 = vmatprep.subr.mxu0 0.0
    %2127 = vmatpush2.msra.mxu0 0.0
    %2128 = vmatprep.subr.mxu0 0.0
    %2129 = vmatpush2.msra.mxu0 0.0
    %2130 = vmatprep.subr.mxu0 0.0
    %2131 = vmatpush2.msra.mxu0 0.0
    %2132 = vmatprep.subr.mxu0 0.0
    %2133 = vmatpush2.msra.mxu0 0.0
    %2134 = vmatprep.subr.mxu0 0.0
    %2135 = vmatpush2.msra.mxu0 0.0
    %2136 = vmatprep.subr.mxu0 0.0
    %2137 = vmatpush2.msra.mxu0 0.0
    %2138 = vmatprep.subr.mxu0 0.0
    %2139 = vmatpush2.msra.mxu0 0.0
    %2140 = vmatprep.subr.mxu0 0.0
    %2141 = vmatpush2.msra.mxu0 0.0
    %2142 = vmatprep.subr.mxu0 0.0
    %2143 = vmatpush2.msra.mxu0 0.0
    %2144 = vmatprep.subr.mxu0 0.0
    %2145 = vmatpush2.msra.mxu0 0.0
    %2146 = vmatprep.subr.mxu0 0.0
    %2147 = vmatpush2.msra.mxu0 0.0
    %2148 = vmatprep.subr.mxu0 0.0
    %2149 = vmatpush2.msra.mxu0 0.0
    %2150 = vmatprep.subr.mxu0 0.0
    %2151 = vmatpush2.msra.mxu0 0.0
    %2152 = vmatprep.subr.mxu0 0.0
    %2153 = vmatpush2.msra.mxu0 0.0
    %2154 = vmatprep.subr.mxu0 0.0
    %2155 = vmatpush2.msra.mxu0 0.0
    %2156 = vmatprep.mubr.f32.mxu0 0.0
    %2157 = vmatmul.mubr.f32.gmra.mxu0 %v2090
    %v2158 = vpop.f32.mrf.mxu0
    %v2159 = vadd.f32 %v2086, %v2158
    %v2160 = vpop.f32.mrf.mxu0
    %2161 = vdwg.mxu0
    %v2162 = vand.u32 2147483647, %v2159
    %vm2163 = vcmp.le.f32.partialorder %v2162, 0.7853982
    %vm2164 = vcmp.lt.s32.totalorder %v2159, 0
    %v2165 = vand.u32 %v2159, 2139095040
    %v2166 = vshrl.u32 %v2165, 23
    %v2167 = vsub.s32 %v2166, 127
    %v2168 = vand.u32 2147483647, %v2159
    %v2169 = vand.u32 %v2168, 8388607
    %v2170 = vor.u32 %v2169, 8388608
    %v2171 = vsub.s32 0, %v2170
    %v2172 = vadd.s32 %v2167, 1
    %vm2173 = vcmp.gt.s32.totalorder %v2172, 0
    %v2174 = vsel %vm2173, %v2172, 0
    %v2175 = vshrl.u32 %v2174, 5
    %v2176 = vand.u32 %v2174, 31
    %v2177 = vsub.s32 32, %v2176
    %v2178 = vshrl.u32 683565275, %v2177
    %v2179 = vshll.u32 683565275, %v2176
    %v2180 = vshrl.u32 2475754826, %v2177
    %v2181 = vor.u32 %v2179, %v2180
    %v2182 = vshll.u32 2475754826, %v2176
    %v2183 = vshrl.u32 2131351028, %v2177
    %v2184 = vor.u32 %v2182, %v2183
    %v2185 = vshll.u32 2131351028, %v2176
    %v2186 = vshrl.u32 2102212464, %v2177
    %v2187 = vor.u32 %v2185, %v2186
    %v2188 = vshll.u32 2102212464, %v2176
    %v2189 = vshrl.u32 920167782, %v2177
    %v2190 = vor.u32 %v2188, %v2189
    %v2191 = vshll.u32 920167782, %v2176
    %v2192 = vshrl.u32 1326507024, %v2177
    %v2193 = vor.u32 %v2191, %v2192
    %vm2194 = vcmp.lt.s32.totalorder %v2175, 1
    %vm2195 = vcmp.lt.s32.totalorder %v2175, 2
    %vm2196 = vcmp.lt.s32.totalorder %v2175, 3
    %vm2197 = vcmp.lt.s32.totalorder %v2175, 4
    %v2198 = vsel %vm2194, %v2178, %v2181
    %v2199 = vsel %vm2197, %v2187, 2102212464
    %v2200 = vsel %vm2196, %v2184, %v2199
    %v2201 = vsel %vm2195, %v2198, %v2200
    %v2202 = vsel %vm2194, %v2181, %v2184
    %v2203 = vsel %vm2197, %v2190, 920167782
    %v2204 = vsel %vm2196, %v2187, %v2203
    %v2205 = vsel %vm2195, %v2202, %v2204
    %v2206 = vsel %vm2194, %v2184, %v2187
    %v2207 = vsel %vm2197, %v2193, 1326507024
    %v2208 = vsel %vm2196, %v2190, %v2207
    %v2209 = vsel %vm2195, %v2206, %v2208
    %v2210 = vshll.u32 %v2170, 8
    %v2211 = vmul.u32.u64.compose %v2210, %v2209
    %v2212 = vextract.low.u32 %v2211
    %v2213 = vextract.high.u32 %v2211
    %v2214 = vmul.u32.u64.compose %v2210, %v2205
    %v2215 = vextract.low.u32 %v2214
    %v2216 = vextract.high.u32 %v2214
    %v2217 = vmul.u32 %v2210, %v2201
    %v2218 = vadd.s32 %v2213, %v2215
    %vm2219 = vc.u32 %v2213, %v2215
    %v2220 = vadd.s32 %v2216, 1
    %v2221 = vsel %vm2219, %v2220, %v2216
    %v2222 = vadd.s32 %v2217, %v2221
    %v2223 = vadd.s32 %v2222, 536870912
    %v2224 = vshrl.u32 %v2223, 30
    %v2225 = vshll.u32 %v2224, 30
    %v2226 = vsub.s32 %v2222, %v2225
    %vm2227 = vcmp.lt.s32.totalorder %v2226, 0
    %v2228 = vsub.s32 0, %v2226
    %v2229 = vsel %vm2227, %v2228, %v2226
    %v2230 = vclz %v2229
    %v2231 = vsub.s32 %v2230, 2
    %vm2232 = vcmp.gt.s32.totalorder 0, %v2231
    %v2233 = vsel %vm2232, 0, %v2231
    %v2234 = vsub.s32 32, %v2233
    %v2235 = vshll.u32 %v2226, %v2233
    %v2236 = vshrl.u32 %v2218, %v2234
    %v2237 = vor.u32 %v2235, %v2236
    %v2238 = vsub.s32 4294967266, %v2233
    %v2239 = vadd.s32 %v2238, 127
    %v2240 = vshll.u32 %v2239, 23
    %v2241 = vor.u32 4788187, %v2240
    %v2242 = vand.u32 2147483647, %v2241
    %v2244 = vcvt.s32.f32 %v2237
    %v2245 = vmul.f32 %v2244, %v2242
    %v2246 = vxor.u32 %v2245, 2147483648
    %v2247 = vsel %vm2164, %v2246, %v2245
    %v2248 = vsub.s32 4, %v2224
    %v2249 = vsel %vm2164, %v2248, %v2224
    %v2250 = vsel %vm2163, %v2159, %v2247
    %v2251 = vsel %vm2163, 0, %v2249
    %v2252 = vcosq.f32.pop %v2250
    %v2253 = vsinq.f32.pop %v2250
    %vm2254 = vweird.f32 %v2159
    %v2255 = vadd.s32 %v2251, 3
    %v2256 = vand.u32 %v2255, 3
    %vm2257 = vcmp.lt.s32.totalorder %v2256, 2
    %vm2258 = vcmp.eq.s32.totalorder %v2256, 0
    %v2259 = vxor.u32 %v2253, 2147483648
    %v2260 = vsel %vm2258, %v2252, %v2259
    %vm2261 = vcmp.eq.s32.totalorder %v2256, 2
    %v2262 = vxor.u32 %v2252, 2147483648
    %v2263 = vsel %vm2261, %v2262, %v2253
    %v2264 = vsel %vm2257, %v2260, %v2263
    %v2265 = vsel %vm2254, nan, %v2264
    %2266 = vrot.lane.b32.xlu0 %v2082, 104
    %v2267 = vpop.permute.xlu0 %2266
    %v2269 = vsel %vm1031, %v2265, %v2267
    %v2270 = vsel %vm1982, %v2269, %v1979
    %v2272 = vsel %vm1984, %v2270, 0
    %2274 = vmatprep.subr.mxu0 0.0
    %2275 = vmatpush1.msra.mxu0 0.0
    %2276 = vmatprep.subr.mxu0 0.0
    %2277 = vmatpush1.msra.mxu0 0.0
    %2278 = vmatprep.subr.mxu0 0.0
    %2279 = vmatpush1.msra.mxu0 0.0
    %2280 = vmatprep.subr.mxu0 0.0
    %2281 = vmatpush1.msra.mxu0 0.0
    %2282 = vmatprep.subr.mxu0 0.0
    %2283 = vmatpush1.msra.mxu0 0.0
    %2284 = vmatprep.subr.mxu0 0.0
    %2285 = vmatpush1.msra.mxu0 0.0
    %2286 = vmatprep.subr.mxu0 0.0
    %2287 = vmatpush1.msra.mxu0 0.0
    %2288 = vmatprep.subr.mxu0 0.0
    %2289 = vmatpush1.msra.mxu0 0.0
    %2290 = vmatprep.subr.mxu0 0.0
    %2291 = vmatpush1.msra.mxu0 0.0
    %2292 = vmatprep.subr.mxu0 0.0
    %2293 = vmatpush1.msra.mxu0 0.0
    %2294 = vmatprep.subr.mxu0 0.0
    %2295 = vmatpush1.msra.mxu0 %v36
    %2296 = vmatprep.subr.mxu0 0.0
    %2297 = vmatpush1.msra.mxu0 %v35
    %2298 = vmatprep.subr.mxu0 0.0
    %2299 = vmatpush1.msra.mxu0 %v34
    %2300 = vmatprep.subr.mxu0 0.0
    %2301 = vmatpush1.msra.mxu0 %v33
    %2302 = vmatprep.subr.mxu0 0.0
    %2303 = vmatpush1.msra.mxu0 %v32
    %2304 = vmatprep.subr.mxu0 0.0
    %2305 = vmatpush1.msra.mxu0 %v31
    %2306 = vmatprep.subr.mxu0 0.0
    %2307 = vmatpush2.msra.mxu0 0.0
    %2308 = vmatprep.subr.mxu0 0.0
    %2309 = vmatpush2.msra.mxu0 0.0
    %2310 = vmatprep.subr.mxu0 0.0
    %2311 = vmatpush2.msra.mxu0 0.0
    %2312 = vmatprep.subr.mxu0 0.0
    %2313 = vmatpush2.msra.mxu0 0.0
    %2314 = vmatprep.subr.mxu0 0.0
    %2315 = vmatpush2.msra.mxu0 0.0
    %2316 = vmatprep.subr.mxu0 0.0
    %2317 = vmatpush2.msra.mxu0 0.0
    %2318 = vmatprep.subr.mxu0 0.0
    %2319 = vmatpush2.msra.mxu0 0.0
    %2320 = vmatprep.subr.mxu0 0.0
    %2321 = vmatpush2.msra.mxu0 0.0
    %2322 = vmatprep.subr.mxu0 0.0
    %2323 = vmatpush2.msra.mxu0 0.0
    %2324 = vmatprep.subr.mxu0 0.0
    %2325 = vmatpush2.msra.mxu0 0.0
    %2326 = vmatprep.subr.mxu0 0.0
    %2327 = vmatpush2.msra.mxu0 0.0
    %2328 = vmatprep.subr.mxu0 0.0
    %2329 = vmatpush2.msra.mxu0 0.0
    %2330 = vmatprep.subr.mxu0 0.0
    %2331 = vmatpush2.msra.mxu0 0.0
    %2332 = vmatprep.subr.mxu0 0.0
    %2333 = vmatpush2.msra.mxu0 0.0
    %2334 = vmatprep.subr.mxu0 0.0
    %2335 = vmatpush2.msra.mxu0 0.0
    %2336 = vmatprep.subr.mxu0 0.0
    %2337 = vmatpush2.msra.mxu0 0.0
    %2338 = vmatprep.mubr.f32.mxu0 0.0
    %2339 = vmatmul.mubr.f32.gmra.mxu0 %v2272
    %v2340 = vpop.f32.mrf.mxu0
    %v2341 = vadd.f32 0.0, %v2340
    %v2342 = vpop.f32.mrf.mxu0
    %2343 = vdwg.mxu0
    %v2344 = vxor.u32 %v2341, 2147483648
    %v2345 = vmul.f32 %v2344, 1.442695
    %v2346 = vpow.pop %v2345
    %v2347 = vadd.f32 %v2346, 1.0
    %v2348 = vrcp.pop %v2347
    %v2349 = vmul.f32 1.0, %v2348
    %2351 = vrot.lane.b32.xlu0 %v2341, 32
    %v2352 = vpop.permute.xlu0 %2351
    %v2354 = vmul.f32 %v2349, %v2352
    %2356 = vrot.lane.b32.xlu0 %v2354, 64
    %v2357 = vpop.permute.xlu0 %2356
    %v2359 = vadd.f32 %v2341, %v2357
    %v2360 = vtanh.pop %v2359
    %v2361 = vsub.f32 1.0, %v2349
    %2363 = vrot.lane.b32.xlu0 %v2360, 96
    %v2364 = vpop.permute.xlu0 %2363
    %v2366 = vmul.f32 %v2361, %v2364
    %v2367 = vmul.f32 %v2349, %v2082
    %v2368 = vadd.f32 %v2366, %v2367
    %2370 = vrot.lane.b32.xlu0 %v2368, 96
    %v2371 = vpop.permute.xlu0 %2370
    %v2372 = vsel %vm1161, %v2371, 0
    %2374 = vmatprep.subr.mxu0 0.0
    %2375 = vmatpush1.msra.mxu0 0.0
    %2376 = vmatprep.subr.mxu0 0.0
    %2377 = vmatpush1.msra.mxu0 0.0
    %2378 = vmatprep.subr.mxu0 0.0
    %2379 = vmatpush1.msra.mxu0 0.0
    %2380 = vmatprep.subr.mxu0 0.0
    %2381 = vmatpush1.msra.mxu0 0.0
    %2382 = vmatprep.subr.mxu0 0.0
    %2383 = vmatpush1.msra.mxu0 0.0
    %2384 = vmatprep.subr.mxu0 0.0
    %2385 = vmatpush1.msra.mxu0 0.0
    %2386 = vmatprep.subr.mxu0 0.0
    %2387 = vmatpush1.msra.mxu0 0.0
    %2388 = vmatprep.subr.mxu0 0.0
    %2389 = vmatpush1.msra.mxu0 0.0
    %2390 = vmatprep.subr.mxu0 0.0
    %2391 = vmatpush1.msra.mxu0 0.0
    %2392 = vmatprep.subr.mxu0 0.0
    %2393 = vmatpush1.msra.mxu0 0.0
    %2394 = vmatprep.subr.mxu0 0.0
    %2395 = vmatpush1.msra.mxu0 0.0
    %2396 = vmatprep.subr.mxu0 0.0
    %2397 = vmatpush1.msra.mxu0 0.0
    %2398 = vmatprep.subr.mxu0 0.0
    %2399 = vmatpush1.msra.mxu0 %v47
    %2400 = vmatprep.subr.mxu0 0.0
    %2401 = vmatpush1.msra.mxu0 %v46
    %2402 = vmatprep.subr.mxu0 0.0
    %2403 = vmatpush1.msra.mxu0 %v45
    %2404 = vmatprep.subr.mxu0 0.0
    %2405 = vmatpush1.msra.mxu0 %v44
    %2406 = vmatprep.subr.mxu0 0.0
    %2407 = vmatpush2.msra.mxu0 0.0
    %2408 = vmatprep.subr.mxu0 0.0
    %2409 = vmatpush2.msra.mxu0 0.0
    %2410 = vmatprep.subr.mxu0 0.0
    %2411 = vmatpush2.msra.mxu0 0.0
    %2412 = vmatprep.subr.mxu0 0.0
    %2413 = vmatpush2.msra.mxu0 0.0
    %2414 = vmatprep.subr.mxu0 0.0
    %2415 = vmatpush2.msra.mxu0 0.0
    %2416 = vmatprep.subr.mxu0 0.0
    %2417 = vmatpush2.msra.mxu0 0.0
    %2418 = vmatprep.subr.mxu0 0.0
    %2419 = vmatpush2.msra.mxu0 0.0
    %2420 = vmatprep.subr.mxu0 0.0
    %2421 = vmatpush2.msra.mxu0 0.0
    %2422 = vmatprep.subr.mxu0 0.0
    %2423 = vmatpush2.msra.mxu0 0.0
    %2424 = vmatprep.subr.mxu0 0.0
    %2425 = vmatpush2.msra.mxu0 0.0
    %2426 = vmatprep.subr.mxu0 0.0
    %2427 = vmatpush2.msra.mxu0 0.0
    %2428 = vmatprep.subr.mxu0 0.0
    %2429 = vmatpush2.msra.mxu0 0.0
    %2430 = vmatprep.subr.mxu0 0.0
    %2431 = vmatpush2.msra.mxu0 0.0
    %2432 = vmatprep.subr.mxu0 0.0
    %2433 = vmatpush2.msra.mxu0 0.0
    %2434 = vmatprep.subr.mxu0 0.0
    %2435 = vmatpush2.msra.mxu0 0.0
    %2436 = vmatprep.subr.mxu0 0.0
    %2437 = vmatpush2.msra.mxu0 0.0
    %2438 = vmatprep.mubr.f32.mxu0 0.0
    %2439 = vmatmul.mubr.f32.gmra.mxu0 %v2372
    %v2440 = vpop.f32.mrf.mxu0
    %v2441 = vadd.f32 %v2086, %v2440
    %v2442 = vpop.f32.mrf.mxu0
    %2443 = vdwg.mxu0
    %v2444 = vand.u32 2147483647, %v2441
    %vm2445 = vcmp.le.f32.partialorder %v2444, 0.7853982
    %vm2446 = vcmp.lt.s32.totalorder %v2441, 0
    %v2447 = vand.u32 %v2441, 2139095040
    %v2448 = vshrl.u32 %v2447, 23
    %v2449 = vsub.s32 %v2448, 127
    %v2450 = vand.u32 2147483647, %v2441
    %v2451 = vand.u32 %v2450, 8388607
    %v2452 = vor.u32 %v2451, 8388608
    %v2453 = vsub.s32 0, %v2452
    %v2454 = vadd.s32 %v2449, 1
    %vm2455 = vcmp.gt.s32.totalorder %v2454, 0
    %v2456 = vsel %vm2455, %v2454, 0
    %v2457 = vshrl.u32 %v2456, 5
    %v2458 = vand.u32 %v2456, 31
    %v2459 = vsub.s32 32, %v2458
    %v2460 = vshrl.u32 683565275, %v2459
    %v2461 = vshll.u32 683565275, %v2458
    %v2462 = vshrl.u32 2475754826, %v2459
    %v2463 = vor.u32 %v2461, %v2462
    %v2464 = vshll.u32 2475754826, %v2458
    %v2465 = vshrl.u32 2131351028, %v2459
    %v2466 = vor.u32 %v2464, %v2465
    %v2467 = vshll.u32 2131351028, %v2458
    %v2468 = vshrl.u32 2102212464, %v2459
    %v2469 = vor.u32 %v2467, %v2468
    %v2470 = vshll.u32 2102212464, %v2458
    %v2471 = vshrl.u32 920167782, %v2459
    %v2472 = vor.u32 %v2470, %v2471
    %v2473 = vshll.u32 920167782, %v2458
    %v2474 = vshrl.u32 1326507024, %v2459
    %v2475 = vor.u32 %v2473, %v2474
    %vm2476 = vcmp.lt.s32.totalorder %v2457, 1
    %vm2477 = vcmp.lt.s32.totalorder %v2457, 2
    %vm2478 = vcmp.lt.s32.totalorder %v2457, 3
    %vm2479 = vcmp.lt.s32.totalorder %v2457, 4
    %v2480 = vsel %vm2476, %v2460, %v2463
    %v2481 = vsel %vm2479, %v2469, 2102212464
    %v2482 = vsel %vm2478, %v2466, %v2481
    %v2483 = vsel %vm2477, %v2480, %v2482
    %v2484 = vsel %vm2476, %v2463, %v2466
    %v2485 = vsel %vm2479, %v2472, 920167782
    %v2486 = vsel %vm2478, %v2469, %v2485
    %v2487 = vsel %vm2477, %v2484, %v2486
    %v2488 = vsel %vm2476, %v2466, %v2469
    %v2489 = vsel %vm2479, %v2475, 1326507024
    %v2490 = vsel %vm2478, %v2472, %v2489
    %v2491 = vsel %vm2477, %v2488, %v2490
    %v2492 = vshll.u32 %v2452, 8
    %v2493 = vmul.u32.u64.compose %v2492, %v2491
    %v2494 = vextract.low.u32 %v2493
    %v2495 = vextract.high.u32 %v2493
    %v2496 = vmul.u32.u64.compose %v2492, %v2487
    %v2497 = vextract.low.u32 %v2496
    %v2498 = vextract.high.u32 %v2496
    %v2499 = vmul.u32 %v2492, %v2483
    %v2500 = vadd.s32 %v2495, %v2497
    %vm2501 = vc.u32 %v2495, %v2497
    %v2502 = vadd.s32 %v2498, 1
    %v2503 = vsel %vm2501, %v2502, %v2498
    %v2504 = vadd.s32 %v2499, %v2503
    %v2505 = vadd.s32 %v2504, 536870912
    %v2506 = vshrl.u32 %v2505, 30
    %v2507 = vshll.u32 %v2506, 30
    %v2508 = vsub.s32 %v2504, %v2507
    %vm2509 = vcmp.lt.s32.totalorder %v2508, 0
    %v2510 = vsub.s32 0, %v2508
    %v2511 = vsel %vm2509, %v2510, %v2508
    %v2512 = vclz %v2511
    %v2513 = vsub.s32 %v2512, 2
    %vm2514 = vcmp.gt.s32.totalorder 0, %v2513
    %v2515 = vsel %vm2514, 0, %v2513
    %v2516 = vsub.s32 32, %v2515
    %v2517 = vshll.u32 %v2508, %v2515
    %v2518 = vshrl.u32 %v2500, %v2516
    %v2519 = vor.u32 %v2517, %v2518
    %v2520 = vsub.s32 4294967266, %v2515
    %v2521 = vadd.s32 %v2520, 127
    %v2522 = vshll.u32 %v2521, 23
    %v2523 = vor.u32 4788187, %v2522
    %v2524 = vand.u32 2147483647, %v2523
    %v2526 = vcvt.s32.f32 %v2519
    %v2527 = vmul.f32 %v2526, %v2524
    %v2528 = vxor.u32 %v2527, 2147483648
    %v2529 = vsel %vm2446, %v2528, %v2527
    %v2530 = vsub.s32 4, %v2506
    %v2531 = vsel %vm2446, %v2530, %v2506
    %v2532 = vsel %vm2445, %v2441, %v2529
    %v2533 = vsel %vm2445, 0, %v2531
    %v2534 = vcosq.f32.pop %v2532
    %v2535 = vsinq.f32.pop %v2532
    %vm2536 = vweird.f32 %v2441
    %v2537 = vadd.s32 %v2533, 3
    %v2538 = vand.u32 %v2537, 3
    %vm2539 = vcmp.lt.s32.totalorder %v2538, 2
    %vm2540 = vcmp.eq.s32.totalorder %v2538, 0
    %v2541 = vxor.u32 %v2535, 2147483648
    %v2542 = vsel %vm2540, %v2534, %v2541
    %vm2543 = vcmp.eq.s32.totalorder %v2538, 2
    %v2544 = vxor.u32 %v2534, 2147483648
    %v2545 = vsel %vm2543, %v2544, %v2535
    %v2546 = vsel %vm2539, %v2542, %v2545
    %v2547 = vsel %vm2536, nan, %v2546
    %2548 = vrot.lane.b32.xlu0 %v2368, 104
    %v2549 = vpop.permute.xlu0 %2548
    %v2551 = vsel %vm1031, %v2547, %v2549
    %v2552 = vsel %vm1982, %v2551, %v1979
    %v2554 = vsel %vm1984, %v2552, 0
    %2556 = vmatprep.subr.mxu0 0.0
    %2557 = vmatpush1.msra.mxu0 0.0
    %2558 = vmatprep.subr.mxu0 0.0
    %2559 = vmatpush1.msra.mxu0 0.0
    %2560 = vmatprep.subr.mxu0 0.0
    %2561 = vmatpush1.msra.mxu0 0.0
    %2562 = vmatprep.subr.mxu0 0.0
    %2563 = vmatpush1.msra.mxu0 0.0
    %2564 = vmatprep.subr.mxu0 0.0
    %2565 = vmatpush1.msra.mxu0 0.0
    %2566 = vmatprep.subr.mxu0 0.0
    %2567 = vmatpush1.msra.mxu0 0.0
    %2568 = vmatprep.subr.mxu0 0.0
    %2569 = vmatpush1.msra.mxu0 0.0
    %2570 = vmatprep.subr.mxu0 0.0
    %2571 = vmatpush1.msra.mxu0 0.0
    %2572 = vmatprep.subr.mxu0 0.0
    %2573 = vmatpush1.msra.mxu0 0.0
    %2574 = vmatprep.subr.mxu0 0.0
    %2575 = vmatpush1.msra.mxu0 0.0
    %2576 = vmatprep.subr.mxu0 0.0
    %2577 = vmatpush1.msra.mxu0 %v36
    %2578 = vmatprep.subr.mxu0 0.0
    %2579 = vmatpush1.msra.mxu0 %v35
    %2580 = vmatprep.subr.mxu0 0.0
    %2581 = vmatpush1.msra.mxu0 %v34
    %2582 = vmatprep.subr.mxu0 0.0
    %2583 = vmatpush1.msra.mxu0 %v33
    %2584 = vmatprep.subr.mxu0 0.0
    %2585 = vmatpush1.msra.mxu0 %v32
    %2586 = vmatprep.subr.mxu0 0.0
    %2587 = vmatpush1.msra.mxu0 %v31
    %2588 = vmatprep.subr.mxu0 0.0
    %2589 = vmatpush2.msra.mxu0 0.0
    %2590 = vmatprep.subr.mxu0 0.0
    %2591 = vmatpush2.msra.mxu0 0.0
    %2592 = vmatprep.subr.mxu0 0.0
    %2593 = vmatpush2.msra.mxu0 0.0
    %2594 = vmatprep.subr.mxu0 0.0
    %2595 = vmatpush2.msra.mxu0 0.0
    %2596 = vmatprep.subr.mxu0 0.0
    %2597 = vmatpush2.msra.mxu0 0.0
    %2598 = vmatprep.subr.mxu0 0.0
    %2599 = vmatpush2.msra.mxu0 0.0
    %2600 = vmatprep.subr.mxu0 0.0
    %2601 = vmatpush2.msra.mxu0 0.0
    %2602 = vmatprep.subr.mxu0 0.0
    %2603 = vmatpush2.msra.mxu0 0.0
    %2604 = vmatprep.subr.mxu0 0.0
    %2605 = vmatpush2.msra.mxu0 0.0
    %2606 = vmatprep.subr.mxu0 0.0
    %2607 = vmatpush2.msra.mxu0 0.0
    %2608 = vmatprep.subr.mxu0 0.0
    %2609 = vmatpush2.msra.mxu0 0.0
    %2610 = vmatprep.subr.mxu0 0.0
    %2611 = vmatpush2.msra.mxu0 0.0
    %2612 = vmatprep.subr.mxu0 0.0
    %2613 = vmatpush2.msra.mxu0 0.0
    %2614 = vmatprep.subr.mxu0 0.0
    %2615 = vmatpush2.msra.mxu0 0.0
    %2616 = vmatprep.subr.mxu0 0.0
    %2617 = vmatpush2.msra.mxu0 0.0
    %2618 = vmatprep.subr.mxu0 0.0
    %2619 = vmatpush2.msra.mxu0 0.0
    %2620 = vmatprep.mubr.f32.mxu0 0.0
    %2621 = vmatmul.mubr.f32.gmra.mxu0 %v2554
    %v2622 = vpop.f32.mrf.mxu0
    %v2623 = vadd.f32 0.0, %v2622
    %v2624 = vpop.f32.mrf.mxu0
    %2625 = vdwg.mxu0
    %v2626 = vxor.u32 %v2623, 2147483648
    %v2627 = vmul.f32 %v2626, 1.442695
    %v2628 = vpow.pop %v2627
    %v2629 = vadd.f32 %v2628, 1.0
    %v2630 = vrcp.pop %v2629
    %v2631 = vmul.f32 1.0, %v2630
    %2633 = vrot.lane.b32.xlu0 %v2623, 32
    %v2634 = vpop.permute.xlu0 %2633
    %v2636 = vmul.f32 %v2631, %v2634
    %2638 = vrot.lane.b32.xlu0 %v2636, 64
    %v2639 = vpop.permute.xlu0 %2638
    %v2641 = vadd.f32 %v2623, %v2639
    %v2642 = vtanh.pop %v2641
    %v2643 = vsub.f32 1.0, %v2631
    %2645 = vrot.lane.b32.xlu0 %v2642, 96
    %v2646 = vpop.permute.xlu0 %2645
    %v2648 = vmul.f32 %v2643, %v2646
    %v2649 = vmul.f32 %v2631, %v2368
    %v2650 = vadd.f32 %v2648, %v2649
    %2652 = vrot.lane.b32.xlu0 %v2650, 96
    %v2653 = vpop.permute.xlu0 %2652
    %v2654 = vsel %vm1161, %v2653, 0
    %2656 = vmatprep.subr.mxu0 0.0
    %2657 = vmatpush1.msra.mxu0 0.0
    %2658 = vmatprep.subr.mxu0 0.0
    %2659 = vmatpush1.msra.mxu0 0.0
    %2660 = vmatprep.subr.mxu0 0.0
    %2661 = vmatpush1.msra.mxu0 0.0
    %2662 = vmatprep.subr.mxu0 0.0
    %2663 = vmatpush1.msra.mxu0 0.0
    %2664 = vmatprep.subr.mxu0 0.0
    %2665 = vmatpush1.msra.mxu0 0.0
    %2666 = vmatprep.subr.mxu0 0.0
    %2667 = vmatpush1.msra.mxu0 0.0
    %2668 = vmatprep.subr.mxu0 0.0
    %2669 = vmatpush1.msra.mxu0 0.0
    %2670 = vmatprep.subr.mxu0 0.0
    %2671 = vmatpush1.msra.mxu0 0.0
    %2672 = vmatprep.subr.mxu0 0.0
    %2673 = vmatpush1.msra.mxu0 0.0
    %2674 = vmatprep.subr.mxu0 0.0
    %2675 = vmatpush1.msra.mxu0 0.0
    %2676 = vmatprep.subr.mxu0 0.0
    %2677 = vmatpush1.msra.mxu0 0.0
    %2678 = vmatprep.subr.mxu0 0.0
    %2679 = vmatpush1.msra.mxu0 0.0
    %2680 = vmatprep.subr.mxu0 0.0
    %2681 = vmatpush1.msra.mxu0 %v47
    %2682 = vmatprep.subr.mxu0 0.0
    %2683 = vmatpush1.msra.mxu0 %v46
    %2684 = vmatprep.subr.mxu0 0.0
    %2685 = vmatpush1.msra.mxu0 %v45
    %2686 = vmatprep.subr.mxu0 0.0
    %2687 = vmatpush1.msra.mxu0 %v44
    %2688 = vmatprep.subr.mxu0 0.0
    %2689 = vmatpush2.msra.mxu0 0.0
    %2690 = vmatprep.subr.mxu0 0.0
    %2691 = vmatpush2.msra.mxu0 0.0
    %2692 = vmatprep.subr.mxu0 0.0
    %2693 = vmatpush2.msra.mxu0 0.0
    %2694 = vmatprep.subr.mxu0 0.0
    %2695 = vmatpush2.msra.mxu0 0.0
    %2696 = vmatprep.subr.mxu0 0.0
    %2697 = vmatpush2.msra.mxu0 0.0
    %2698 = vmatprep.subr.mxu0 0.0
    %2699 = vmatpush2.msra.mxu0 0.0
    %2700 = vmatprep.subr.mxu0 0.0
    %2701 = vmatpush2.msra.mxu0 0.0
    %2702 = vmatprep.subr.mxu0 0.0
    %2703 = vmatpush2.msra.mxu0 0.0
    %2704 = vmatprep.subr.mxu0 0.0
    %2705 = vmatpush2.msra.mxu0 0.0
    %2706 = vmatprep.subr.mxu0 0.0
    %2707 = vmatpush2.msra.mxu0 0.0
    %2708 = vmatprep.subr.mxu0 0.0
    %2709 = vmatpush2.msra.mxu0 0.0
    %2710 = vmatprep.subr.mxu0 0.0
    %2711 = vmatpush2.msra.mxu0 0.0
    %2712 = vmatprep.subr.mxu0 0.0
    %2713 = vmatpush2.msra.mxu0 0.0
    %2714 = vmatprep.subr.mxu0 0.0
    %2715 = vmatpush2.msra.mxu0 0.0
    %2716 = vmatprep.subr.mxu0 0.0
    %2717 = vmatpush2.msra.mxu0 0.0
    %2718 = vmatprep.subr.mxu0 0.0
    %2719 = vmatpush2.msra.mxu0 0.0
    %2720 = vmatprep.mubr.f32.mxu0 0.0
    %2721 = vmatmul.mubr.f32.gmra.mxu0 %v2654
    %v2722 = vpop.f32.mrf.mxu0
    %v2723 = vadd.f32 %v2086, %v2722
    %v2724 = vpop.f32.mrf.mxu0
    %2725 = vdwg.mxu0
    %v2726 = vand.u32 2147483647, %v2723
    %vm2727 = vcmp.le.f32.partialorder %v2726, 0.7853982
    %vm2728 = vcmp.lt.s32.totalorder %v2723, 0
    %v2729 = vand.u32 %v2723, 2139095040
    %v2730 = vshrl.u32 %v2729, 23
    %v2731 = vsub.s32 %v2730, 127
    %v2732 = vand.u32 2147483647, %v2723
    %v2733 = vand.u32 %v2732, 8388607
    %v2734 = vor.u32 %v2733, 8388608
    %v2735 = vsub.s32 0, %v2734
    %v2736 = vadd.s32 %v2731, 1
    %vm2737 = vcmp.gt.s32.totalorder %v2736, 0
    %v2738 = vsel %vm2737, %v2736, 0
    %v2739 = vshrl.u32 %v2738, 5
    %v2740 = vand.u32 %v2738, 31
    %v2741 = vsub.s32 32, %v2740
    %v2742 = vshrl.u32 683565275, %v2741
    %v2743 = vshll.u32 683565275, %v2740
    %v2744 = vshrl.u32 2475754826, %v2741
    %v2745 = vor.u32 %v2743, %v2744
    %v2746 = vshll.u32 2475754826, %v2740
    %v2747 = vshrl.u32 2131351028, %v2741
    %v2748 = vor.u32 %v2746, %v2747
    %v2749 = vshll.u32 2131351028, %v2740
    %v2750 = vshrl.u32 2102212464, %v2741
    %v2751 = vor.u32 %v2749, %v2750
    %v2752 = vshll.u32 2102212464, %v2740
    %v2753 = vshrl.u32 920167782, %v2741
    %v2754 = vor.u32 %v2752, %v2753
    %v2755 = vshll.u32 920167782, %v2740
    %v2756 = vshrl.u32 1326507024, %v2741
    %v2757 = vor.u32 %v2755, %v2756
    %vm2758 = vcmp.lt.s32.totalorder %v2739, 1
    %vm2759 = vcmp.lt.s32.totalorder %v2739, 2
    %vm2760 = vcmp.lt.s32.totalorder %v2739, 3
    %vm2761 = vcmp.lt.s32.totalorder %v2739, 4
    %v2762 = vsel %vm2758, %v2742, %v2745
    %v2763 = vsel %vm2761, %v2751, 2102212464
    %v2764 = vsel %vm2760, %v2748, %v2763
    %v2765 = vsel %vm2759, %v2762, %v2764
    %v2766 = vsel %vm2758, %v2745, %v2748
    %v2767 = vsel %vm2761, %v2754, 920167782
    %v2768 = vsel %vm2760, %v2751, %v2767
    %v2769 = vsel %vm2759, %v2766, %v2768
    %v2770 = vsel %vm2758, %v2748, %v2751
    %v2771 = vsel %vm2761, %v2757, 1326507024
    %v2772 = vsel %vm2760, %v2754, %v2771
    %v2773 = vsel %vm2759, %v2770, %v2772
    %v2774 = vshll.u32 %v2734, 8
    %v2775 = vmul.u32.u64.compose %v2774, %v2773
    %v2776 = vextract.low.u32 %v2775
    %v2777 = vextract.high.u32 %v2775
    %v2778 = vmul.u32.u64.compose %v2774, %v2769
    %v2779 = vextract.low.u32 %v2778
    %v2780 = vextract.high.u32 %v2778
    %v2781 = vmul.u32 %v2774, %v2765
    %v2782 = vadd.s32 %v2777, %v2779
    %vm2783 = vc.u32 %v2777, %v2779
    %v2784 = vadd.s32 %v2780, 1
    %v2785 = vsel %vm2783, %v2784, %v2780
    %v2786 = vadd.s32 %v2781, %v2785
    %v2787 = vadd.s32 %v2786, 536870912
    %v2788 = vshrl.u32 %v2787, 30
    %v2789 = vshll.u32 %v2788, 30
    %v2790 = vsub.s32 %v2786, %v2789
    %vm2791 = vcmp.lt.s32.totalorder %v2790, 0
    %v2792 = vsub.s32 0, %v2790
    %v2793 = vsel %vm2791, %v2792, %v2790
    %v2794 = vclz %v2793
    %v2795 = vsub.s32 %v2794, 2
    %vm2796 = vcmp.gt.s32.totalorder 0, %v2795
    %v2797 = vsel %vm2796, 0, %v2795
    %v2798 = vsub.s32 32, %v2797
    %v2799 = vshll.u32 %v2790, %v2797
    %v2800 = vshrl.u32 %v2782, %v2798
    %v2801 = vor.u32 %v2799, %v2800
    %v2802 = vsub.s32 4294967266, %v2797
    %v2803 = vadd.s32 %v2802, 127
    %v2804 = vshll.u32 %v2803, 23
    %v2805 = vor.u32 4788187, %v2804
    %v2806 = vand.u32 2147483647, %v2805
    %v2808 = vcvt.s32.f32 %v2801
    %v2809 = vmul.f32 %v2808, %v2806
    %v2810 = vxor.u32 %v2809, 2147483648
    %v2811 = vsel %vm2728, %v2810, %v2809
    %v2812 = vsub.s32 4, %v2788
    %v2813 = vsel %vm2728, %v2812, %v2788
    %v2814 = vsel %vm2727, %v2723, %v2811
    %v2815 = vsel %vm2727, 0, %v2813
    %v2816 = vcosq.f32.pop %v2814
    %v2817 = vsinq.f32.pop %v2814
    %vm2818 = vweird.f32 %v2723
    %v2819 = vadd.s32 %v2815, 3
    %v2820 = vand.u32 %v2819, 3
    %vm2821 = vcmp.lt.s32.totalorder %v2820, 2
    %vm2822 = vcmp.eq.s32.totalorder %v2820, 0
    %v2823 = vxor.u32 %v2817, 2147483648
    %v2824 = vsel %vm2822, %v2816, %v2823
    %vm2825 = vcmp.eq.s32.totalorder %v2820, 2
    %v2826 = vxor.u32 %v2816, 2147483648
    %v2827 = vsel %vm2825, %v2826, %v2817
    %v2828 = vsel %vm2821, %v2824, %v2827
    %v2829 = vsel %vm2818, nan, %v2828
    %2830 = vrot.lane.b32.xlu0 %v2650, 104
    %v2831 = vpop.permute.xlu0 %2830
    %v2833 = vsel %vm1031, %v2829, %v2831
    %v2834 = vsel %vm1982, %v2833, %v1979
    %v2836 = vsel %vm1984, %v2834, 0
    %2838 = vmatprep.subr.mxu0 0.0
    %2839 = vmatpush1.msra.mxu0 0.0
    %2840 = vmatprep.subr.mxu0 0.0
    %2841 = vmatpush1.msra.mxu0 0.0
    %2842 = vmatprep.subr.mxu0 0.0
    %2843 = vmatpush1.msra.mxu0 0.0
    %2844 = vmatprep.subr.mxu0 0.0
    %2845 = vmatpush1.msra.mxu0 0.0
    %2846 = vmatprep.subr.mxu0 0.0
    %2847 = vmatpush1.msra.mxu0 0.0
    %2848 = vmatprep.subr.mxu0 0.0
    %2849 = vmatpush1.msra.mxu0 0.0
    %2850 = vmatprep.subr.mxu0 0.0
    %2851 = vmatpush1.msra.mxu0 0.0
    %2852 = vmatprep.subr.mxu0 0.0
    %2853 = vmatpush1.msra.mxu0 0.0
    %2854 = vmatprep.subr.mxu0 0.0
    %2855 = vmatpush1.msra.mxu0 0.0
    %2856 = vmatprep.subr.mxu0 0.0
    %2857 = vmatpush1.msra.mxu0 0.0
    %2858 = vmatprep.subr.mxu0 0.0
    %2859 = vmatpush1.msra.mxu0 %v36
    %2860 = vmatprep.subr.mxu0 0.0
    %2861 = vmatpush1.msra.mxu0 %v35
    %2862 = vmatprep.subr.mxu0 0.0
    %2863 = vmatpush1.msra.mxu0 %v34
    %2864 = vmatprep.subr.mxu0 0.0
    %2865 = vmatpush1.msra.mxu0 %v33
    %2866 = vmatprep.subr.mxu0 0.0
    %2867 = vmatpush1.msra.mxu0 %v32
    %2868 = vmatprep.subr.mxu0 0.0
    %2869 = vmatpush1.msra.mxu0 %v31
    %2870 = vmatprep.subr.mxu0 0.0
    %2871 = vmatpush2.msra.mxu0 0.0
    %2872 = vmatprep.subr.mxu0 0.0
    %2873 = vmatpush2.msra.mxu0 0.0
    %2874 = vmatprep.subr.mxu0 0.0
    %2875 = vmatpush2.msra.mxu0 0.0
    %2876 = vmatprep.subr.mxu0 0.0
    %2877 = vmatpush2.msra.mxu0 0.0
    %2878 = vmatprep.subr.mxu0 0.0
    %2879 = vmatpush2.msra.mxu0 0.0
    %2880 = vmatprep.subr.mxu0 0.0
    %2881 = vmatpush2.msra.mxu0 0.0
    %2882 = vmatprep.subr.mxu0 0.0
    %2883 = vmatpush2.msra.mxu0 0.0
    %2884 = vmatprep.subr.mxu0 0.0
    %2885 = vmatpush2.msra.mxu0 0.0
    %2886 = vmatprep.subr.mxu0 0.0
    %2887 = vmatpush2.msra.mxu0 0.0
    %2888 = vmatprep.subr.mxu0 0.0
    %2889 = vmatpush2.msra.mxu0 0.0
    %2890 = vmatprep.subr.mxu0 0.0
    %2891 = vmatpush2.msra.mxu0 0.0
    %2892 = vmatprep.subr.mxu0 0.0
    %2893 = vmatpush2.msra.mxu0 0.0
    %2894 = vmatprep.subr.mxu0 0.0
    %2895 = vmatpush2.msra.mxu0 0.0
    %2896 = vmatprep.subr.mxu0 0.0
    %2897 = vmatpush2.msra.mxu0 0.0
    %2898 = vmatprep.subr.mxu0 0.0
    %2899 = vmatpush2.msra.mxu0 0.0
    %2900 = vmatprep.subr.mxu0 0.0
    %2901 = vmatpush2.msra.mxu0 0.0
    %2902 = vmatprep.mubr.f32.mxu0 0.0
    %2903 = vmatmul.mubr.f32.gmra.mxu0 %v2836
    %v2904 = vpop.f32.mrf.mxu0
    %v2905 = vadd.f32 0.0, %v2904
    %v2906 = vpop.f32.mrf.mxu0
    %2907 = vdwg.mxu0
    %v2908 = vxor.u32 %v2905, 2147483648
    %v2909 = vmul.f32 %v2908, 1.442695
    %v2910 = vpow.pop %v2909
    %v2911 = vadd.f32 %v2910, 1.0
    %v2912 = vrcp.pop %v2911
    %v2913 = vmul.f32 1.0, %v2912
    %2915 = vrot.lane.b32.xlu0 %v2905, 32
    %v2916 = vpop.permute.xlu0 %2915
    %v2918 = vmul.f32 %v2913, %v2916
    %2920 = vrot.lane.b32.xlu0 %v2918, 64
    %v2921 = vpop.permute.xlu0 %2920
    %v2923 = vadd.f32 %v2905, %v2921
    %v2924 = vtanh.pop %v2923
    %v2925 = vsub.f32 1.0, %v2913
    %2927 = vrot.lane.b32.xlu0 %v2924, 96
    %v2928 = vpop.permute.xlu0 %2927
    %v2930 = vmul.f32 %v2925, %v2928
    %v2931 = vmul.f32 %v2913, %v2650
    %v2932 = vadd.f32 %v2930, %v2931
    %v2933 = vlaneseq
    %v2934 = vshrl.u32 %v2933, 7
    %v2935 = vsub.s32 0, %v2934
    %v2936 = vrot.slane %v41, %v2935
    %2938 = vrot.lane.b32.xlu0 %v2932, 96
    %v2939 = vpop.permute.xlu0 %2938
    %v2940 = vsel %vm1161, %v2939, 0
    %2942 = vmatprep.subr.mxu0 0.0
    %2943 = vmatpush1.msra.mxu0 0.0
    %2944 = vmatprep.subr.mxu0 0.0
    %2945 = vmatpush1.msra.mxu0 0.0
    %2946 = vmatprep.subr.mxu0 0.0
    %2947 = vmatpush1.msra.mxu0 0.0
    %2948 = vmatprep.subr.mxu0 0.0
    %2949 = vmatpush1.msra.mxu0 0.0
    %2950 = vmatprep.subr.mxu0 0.0
    %2951 = vmatpush1.msra.mxu0 0.0
    %2952 = vmatprep.subr.mxu0 0.0
    %2953 = vmatpush1.msra.mxu0 0.0
    %2954 = vmatprep.subr.mxu0 0.0
    %2955 = vmatpush1.msra.mxu0 0.0
    %2956 = vmatprep.subr.mxu0 0.0
    %2957 = vmatpush1.msra.mxu0 0.0
    %2958 = vmatprep.subr.mxu0 0.0
    %2959 = vmatpush1.msra.mxu0 0.0
    %2960 = vmatprep.subr.mxu0 0.0
    %2961 = vmatpush1.msra.mxu0 0.0
    %2962 = vmatprep.subr.mxu0 0.0
    %2963 = vmatpush1.msra.mxu0 0.0
    %2964 = vmatprep.subr.mxu0 0.0
    %2965 = vmatpush1.msra.mxu0 0.0
    %2966 = vmatprep.subr.mxu0 0.0
    %2967 = vmatpush1.msra.mxu0 %v40
    %2968 = vmatprep.subr.mxu0 0.0
    %2969 = vmatpush1.msra.mxu0 %v39
    %2970 = vmatprep.subr.mxu0 0.0
    %2971 = vmatpush1.msra.mxu0 %v38
    %2972 = vmatprep.subr.mxu0 0.0
    %2973 = vmatpush1.msra.mxu0 %v37
    %2974 = vmatprep.subr.mxu0 0.0
    %2975 = vmatpush2.msra.mxu0 0.0
    %2976 = vmatprep.subr.mxu0 0.0
    %2977 = vmatpush2.msra.mxu0 0.0
    %2978 = vmatprep.subr.mxu0 0.0
    %2979 = vmatpush2.msra.mxu0 0.0
    %2980 = vmatprep.subr.mxu0 0.0
    %2981 = vmatpush2.msra.mxu0 0.0
    %2982 = vmatprep.subr.mxu0 0.0
    %2983 = vmatpush2.msra.mxu0 0.0
    %2984 = vmatprep.subr.mxu0 0.0
    %2985 = vmatpush2.msra.mxu0 0.0
    %2986 = vmatprep.subr.mxu0 0.0
    %2987 = vmatpush2.msra.mxu0 0.0
    %2988 = vmatprep.subr.mxu0 0.0
    %2989 = vmatpush2.msra.mxu0 0.0
    %2990 = vmatprep.subr.mxu0 0.0
    %2991 = vmatpush2.msra.mxu0 0.0
    %2992 = vmatprep.subr.mxu0 0.0
    %2993 = vmatpush2.msra.mxu0 0.0
    %2994 = vmatprep.subr.mxu0 0.0
    %2995 = vmatpush2.msra.mxu0 0.0
    %2996 = vmatprep.subr.mxu0 0.0
    %2997 = vmatpush2.msra.mxu0 0.0
    %2998 = vmatprep.subr.mxu0 0.0
    %2999 = vmatpush2.msra.mxu0 0.0
    %3000 = vmatprep.subr.mxu0 0.0
    %3001 = vmatpush2.msra.mxu0 0.0
    %3002 = vmatprep.subr.mxu0 0.0
    %3003 = vmatpush2.msra.mxu0 0.0
    %3004 = vmatprep.subr.mxu0 0.0
    %3005 = vmatpush2.msra.mxu0 0.0
    %3006 = vmatprep.mubr.f32.mxu0 0.0
    %3007 = vmatmul.mubr.f32.gmra.mxu0 %v2090
    %v3008 = vpop.f32.mrf.mxu0
    %v3009 = vadd.f32 %v2936, %v3008
    %v3010 = vpop.f32.mrf.mxu0
    %3011 = vmatprep.mubr.f32.mxu0 0.0
    %3012 = vmatmul.mubr.f32.gmra.mxu0 %v2372
    %v3013 = vpop.f32.mrf.mxu0
    %v3014 = vadd.f32 %v2936, %v3013
    %v3015 = vpop.f32.mrf.mxu0
    %3016 = vmatprep.mubr.f32.mxu0 0.0
    %3017 = vmatmul.mubr.f32.gmra.mxu0 %v2654
    %v3018 = vpop.f32.mrf.mxu0
    %v3019 = vadd.f32 %v2936, %v3018
    %v3020 = vpop.f32.mrf.mxu0
    %3021 = vmatprep.mubr.f32.mxu0 0.0
    %3022 = vmatmul.mubr.f32.gmra.mxu0 %v2940
    %v3023 = vpop.f32.mrf.mxu0
    %v3024 = vadd.f32 %v2936, %v3023
    %v3025 = vpop.f32.mrf.mxu0
    %3026 = vdwg.mxu0
    %3027 = vst.msk [vmem:[%s2] sm:$0xff] %vm61, %v3009
    %3028 = vst.msk [vmem:[%s2 + $0x8] sm:$0xff] %vm61, %v3014
    %3029 = vst.msk [vmem:[%s2 + $0x10] sm:$0xff] %vm61, %v3019
    %3030 = vst.msk [vmem:[%s2 + $0x18] sm:$0xff] %vm61, %v3024
    // Predicated region
    $region14: #{seq2seq_forward.1} parent=1 // pred_check
      _
    $region15: #{seq2seq_forward.1} parent=1 // pred_check_branch
      %3032 = sbr.rel (0) target = $region17
    $region16: #{seq2seq_forward.1} parent=1 // pred_region
      _
    $region17: #{seq2seq_forward.1} parent=1 // pred_fallthru
      _
    // Predicated region
    $region18: #{seq2seq_forward.1} parent=1 // pred_check
      _
    $region19: #{seq2seq_forward.1} parent=1 // pred_check_branch
      %3034 = sbr.rel (0) target = $region21
    $region20: #{seq2seq_forward.1} parent=1 // pred_region
      _
    $region21: #{seq2seq_forward.1} parent=1 // pred_fallthru
      _
    %3035 = vsyncpa [#allocation3], 1

</llo_original>
